<compile_context>
chip_gen: v5e
topology: v5e:2x2
jax: 0.10.0
libtpu: 0.0.40
codegen_flags: <defaults>
</compile_context>

<pallas_src>
import functools
import math

import jax
import jax.numpy as jnp
from jax.experimental import pallas as pl
from jax.experimental.pallas import tpu as pltpu


# Demo-safe scoped-VMEM limit; at production sizes re-derive per generation
# (v5e/v6e: up to 128 MiB physical, v7x: 64 MiB physical per TensorCore).
_VMEM_LIMIT_BYTES = 32 * 1024 * 1024

_LAYER_NAMES = ("wqkv", "bqkv", "wo", "bo", "ln1_g", "ln1_b",
                "w1", "b1", "w2", "b2", "ln2_g", "ln2_b")


def _round_up(x, m):
    return (x + m - 1) // m * m


# ----------------------------------------------------------------------------
# In-kernel building blocks (values already in vregs; f32 math, bf16 MXU inputs)
# ----------------------------------------------------------------------------
def _layernorm(x, g, b, eps=1e-5):
    mu = jnp.mean(x, axis=-1, keepdims=True)
    var = jnp.mean((x - mu) ** 2, axis=-1, keepdims=True)
    return (x - mu) * jax.lax.rsqrt(var + eps) * g + b


def _transformer_layer(h, wqkv, bqkv, wo, bo, ln1g, ln1b, w1, b1, w2, b2,
                       ln2g, ln2b, *, num_heads, seq_valid):
    """Post-norm transformer encoder layer on a (TB, S_pad, D) activation slab.

    Layer-weight refs carry a leading block dim of 1 (per-layer BlockSpec), so they
    are indexed with [0].  The 1/sqrt(Dh) attention scale is pre-folded into the Q
    columns of wqkv at init time.
    """
    TB, S, D = h.shape
    Dh = D // num_heads

    # Fused QKV projection on MXU-filling (TB*S, D) rows; bf16 in, f32 accumulate.
    h2 = h.reshape(TB * S, D).astype(jnp.bfloat16)
    qkv = (jnp.dot(h2, wqkv[0], preferred_element_type=jnp.float32) + bqkv[0])
    qkv = qkv.reshape(TB, S, 3 * D)

    # Static key mask for padded sequence rows (no-op when seq_valid == S).
    if seq_valid < S:
        key_ok = jax.lax.broadcasted_iota(jnp.int32, (1, 1, S), 2) < seq_valid
    else:
        key_ok = None

    wo_v = wo[0]                                                    # (D, D) bf16
    acc = None                                                      # (TB*S, D) f32
    for i in range(num_heads):
        q = qkv[:, :, i * Dh:(i + 1) * Dh].astype(jnp.bfloat16)
        k = qkv[:, :, D + i * Dh:D + (i + 1) * Dh].astype(jnp.bfloat16)
        v = qkv[:, :, 2 * D + i * Dh:2 * D + (i + 1) * Dh].astype(jnp.bfloat16)
        # Batched over the sample tile; contraction last-vs-last (no transpose).
        s = jnp.einsum('bqd,bkd->bqk', q, k, preferred_element_type=jnp.float32)
        if key_ok is not None:
            s = jnp.where(key_ok, s, -1e30)
        m = jnp.max(s, axis=-1, keepdims=True)
        p = jnp.exp(s - m)
        p = p * pl.reciprocal(jnp.sum(p, axis=-1, keepdims=True), approx=True)
        o_h = jnp.einsum('bqk,bkd->bqd', p.astype(jnp.bfloat16), v,
                         preferred_element_type=jnp.float32)        # (TB, S, Dh)
        # Fold the head concat into the output projection:
        # concat(o_h) @ Wo == sum_h o_h @ Wo[h*Dh:(h+1)*Dh].
        part = jnp.dot(o_h.reshape(TB * S, Dh).astype(jnp.bfloat16),
                       wo_v[i * Dh:(i + 1) * Dh, :],
                       preferred_element_type=jnp.float32)          # (TB*S, D)
        acc = part if acc is None else acc + part

    attn = acc.reshape(TB, S, D) + bo[0]
    h1 = _layernorm(h + attn, ln1g[0], ln1b[0])

    h1f = h1.reshape(TB * S, D).astype(jnp.bfloat16)
    ff = jnp.maximum(
        jnp.dot(h1f, w1[0], preferred_element_type=jnp.float32) + b1[0], 0.0)
    ff = jnp.dot(ff.astype(jnp.bfloat16), w2[0],
                 preferred_element_type=jnp.float32) + b2[0]
    return _layernorm(h1 + ff.reshape(TB, S, D), ln2g[0], ln2b[0])


# ----------------------------------------------------------------------------
# Branch kernels: grid = (batch_tiles, num_layers); activation lives in h_scr
# ----------------------------------------------------------------------------
def _ts_kernel(x_ref, in_w, in_b, fc_w, fc_b,
               wqkv, bqkv, wo, bo, ln1g, ln1b, w1, b1, w2, b2, ln2g, ln2b,
               o_ref, h_scr, *, num_layers, num_heads, seq_valid):
    l = pl.program_id(1)
    TB, S_pad, Hd = h_scr.shape
    F = x_ref.shape[2]

    @pl.when(l == 0)
    def _embed():
        x2 = x_ref[...].reshape(TB * S_pad, F).astype(jnp.bfloat16)
        h0 = (jnp.dot(x2, in_w[...], preferred_element_type=jnp.float32)
              + in_b[...])
        h_scr[...] = h0.reshape(TB, S_pad, Hd)

    h_scr[...] = _transformer_layer(
        h_scr[...], wqkv, bqkv, wo, bo, ln1g, ln1b, w1, b1, w2, b2, ln2g, ln2b,
        num_heads=num_heads, seq_valid=seq_valid)

    @pl.when(l == num_layers - 1)
    def _readout():
        hv = h_scr[...]
        pooled = jnp.sum(hv[:, :seq_valid, :], axis=1) * (1.0 / seq_valid)  # (TB, H)
        out = (jnp.dot(pooled.astype(jnp.bfloat16), fc_w[...],
                       preferred_element_type=jnp.float32) + fc_b[...])
        o_ref[...] = out.astype(o_ref.dtype)


def _vit_kernel(p_ref, patch_w, patch_b, clspos, fc_w, fc_b,
                wqkv, bqkv, wo, bo, ln1g, ln1b, w1, b1, w2, b2, ln2g, ln2b,
                o_ref, h_scr, *, num_layers, num_heads, seq_valid):
    l = pl.program_id(1)
    TB, S_pad, E = h_scr.shape
    N = p_ref.shape[1]
    CPP = p_ref.shape[2]

    @pl.when(l == 0)
    def _embed():
        x2 = p_ref[...].reshape(TB * N, CPP).astype(jnp.bfloat16)
        emb = (jnp.dot(x2, patch_w[...], preferred_element_type=jnp.float32)
               + patch_b[...]).reshape(TB, N, E)
        # CLS + positional table (precomputed, zero-padded to S_pad rows) added to an
        # in-vreg shifted copy of the patch embeddings -- no masked scratch stores.
        parts = [jnp.zeros((TB, 1, E), jnp.float32), emb]
        tail = S_pad - 1 - N
        if tail > 0:
            parts.append(jnp.zeros((TB, tail, E), jnp.float32))
        h_scr[...] = jnp.concatenate(parts, axis=1) + clspos[...]

    h_scr[...] = _transformer_layer(
        h_scr[...], wqkv, bqkv, wo, bo, ln1g, ln1b, w1, b1, w2, b2, ln2g, ln2b,
        num_heads=num_heads, seq_valid=seq_valid)

    @pl.when(l == num_layers - 1)
    def _readout():
        cls_tok = h_scr[...][:, 0, :]                               # (TB, E)
        out = (jnp.dot(cls_tok.astype(jnp.bfloat16), fc_w[...],
                       preferred_element_type=jnp.float32) + fc_b[...])
        o_ref[...] = out.astype(o_ref.dtype)


# ----------------------------------------------------------------------------
# Wrappers
# ----------------------------------------------------------------------------
def _const_spec(w):
    nd = w.ndim
    return pl.BlockSpec(w.shape, lambda b, l, nd=nd: (0,) * nd)


def _layer_specs(p):
    specs, vals = [], []
    for name in _LAYER_NAMES:
        w = p[name]
        nd = w.ndim
        specs.append(pl.BlockSpec((1,) + w.shape[1:],
                                  lambda b, l, nd=nd: (l,) + (0,) * (nd - 1)))
        vals.append(w)
    return specs, vals


def _pick_batch_tile(B):
    # Whole batch per grid step for small B (fills MXU rows); 8-sample tiles for big B.
    return B if (B <= 8 or B % 8 != 0) else 8


def ts_encoder_forward(x, p, num_heads, out_dim):
    B, S, F = x.shape
    S_pad = _round_up(S, 8)
    if S_pad != S:
        x = jnp.pad(x, ((0, 0), (0, S_pad - S), (0, 0)))
    L = p["wqkv"].shape[0]
    H = p["in_w"].shape[1]
    OUT_PAD = p["fc_w"].shape[1]
    TB = _pick_batch_tile(B)

    const_ws = [p["in_w"], p["in_b"], p["fc_w"], p["fc_b"]]
    layer_specs, layer_ws = _layer_specs(p)

    out = pl.pallas_call(
        functools.partial(_ts_kernel, num_layers=L, num_heads=num_heads,
                          seq_valid=S),
        out_shape=jax.ShapeDtypeStruct((B, OUT_PAD), jnp.float32),
        grid=(B // TB, L),
        in_specs=[pl.BlockSpec((TB, S_pad, F), lambda b, l: (b, 0, 0))]
                 + [_const_spec(w) for w in const_ws] + layer_specs,
        out_specs=pl.BlockSpec((TB, OUT_PAD), lambda b, l: (b, 0)),
        scratch_shapes=[pltpu.VMEM((TB, S_pad, H), jnp.float32)],
        compiler_params=pltpu.CompilerParams(
            dimension_semantics=("parallel", "arbitrary"),
            vmem_limit_bytes=_VMEM_LIMIT_BYTES),
    )(x, *const_ws, *layer_ws)
    return out[:, :out_dim]


def vit_encoder_forward(img, p, patch_size, num_heads, out_dim):
    B, C, Hi, Wi = img.shape
    P = patch_size
    nH, nW = Hi // P, Wi // P
    N = nH * nW
    E = p["patch_w"].shape[1]
    S_pad = p["clspos"].shape[0]
    OUT_PAD = p["fc_w"].shape[1]
    L = p["wqkv"].shape[0]
    TB = _pick_batch_tile(B)

    # Conv2d(kernel=stride=P) == patch flatten in (C, P, P) order + matmul.
    # TODO(synk): at production sizes keep the NCHW image in HBM (memory_space=pl.ANY)
    # and fold this relayout into an in-kernel strided DMA instead of a host transpose.
    patches = (img.reshape(B, C, nH, P, nW, P)
                  .transpose(0, 2, 4, 1, 3, 5)
                  .reshape(B, N, C * P * P))

    const_ws = [p["patch_w"], p["patch_b"], p["clspos"], p["fc_w"], p["fc_b"]]
    layer_specs, layer_ws = _layer_specs(p)

    out = pl.pallas_call(
        functools.partial(_vit_kernel, num_layers=L, num_heads=num_heads,
                          seq_valid=N + 1),
        out_shape=jax.ShapeDtypeStruct((B, OUT_PAD), jnp.float32),
        grid=(B // TB, L),
        in_specs=[pl.BlockSpec((TB, N, C * P * P), lambda b, l: (b, 0, 0))]
                 + [_const_spec(w) for w in const_ws] + layer_specs,
        out_specs=pl.BlockSpec((TB, OUT_PAD), lambda b, l: (b, 0)),
        scratch_shapes=[pltpu.VMEM((TB, S_pad, E), jnp.float32)],
        compiler_params=pltpu.CompilerParams(
            dimension_semantics=("parallel", "arbitrary"),
            vmem_limit_bytes=_VMEM_LIMIT_BYTES),
    )(patches, *const_ws, *layer_ws)
    return out[:, :out_dim]


def multimodal_encoder_forward(time_series, image, params, cfg):
    ts_feat = ts_encoder_forward(time_series, params["ts"], cfg["ts_num_heads"],
                                 cfg["ts_output_size"])
    img_feat = vit_encoder_forward(image, params["img"], cfg["img_patch_size"],
                                   cfg["img_num_heads"], cfg["img_feature_dim"])
    return jnp.concatenate([ts_feat, img_feat], axis=1)


# ----------------------------------------------------------------------------
# Deterministic parameter init.
#  * matmul weights stored in bf16 (f32 accumulation inside the kernels)
#  * per-layer weights stacked along a leading layer axis (per-layer BlockSpecs)
#  * 1/sqrt(Dh) folded into the Q columns of wqkv
#  * fc weights zero-padded to 128 output lanes (lane-dense writeback)
#  * clspos = positional table with CLS folded into row 0, zero-padded to S_pad rows
# ----------------------------------------------------------------------------
def _init_w(key, fan_in, fan_out):
    return jax.random.normal(key, (fan_in, fan_out), jnp.float32) / math.sqrt(fan_in)


def _stacked_layers(key, num_layers, d, d_ff, num_heads):
    head_scale = 1.0 / math.sqrt(d // num_heads)
    keys = jax.random.split(key, num_layers)

    def one(k):
        ks = jax.random.split(k, 6)
        wq = _init_w(ks[0], d, d) * head_scale        # attention scale folded into Q
        wk = _init_w(ks[1], d, d)
        wv = _init_w(ks[2], d, d)
        wo = _init_w(ks[3], d, d)
        w1 = _init_w(ks[4], d, d_ff)
        w2 = _init_w(ks[5], d_ff, d)
        return dict(
            wqkv=jnp.concatenate([wq, wk, wv], axis=1).astype(jnp.bfloat16),
            bqkv=jnp.zeros((1, 3 * d), jnp.float32),
            wo=wo.astype(jnp.bfloat16), bo=jnp.zeros((1, d), jnp.float32),
            w1=w1.astype(jnp.bfloat16), b1=jnp.zeros((1, d_ff), jnp.float32),
            w2=w2.astype(jnp.bfloat16), b2=jnp.zeros((1, d), jnp.float32),
            ln1_g=jnp.ones((1, d), jnp.float32), ln1_b=jnp.zeros((1, d), jnp.float32),
            ln2_g=jnp.ones((1, d), jnp.float32), ln2_b=jnp.zeros((1, d), jnp.float32))

    per_layer = [one(k) for k in keys]
    return {n: jnp.stack([lp[n] for lp in per_layer], axis=0) for n in per_layer[0]}


def _padded_fc(key, fan_in, out_dim):
    out_pad = max(128, _round_up(out_dim, 128))
    w = _init_w(key, fan_in, out_dim)
    w = jnp.pad(w, ((0, 0), (0, out_pad - out_dim))).astype(jnp.bfloat16)
    b = jnp.zeros((1, out_pad), jnp.float32)
    return w, b


def init_params(key, cfg):
    k_ts, k_img = jax.random.split(key)

    # time-series encoder
    H = cfg["ts_num_hidden"]
    ks = jax.random.split(k_ts, 3)
    in_w = _init_w(ks[0], cfg["ts_num_features"], H).astype(jnp.bfloat16)
    in_b = jnp.zeros((1, H), jnp.float32)
    fc_w, fc_b = _padded_fc(ks[1], H, cfg["ts_output_size"])
    ts = dict(in_w=in_w, in_b=in_b, fc_w=fc_w, fc_b=fc_b,
              **_stacked_layers(ks[2], cfg["ts_num_layers"], H, 4 * H,
                                cfg["ts_num_heads"]))

    # ViT encoder
    E = cfg["img_emb_size"]
    P = cfg["img_patch_size"]
    C = cfg["img_channel"]
    N = (cfg["img_image_size"] // P) ** 2
    S_pad = _round_up(N + 1, 8)
    ks = jax.random.split(k_img, 5)
    patch_w = _init_w(ks[0], C * P * P, E).astype(jnp.bfloat16)
    patch_b = jnp.zeros((1, E), jnp.float32)
    ifc_w, ifc_b = _padded_fc(ks[1], E, cfg["img_feature_dim"])
    cls = jax.random.normal(ks[2], (1, E), jnp.float32) * 0.02
    pos = jax.random.normal(ks[3], (N + 1, E), jnp.float32) * 0.02
    clspos = jnp.zeros((S_pad, E), jnp.float32).at[:N + 1].set(pos).at[0:1].add(cls)
    img = dict(patch_w=patch_w, patch_b=patch_b, fc_w=ifc_w, fc_b=ifc_b,
               clspos=clspos,
               **_stacked_layers(ks[4], cfg["img_num_layers"], E, 4 * E,
                                 cfg["img_num_heads"]))

    return dict(ts=ts, img=img)


# ----------------------------------------------------------------------------
if __name__ == "__main__":
    cfg = dict(
        ts_num_features=4, ts_num_hidden=32, ts_num_layers=2,
        ts_num_heads=4, ts_output_size=16,
        img_image_size=32, img_patch_size=16, img_emb_size=32,
        img_num_heads=4, img_num_layers=2, img_feature_dim=16, img_channel=3,
    )
    B, S_TS = 2, 8

    key = jax.random.PRNGKey(0)
    k_params, k_ts, k_img = jax.random.split(key, 3)
    params = init_params(k_params, cfg)

    time_series = jax.random.normal(k_ts, (B, S_TS, cfg["ts_num_features"]),
                                    jnp.float32)
    image = jax.random.normal(
        k_img, (B, cfg["img_channel"], cfg["img_image_size"], cfg["img_image_size"]),
        jnp.float32)

    out = jax.jit(lambda ts, im: multimodal_encoder_forward(ts, im, params, cfg))(
        time_series, image)
    jax.block_until_ready(out)

    expected = (B, cfg["ts_output_size"] + cfg["img_feature_dim"])
    assert out.shape == expected, (out.shape, expected)
    assert bool(jnp.all(jnp.isfinite(out)))
    print("KERNEL_OK")
</pallas_src>

<mosaic_0001>
module attributes {stable_mosaic.version = 11 : i64} {
  func.func @_ts_kernel(%arg0: i32, %arg1: i32, %arg2: memref<2x8x4xf32, #tpu.memory_space<vmem>>, %arg3: memref<4x32xbf16, #tpu.memory_space<vmem>>, %arg4: memref<1x32xf32, #tpu.memory_space<vmem>>, %arg5: memref<32x128xbf16, #tpu.memory_space<vmem>>, %arg6: memref<1x128xf32, #tpu.memory_space<vmem>>, %arg7: memref<1x32x96xbf16, #tpu.memory_space<vmem>>, %arg8: memref<1x1x96xf32, #tpu.memory_space<vmem>>, %arg9: memref<1x32x32xbf16, #tpu.memory_space<vmem>>, %arg10: memref<1x1x32xf32, #tpu.memory_space<vmem>>, %arg11: memref<1x1x32xf32, #tpu.memory_space<vmem>>, %arg12: memref<1x1x32xf32, #tpu.memory_space<vmem>>, %arg13: memref<1x32x128xbf16, #tpu.memory_space<vmem>>, %arg14: memref<1x1x128xf32, #tpu.memory_space<vmem>>, %arg15: memref<1x128x32xbf16, #tpu.memory_space<vmem>>, %arg16: memref<1x1x32xf32, #tpu.memory_space<vmem>>, %arg17: memref<1x1x32xf32, #tpu.memory_space<vmem>>, %arg18: memref<1x1x32xf32, #tpu.memory_space<vmem>>, %arg19: memref<2x128xf32, #tpu.memory_space<vmem>>, %arg20: memref<2x8x32xf32, #tpu.memory_space<vmem>>) attributes {dimension_semantics = [#tpu.dimension_semantics<parallel>, #tpu.dimension_semantics<arbitrary>], iteration_bounds = array<i64: 1, 2>, scalar_prefetch = 0 : i64, scratch_operands = 1 : i64, tpu.core_type = #tpu.core_type<tc>, window_params = [{transform_indices = @transform_0, window_bounds = array<i64: 2, 8, 4>}, {pipeline_mode = #tpu.pipeline_mode<synchronous>, transform_indices = @transform_1, window_bounds = array<i64: 4, 32>}, {pipeline_mode = #tpu.pipeline_mode<synchronous>, transform_indices = @transform_2, window_bounds = array<i64: 1, 32>}, {pipeline_mode = #tpu.pipeline_mode<synchronous>, transform_indices = @transform_3, window_bounds = array<i64: 32, 128>}, {pipeline_mode = #tpu.pipeline_mode<synchronous>, transform_indices = @transform_4, window_bounds = array<i64: 1, 128>}, {transform_indices = @transform_5, window_bounds = array<i64: 1, 32, 96>}, {transform_indices = @transform_6, window_bounds = array<i64: 1, 1, 96>}, {transform_indices = @transform_7, window_bounds = array<i64: 1, 32, 32>}, {transform_indices = @transform_8, window_bounds = array<i64: 1, 1, 32>}, {transform_indices = @transform_9, window_bounds = array<i64: 1, 1, 32>}, {transform_indices = @transform_10, window_bounds = array<i64: 1, 1, 32>}, {transform_indices = @transform_11, window_bounds = array<i64: 1, 32, 128>}, {transform_indices = @transform_12, window_bounds = array<i64: 1, 1, 128>}, {transform_indices = @transform_13, window_bounds = array<i64: 1, 128, 32>}, {transform_indices = @transform_14, window_bounds = array<i64: 1, 1, 32>}, {transform_indices = @transform_15, window_bounds = array<i64: 1, 1, 32>}, {transform_indices = @transform_16, window_bounds = array<i64: 1, 1, 32>}, {transform_indices = @transform_17, window_bounds = array<i64: 2, 128>}]} {
    %c0_i32 = arith.constant 0 : i32
    %0 = arith.cmpi eq, %arg1, %c0_i32 : i32
    %1 = arith.extui %0 : i1 to i32
    %c0_i32_0 = arith.constant 0 : i32
    %2 = arith.cmpi ne, %1, %c0_i32_0 : i32
    scf.if %2 {
      %c0_76 = arith.constant 0 : index
      %c0_77 = arith.constant 0 : index
      %c0_78 = arith.constant 0 : index
      %199 = vector.load %arg2[%c0_76, %c0_77, %c0_78] : memref<2x8x4xf32, #tpu.memory_space<vmem>>, vector<2x8x4xf32>
      %200 = vector.shape_cast %199 : vector<2x8x4xf32> to vector<16x4xf32>
      %201 = arith.truncf %200 : vector<16x4xf32> to vector<16x4xbf16>
      %c0_79 = arith.constant 0 : index
      %c0_80 = arith.constant 0 : index
      %202 = vector.load %arg3[%c0_79, %c0_80] : memref<4x32xbf16, #tpu.memory_space<vmem>>, vector<4x32xbf16>
      %cst_81 = arith.constant dense<0.000000e+00> : vector<16x32xf32>
      %203 = tpu.matmul %201, %202, %cst_81 {dimension_numbers = #tpu.dot_dimension_numbers<[1], [0], [0], [1], [0, 0, 1, 1], [], []>} : vector<16x4xbf16>, vector<4x32xbf16>, vector<16x32xf32> -> vector<16x32xf32>
      %c0_82 = arith.constant 0 : index
      %c0_83 = arith.constant 0 : index
      %204 = vector.load %arg4[%c0_82, %c0_83] : memref<1x32xf32, #tpu.memory_space<vmem>>, vector<1x32xf32>
      %205 = vector.broadcast %204 : vector<1x32xf32> to vector<16x32xf32>
      %206 = arith.addf %203, %205 : vector<16x32xf32>
      %207 = vector.shape_cast %206 : vector<16x32xf32> to vector<2x8x32xf32>
      %c0_84 = arith.constant 0 : index
      %c0_85 = arith.constant 0 : index
      %c0_86 = arith.constant 0 : index
      %208 = vector.load %arg20[%c0_84, %c0_85, %c0_86] : memref<2x8x32xf32, #tpu.memory_space<vmem>>, vector<2x8x32xf32>
      tpu.vector_store %arg20[%c0_84, %c0_85, %c0_86], %207 {strides = array<i32>} : memref<2x8x32xf32, #tpu.memory_space<vmem>>, vector<2x8x32xf32>,
    } else {
    }
    %c0 = arith.constant 0 : index
    %c0_1 = arith.constant 0 : index
    %c0_2 = arith.constant 0 : index
    %3 = vector.load %arg20[%c0, %c0_1, %c0_2] : memref<2x8x32xf32, #tpu.memory_space<vmem>>, vector<2x8x32xf32>
    %4 = vector.shape_cast %3 : vector<2x8x32xf32> to vector<16x32xf32>
    %5 = arith.truncf %4 : vector<16x32xf32> to vector<16x32xbf16>
    %c0_3 = arith.constant 0 : index
    %c0_4 = arith.constant 0 : index
    %c0_5 = arith.constant 0 : index
    %6 = vector.load %arg7[%c0_3, %c0_4, %c0_5] : memref<1x32x96xbf16, #tpu.memory_space<vmem>>, vector<1x32x96xbf16>
    %7 = vector.shape_cast %6 : vector<1x32x96xbf16> to vector<32x96xbf16>
    %cst = arith.constant dense<0.000000e+00> : vector<16x96xf32>
    %8 = tpu.matmul %5, %7, %cst {dimension_numbers = #tpu.dot_dimension_numbers<[1], [0], [0], [1], [0, 0, 1, 1], [], []>} : vector<16x32xbf16>, vector<32x96xbf16>, vector<16x96xf32> -> vector<16x96xf32>
    %c0_6 = arith.constant 0 : index
    %c0_7 = arith.constant 0 : index
    %c0_8 = arith.constant 0 : index
    %9 = vector.load %arg8[%c0_6, %c0_7, %c0_8] : memref<1x1x96xf32, #tpu.memory_space<vmem>>, vector<1x1x96xf32>
    %10 = vector.shape_cast %9 : vector<1x1x96xf32> to vector<1x96xf32>
    %11 = vector.broadcast %10 : vector<1x96xf32> to vector<16x96xf32>
    %12 = arith.addf %8, %11 : vector<16x96xf32>
    %13 = vector.shape_cast %12 : vector<16x96xf32> to vector<2x8x96xf32>
    %c0_9 = arith.constant 0 : index
    %c0_10 = arith.constant 0 : index
    %c0_11 = arith.constant 0 : index
    %14 = vector.load %arg9[%c0_9, %c0_10, %c0_11] : memref<1x32x32xbf16, #tpu.memory_space<vmem>>, vector<1x32x32xbf16>
    %15 = vector.shape_cast %14 : vector<1x32x32xbf16> to vector<32x32xbf16>
    %16 = vector.extract_strided_slice %13 {offsets = [0, 0, 0], sizes = [2, 8, 8], strides = [1, 1, 1]} : vector<2x8x96xf32> to vector<2x8x8xf32>
    %17 = arith.truncf %16 : vector<2x8x8xf32> to vector<2x8x8xbf16>
    %18 = vector.extract_strided_slice %13 {offsets = [0, 0, 32], sizes = [2, 8, 8], strides = [1, 1, 1]} : vector<2x8x96xf32> to vector<2x8x8xf32>
    %19 = arith.truncf %18 : vector<2x8x8xf32> to vector<2x8x8xbf16>
    %20 = vector.extract_strided_slice %13 {offsets = [0, 0, 64], sizes = [2, 8, 8], strides = [1, 1, 1]} : vector<2x8x96xf32> to vector<2x8x8xf32>
    %21 = arith.truncf %20 : vector<2x8x8xf32> to vector<2x8x8xbf16>
    "tpu.trace_start"() <{level = 10 : i32, message = "bqd,bkd->bqk"}> : () -> ()
    %cst_12 = arith.constant dense<0.000000e+00> : vector<2x8x8xf32>
    %22 = tpu.matmul %17, %19, %cst_12 {dimension_numbers = #tpu.dot_dimension_numbers<[2], [2], [1], [1], [0, 0, 0, 1, 1, 1], [0], [0]>} : vector<2x8x8xbf16>, vector<2x8x8xbf16>, vector<2x8x8xf32> -> vector<2x8x8xf32>
    "tpu.trace_stop"() : () -> ()
    %cst_13 = arith.constant dense<0xFF800000> : vector<2x8xf32>
    %23 = vector.multi_reduction <maximumf>, %22, %cst_13 [2] : vector<2x8x8xf32> to vector<2x8xf32>
    %24 = vector.shape_cast %23 : vector<2x8xf32> to vector<2x8x1xf32>
    %25 = vector.broadcast %24 : vector<2x8x1xf32> to vector<2x8x8xf32>
    %26 = arith.subf %22, %25 : vector<2x8x8xf32>
    %27 = math.exp %26 : vector<2x8x8xf32>
    %cst_14 = arith.constant dense<0.000000e+00> : vector<2x8xf32>
    %28 = vector.multi_reduction <add>, %27, %cst_14 [2] : vector<2x8x8xf32> to vector<2x8xf32>
    %29 = vector.shape_cast %28 : vector<2x8xf32> to vector<2x8x1xf32>
    %30 = tpu.reciprocal %29 {approx = true} : vector<2x8x1xf32> -> vector<2x8x1xf32>
    %31 = vector.broadcast %30 : vector<2x8x1xf32> to vector<2x8x8xf32>
    %32 = arith.mulf %27, %31 : vector<2x8x8xf32>
    %33 = arith.truncf %32 : vector<2x8x8xf32> to vector<2x8x8xbf16>
    "tpu.trace_start"() <{level = 10 : i32, message = "bqk,bkd->bqd"}> : () -> ()
    %cst_15 = arith.constant dense<0.000000e+00> : vector<2x8x8xf32>
    %34 = tpu.matmul %33, %21, %cst_15 {dimension_numbers = #tpu.dot_dimension_numbers<[2], [1], [1], [2], [0, 0, 0, 1, 1, 2], [0], [0]>} : vector<2x8x8xbf16>, vector<2x8x8xbf16>, vector<2x8x8xf32> -> vector<2x8x8xf32>
    "tpu.trace_stop"() : () -> ()
    %35 = vector.shape_cast %34 : vector<2x8x8xf32> to vector<16x8xf32>
    %36 = arith.truncf %35 : vector<16x8xf32> to vector<16x8xbf16>
    %37 = vector.extract_strided_slice %15 {offsets = [0, 0], sizes = [8, 32], strides = [1, 1]} : vector<32x32xbf16> to vector<8x32xbf16>
    %cst_16 = arith.constant dense<0.000000e+00> : vector<16x32xf32>
    %38 = tpu.matmul %36, %37, %cst_16 {dimension_numbers = #tpu.dot_dimension_numbers<[1], [0], [0], [1], [0, 0, 1, 1], [], []>} : vector<16x8xbf16>, vector<8x32xbf16>, vector<16x32xf32> -> vector<16x32xf32>
    %39 = vector.extract_strided_slice %13 {offsets = [0, 0, 8], sizes = [2, 8, 8], strides = [1, 1, 1]} : vector<2x8x96xf32> to vector<2x8x8xf32>
    %40 = arith.truncf %39 : vector<2x8x8xf32> to vector<2x8x8xbf16>
    %41 = vector.extract_strided_slice %13 {offsets = [0, 0, 40], sizes = [2, 8, 8], strides = [1, 1, 1]} : vector<2x8x96xf32> to vector<2x8x8xf32>
    %42 = arith.truncf %41 : vector<2x8x8xf32> to vector<2x8x8xbf16>
    %43 = vector.extract_strided_slice %13 {offsets = [0, 0, 72], sizes = [2, 8, 8], strides = [1, 1, 1]} : vector<2x8x96xf32> to vector<2x8x8xf32>
    %44 = arith.truncf %43 : vector<2x8x8xf32> to vector<2x8x8xbf16>
    "tpu.trace_start"() <{level = 10 : i32, message = "bqd,bkd->bqk"}> : () -> ()
    %cst_17 = arith.constant dense<0.000000e+00> : vector<2x8x8xf32>
    %45 = tpu.matmul %40, %42, %cst_17 {dimension_numbers = #tpu.dot_dimension_numbers<[2], [2], [1], [1], [0, 0, 0, 1, 1, 1], [0], [0]>} : vector<2x8x8xbf16>, vector<2x8x8xbf16>, vector<2x8x8xf32> -> vector<2x8x8xf32>
    "tpu.trace_stop"() : () -> ()
    %cst_18 = arith.constant dense<0xFF800000> : vector<2x8xf32>
    %46 = vector.multi_reduction <maximumf>, %45, %cst_18 [2] : vector<2x8x8xf32> to vector<2x8xf32>
    %47 = vector.shape_cast %46 : vector<2x8xf32> to vector<2x8x1xf32>
    %48 = vector.broadcast %47 : vector<2x8x1xf32> to vector<2x8x8xf32>
    %49 = arith.subf %45, %48 : vector<2x8x8xf32>
    %50 = math.exp %49 : vector<2x8x8xf32>
    %cst_19 = arith.constant dense<0.000000e+00> : vector<2x8xf32>
    %51 = vector.multi_reduction <add>, %50, %cst_19 [2] : vector<2x8x8xf32> to vector<2x8xf32>
    %52 = vector.shape_cast %51 : vector<2x8xf32> to vector<2x8x1xf32>
    %53 = tpu.reciprocal %52 {approx = true} : vector<2x8x1xf32> -> vector<2x8x1xf32>
    %54 = vector.broadcast %53 : vector<2x8x1xf32> to vector<2x8x8xf32>
    %55 = arith.mulf %50, %54 : vector<2x8x8xf32>
    %56 = arith.truncf %55 : vector<2x8x8xf32> to vector<2x8x8xbf16>
    "tpu.trace_start"() <{level = 10 : i32, message = "bqk,bkd->bqd"}> : () -> ()
    %cst_20 = arith.constant dense<0.000000e+00> : vector<2x8x8xf32>
    %57 = tpu.matmul %56, %44, %cst_20 {dimension_numbers = #tpu.dot_dimension_numbers<[2], [1], [1], [2], [0, 0, 0, 1, 1, 2], [0], [0]>} : vector<2x8x8xbf16>, vector<2x8x8xbf16>, vector<2x8x8xf32> -> vector<2x8x8xf32>
    "tpu.trace_stop"() : () -> ()
    %58 = vector.shape_cast %57 : vector<2x8x8xf32> to vector<16x8xf32>
    %59 = arith.truncf %58 : vector<16x8xf32> to vector<16x8xbf16>
    %60 = vector.extract_strided_slice %15 {offsets = [8, 0], sizes = [8, 32], strides = [1, 1]} : vector<32x32xbf16> to vector<8x32xbf16>
    %cst_21 = arith.constant dense<0.000000e+00> : vector<16x32xf32>
    %61 = tpu.matmul %59, %60, %cst_21 {dimension_numbers = #tpu.dot_dimension_numbers<[1], [0], [0], [1], [0, 0, 1, 1], [], []>} : vector<16x8xbf16>, vector<8x32xbf16>, vector<16x32xf32> -> vector<16x32xf32>
    %62 = arith.addf %38, %61 : vector<16x32xf32>
    %63 = vector.extract_strided_slice %13 {offsets = [0, 0, 16], sizes = [2, 8, 8], strides = [1, 1, 1]} : vector<2x8x96xf32> to vector<2x8x8xf32>
    %64 = arith.truncf %63 : vector<2x8x8xf32> to vector<2x8x8xbf16>
    %65 = vector.extract_strided_slice %13 {offsets = [0, 0, 48], sizes = [2, 8, 8], strides = [1, 1, 1]} : vector<2x8x96xf32> to vector<2x8x8xf32>
    %66 = arith.truncf %65 : vector<2x8x8xf32> to vector<2x8x8xbf16>
    %67 = vector.extract_strided_slice %13 {offsets = [0, 0, 80], sizes = [2, 8, 8], strides = [1, 1, 1]} : vector<2x8x96xf32> to vector<2x8x8xf32>
    %68 = arith.truncf %67 : vector<2x8x8xf32> to vector<2x8x8xbf16>
    "tpu.trace_start"() <{level = 10 : i32, message = "bqd,bkd->bqk"}> : () -> ()
    %cst_22 = arith.constant dense<0.000000e+00> : vector<2x8x8xf32>
    %69 = tpu.matmul %64, %66, %cst_22 {dimension_numbers = #tpu.dot_dimension_numbers<[2], [2], [1], [1], [0, 0, 0, 1, 1, 1], [0], [0]>} : vector<2x8x8xbf16>, vector<2x8x8xbf16>, vector<2x8x8xf32> -> vector<2x8x8xf32>
    "tpu.trace_stop"() : () -> ()
    %cst_23 = arith.constant dense<0xFF800000> : vector<2x8xf32>
    %70 = vector.multi_reduction <maximumf>, %69, %cst_23 [2] : vector<2x8x8xf32> to vector<2x8xf32>
    %71 = vector.shape_cast %70 : vector<2x8xf32> to vector<2x8x1xf32>
    %72 = vector.broadcast %71 : vector<2x8x1xf32> to vector<2x8x8xf32>
    %73 = arith.subf %69, %72 : vector<2x8x8xf32>
    %74 = math.exp %73 : vector<2x8x8xf32>
    %cst_24 = arith.constant dense<0.000000e+00> : vector<2x8xf32>
    %75 = vector.multi_reduction <add>, %74, %cst_24 [2] : vector<2x8x8xf32> to vector<2x8xf32>
    %76 = vector.shape_cast %75 : vector<2x8xf32> to vector<2x8x1xf32>
    %77 = tpu.reciprocal %76 {approx = true} : vector<2x8x1xf32> -> vector<2x8x1xf32>
    %78 = vector.broadcast %77 : vector<2x8x1xf32> to vector<2x8x8xf32>
    %79 = arith.mulf %74, %78 : vector<2x8x8xf32>
    %80 = arith.truncf %79 : vector<2x8x8xf32> to vector<2x8x8xbf16>
    "tpu.trace_start"() <{level = 10 : i32, message = "bqk,bkd->bqd"}> : () -> ()
    %cst_25 = arith.constant dense<0.000000e+00> : vector<2x8x8xf32>
    %81 = tpu.matmul %80, %68, %cst_25 {dimension_numbers = #tpu.dot_dimension_numbers<[2], [1], [1], [2], [0, 0, 0, 1, 1, 2], [0], [0]>} : vector<2x8x8xbf16>, vector<2x8x8xbf16>, vector<2x8x8xf32> -> vector<2x8x8xf32>
    "tpu.trace_stop"() : () -> ()
    %82 = vector.shape_cast %81 : vector<2x8x8xf32> to vector<16x8xf32>
    %83 = arith.truncf %82 : vector<16x8xf32> to vector<16x8xbf16>
    %84 = vector.extract_strided_slice %15 {offsets = [16, 0], sizes = [8, 32], strides = [1, 1]} : vector<32x32xbf16> to vector<8x32xbf16>
    %cst_26 = arith.constant dense<0.000000e+00> : vector<16x32xf32>
    %85 = tpu.matmul %83, %84, %cst_26 {dimension_numbers = #tpu.dot_dimension_numbers<[1], [0], [0], [1], [0, 0, 1, 1], [], []>} : vector<16x8xbf16>, vector<8x32xbf16>, vector<16x32xf32> -> vector<16x32xf32>
    %86 = arith.addf %62, %85 : vector<16x32xf32>
    %87 = vector.extract_strided_slice %13 {offsets = [0, 0, 24], sizes = [2, 8, 8], strides = [1, 1, 1]} : vector<2x8x96xf32> to vector<2x8x8xf32>
    %88 = arith.truncf %87 : vector<2x8x8xf32> to vector<2x8x8xbf16>
    %89 = vector.extract_strided_slice %13 {offsets = [0, 0, 56], sizes = [2, 8, 8], strides = [1, 1, 1]} : vector<2x8x96xf32> to vector<2x8x8xf32>
    %90 = arith.truncf %89 : vector<2x8x8xf32> to vector<2x8x8xbf16>
    %91 = vector.extract_strided_slice %13 {offsets = [0, 0, 88], sizes = [2, 8, 8], strides = [1, 1, 1]} : vector<2x8x96xf32> to vector<2x8x8xf32>
    %92 = arith.truncf %91 : vector<2x8x8xf32> to vector<2x8x8xbf16>
    "tpu.trace_start"() <{level = 10 : i32, message = "bqd,bkd->bqk"}> : () -> ()
    %cst_27 = arith.constant dense<0.000000e+00> : vector<2x8x8xf32>
    %93 = tpu.matmul %88, %90, %cst_27 {dimension_numbers = #tpu.dot_dimension_numbers<[2], [2], [1], [1], [0, 0, 0, 1, 1, 1], [0], [0]>} : vector<2x8x8xbf16>, vector<2x8x8xbf16>, vector<2x8x8xf32> -> vector<2x8x8xf32>
    "tpu.trace_stop"() : () -> ()
    %cst_28 = arith.constant dense<0xFF800000> : vector<2x8xf32>
    %94 = vector.multi_reduction <maximumf>, %93, %cst_28 [2] : vector<2x8x8xf32> to vector<2x8xf32>
    %95 = vector.shape_cast %94 : vector<2x8xf32> to vector<2x8x1xf32>
    %96 = vector.broadcast %95 : vector<2x8x1xf32> to vector<2x8x8xf32>
    %97 = arith.subf %93, %96 : vector<2x8x8xf32>
    %98 = math.exp %97 : vector<2x8x8xf32>
    %cst_29 = arith.constant dense<0.000000e+00> : vector<2x8xf32>
    %99 = vector.multi_reduction <add>, %98, %cst_29 [2] : vector<2x8x8xf32> to vector<2x8xf32>
    %100 = vector.shape_cast %99 : vector<2x8xf32> to vector<2x8x1xf32>
    %101 = tpu.reciprocal %100 {approx = true} : vector<2x8x1xf32> -> vector<2x8x1xf32>
    %102 = vector.broadcast %101 : vector<2x8x1xf32> to vector<2x8x8xf32>
    %103 = arith.mulf %98, %102 : vector<2x8x8xf32>
    %104 = arith.truncf %103 : vector<2x8x8xf32> to vector<2x8x8xbf16>
    "tpu.trace_start"() <{level = 10 : i32, message = "bqk,bkd->bqd"}> : () -> ()
    %cst_30 = arith.constant dense<0.000000e+00> : vector<2x8x8xf32>
    %105 = tpu.matmul %104, %92, %cst_30 {dimension_numbers = #tpu.dot_dimension_numbers<[2], [1], [1], [2], [0, 0, 0, 1, 1, 2], [0], [0]>} : vector<2x8x8xbf16>, vector<2x8x8xbf16>, vector<2x8x8xf32> -> vector<2x8x8xf32>
    "tpu.trace_stop"() : () -> ()
    %106 = vector.shape_cast %105 : vector<2x8x8xf32> to vector<16x8xf32>
    %107 = arith.truncf %106 : vector<16x8xf32> to vector<16x8xbf16>
    %108 = vector.extract_strided_slice %15 {offsets = [24, 0], sizes = [8, 32], strides = [1, 1]} : vector<32x32xbf16> to vector<8x32xbf16>
    %cst_31 = arith.constant dense<0.000000e+00> : vector<16x32xf32>
    %109 = tpu.matmul %107, %108, %cst_31 {dimension_numbers = #tpu.dot_dimension_numbers<[1], [0], [0], [1], [0, 0, 1, 1], [], []>} : vector<16x8xbf16>, vector<8x32xbf16>, vector<16x32xf32> -> vector<16x32xf32>
    %110 = arith.addf %86, %109 : vector<16x32xf32>
    %111 = vector.shape_cast %110 : vector<16x32xf32> to vector<2x8x32xf32>
    %c0_32 = arith.constant 0 : index
    %c0_33 = arith.constant 0 : index
    %c0_34 = arith.constant 0 : index
    %112 = vector.load %arg10[%c0_32, %c0_33, %c0_34] : memref<1x1x32xf32, #tpu.memory_space<vmem>>, vector<1x1x32xf32>
    %113 = vector.shape_cast %112 : vector<1x1x32xf32> to vector<1x32xf32>
    %114 = vector.shape_cast %113 : vector<1x32xf32> to vector<1x1x32xf32>
    %115 = vector.broadcast %114 : vector<1x1x32xf32> to vector<2x8x32xf32>
    %116 = arith.addf %111, %115 : vector<2x8x32xf32>
    %117 = arith.addf %3, %116 : vector<2x8x32xf32>
    %c0_35 = arith.constant 0 : index
    %c0_36 = arith.constant 0 : index
    %c0_37 = arith.constant 0 : index
    %118 = vector.load %arg11[%c0_35, %c0_36, %c0_37] : memref<1x1x32xf32, #tpu.memory_space<vmem>>, vector<1x1x32xf32>
    %119 = vector.shape_cast %118 : vector<1x1x32xf32> to vector<1x32xf32>
    %c0_38 = arith.constant 0 : index
    %c0_39 = arith.constant 0 : index
    %c0_40 = arith.constant 0 : index
    %120 = vector.load %arg12[%c0_38, %c0_39, %c0_40] : memref<1x1x32xf32, #tpu.memory_space<vmem>>, vector<1x1x32xf32>
    %121 = vector.shape_cast %120 : vector<1x1x32xf32> to vector<1x32xf32>
    %cst_41 = arith.constant dense<0.000000e+00> : vector<2x8xf32>
    %122 = vector.multi_reduction <add>, %117, %cst_41 [2] : vector<2x8x32xf32> to vector<2x8xf32>
    %123 = vector.shape_cast %122 : vector<2x8xf32> to vector<2x8x1xf32>
    %cst_42 = arith.constant 3.200000e+01 : f32
    %124 = vector.broadcast %cst_42 : f32 to vector<2x8x1xf32>
    %125 = arith.divf %123, %124 : vector<2x8x1xf32>
    %126 = vector.broadcast %125 : vector<2x8x1xf32> to vector<2x8x32xf32>
    %127 = arith.subf %117, %126 : vector<2x8x32xf32>
    %128 = arith.mulf %127, %127 : vector<2x8x32xf32>
    %cst_43 = arith.constant dense<0.000000e+00> : vector<2x8xf32>
    %129 = vector.multi_reduction <add>, %128, %cst_43 [2] : vector<2x8x32xf32> to vector<2x8xf32>
    %130 = vector.shape_cast %129 : vector<2x8xf32> to vector<2x8x1xf32>
    %cst_44 = arith.constant 3.200000e+01 : f32
    %131 = vector.broadcast %cst_44 : f32 to vector<2x8x1xf32>
    %132 = arith.divf %130, %131 : vector<2x8x1xf32>
    %133 = vector.broadcast %125 : vector<2x8x1xf32> to vector<2x8x32xf32>
    %134 = arith.subf %117, %133 : vector<2x8x32xf32>
    %cst_45 = arith.constant 9.99999974E-6 : f32
    %135 = vector.broadcast %cst_45 : f32 to vector<2x8x1xf32>
    %136 = arith.addf %132, %135 : vector<2x8x1xf32>
    %137 = math.rsqrt %136 : vector<2x8x1xf32>
    %138 = vector.broadcast %137 : vector<2x8x1xf32> to vector<2x8x32xf32>
    %139 = arith.mulf %134, %138 : vector<2x8x32xf32>
    %140 = vector.shape_cast %119 : vector<1x32xf32> to vector<1x1x32xf32>
    %141 = vector.broadcast %140 : vector<1x1x32xf32> to vector<2x8x32xf32>
    %142 = arith.mulf %139, %141 : vector<2x8x32xf32>
    %143 = vector.shape_cast %121 : vector<1x32xf32> to vector<1x1x32xf32>
    %144 = vector.broadcast %143 : vector<1x1x32xf32> to vector<2x8x32xf32>
    %145 = arith.addf %142, %144 : vector<2x8x32xf32>
    %146 = vector.shape_cast %145 : vector<2x8x32xf32> to vector<16x32xf32>
    %147 = arith.truncf %146 : vector<16x32xf32> to vector<16x32xbf16>
    %c0_46 = arith.constant 0 : index
    %c0_47 = arith.constant 0 : index
    %c0_48 = arith.constant 0 : index
    %148 = vector.load %arg13[%c0_46, %c0_47, %c0_48] : memref<1x32x128xbf16, #tpu.memory_space<vmem>>, vector<1x32x128xbf16>
    %149 = vector.shape_cast %148 : vector<1x32x128xbf16> to vector<32x128xbf16>
    %cst_49 = arith.constant dense<0.000000e+00> : vector<16x128xf32>
    %150 = tpu.matmul %147, %149, %cst_49 {dimension_numbers = #tpu.dot_dimension_numbers<[1], [0], [0], [1], [0, 0, 1, 1], [], []>} : vector<16x32xbf16>, vector<32x128xbf16>, vector<16x128xf32> -> vector<16x128xf32>
    %c0_50 = arith.constant 0 : index
    %c0_51 = arith.constant 0 : index
    %c0_52 = arith.constant 0 : index
    %151 = vector.load %arg14[%c0_50, %c0_51, %c0_52] : memref<1x1x128xf32, #tpu.memory_space<vmem>>, vector<1x1x128xf32>
    %152 = vector.shape_cast %151 : vector<1x1x128xf32> to vector<1x128xf32>
    %153 = vector.broadcast %152 : vector<1x128xf32> to vector<16x128xf32>
    %154 = arith.addf %150, %153 : vector<16x128xf32>
    %cst_53 = arith.constant 0.000000e+00 : f32
    %155 = vector.broadcast %cst_53 : f32 to vector<16x128xf32>
    %156 = arith.maximumf %154, %155 : vector<16x128xf32>
    %157 = arith.truncf %156 : vector<16x128xf32> to vector<16x128xbf16>
    %c0_54 = arith.constant 0 : index
    %c0_55 = arith.constant 0 : index
    %c0_56 = arith.constant 0 : index
    %158 = vector.load %arg15[%c0_54, %c0_55, %c0_56] : memref<1x128x32xbf16, #tpu.memory_space<vmem>>, vector<1x128x32xbf16>
    %159 = vector.shape_cast %158 : vector<1x128x32xbf16> to vector<128x32xbf16>
    %cst_57 = arith.constant dense<0.000000e+00> : vector<16x32xf32>
    %160 = tpu.matmul %157, %159, %cst_57 {dimension_numbers = #tpu.dot_dimension_numbers<[1], [0], [0], [1], [0, 0, 1, 1], [], []>} : vector<16x128xbf16>, vector<128x32xbf16>, vector<16x32xf32> -> vector<16x32xf32>
    %c0_58 = arith.constant 0 : index
    %c0_59 = arith.constant 0 : index
    %c0_60 = arith.constant 0 : index
    %161 = vector.load %arg16[%c0_58, %c0_59, %c0_60] : memref<1x1x32xf32, #tpu.memory_space<vmem>>, vector<1x1x32xf32>
    %162 = vector.shape_cast %161 : vector<1x1x32xf32> to vector<1x32xf32>
    %163 = vector.broadcast %162 : vector<1x32xf32> to vector<16x32xf32>
    %164 = arith.addf %160, %163 : vector<16x32xf32>
    %165 = vector.shape_cast %164 : vector<16x32xf32> to vector<2x8x32xf32>
    %166 = arith.addf %145, %165 : vector<2x8x32xf32>
    %c0_61 = arith.constant 0 : index
    %c0_62 = arith.constant 0 : index
    %c0_63 = arith.constant 0 : index
    %167 = vector.load %arg17[%c0_61, %c0_62, %c0_63] : memref<1x1x32xf32, #tpu.memory_space<vmem>>, vector<1x1x32xf32>
    %168 = vector.shape_cast %167 : vector<1x1x32xf32> to vector<1x32xf32>
    %c0_64 = arith.constant 0 : index
    %c0_65 = arith.constant 0 : index
    %c0_66 = arith.constant 0 : index
    %169 = vector.load %arg18[%c0_64, %c0_65, %c0_66] : memref<1x1x32xf32, #tpu.memory_space<vmem>>, vector<1x1x32xf32>
    %170 = vector.shape_cast %169 : vector<1x1x32xf32> to vector<1x32xf32>
    %cst_67 = arith.constant dense<0.000000e+00> : vector<2x8xf32>
    %171 = vector.multi_reduction <add>, %166, %cst_67 [2] : vector<2x8x32xf32> to vector<2x8xf32>
    %172 = vector.shape_cast %171 : vector<2x8xf32> to vector<2x8x1xf32>
    %cst_68 = arith.constant 3.200000e+01 : f32
    %173 = vector.broadcast %cst_68 : f32 to vector<2x8x1xf32>
    %174 = arith.divf %172, %173 : vector<2x8x1xf32>
    %175 = vector.broadcast %174 : vector<2x8x1xf32> to vector<2x8x32xf32>
    %176 = arith.subf %166, %175 : vector<2x8x32xf32>
    %177 = arith.mulf %176, %176 : vector<2x8x32xf32>
    %cst_69 = arith.constant dense<0.000000e+00> : vector<2x8xf32>
    %178 = vector.multi_reduction <add>, %177, %cst_69 [2] : vector<2x8x32xf32> to vector<2x8xf32>
    %179 = vector.shape_cast %178 : vector<2x8xf32> to vector<2x8x1xf32>
    %cst_70 = arith.constant 3.200000e+01 : f32
    %180 = vector.broadcast %cst_70 : f32 to vector<2x8x1xf32>
    %181 = arith.divf %179, %180 : vector<2x8x1xf32>
    %182 = vector.broadcast %174 : vector<2x8x1xf32> to vector<2x8x32xf32>
    %183 = arith.subf %166, %182 : vector<2x8x32xf32>
    %cst_71 = arith.constant 9.99999974E-6 : f32
    %184 = vector.broadcast %cst_71 : f32 to vector<2x8x1xf32>
    %185 = arith.addf %181, %184 : vector<2x8x1xf32>
    %186 = math.rsqrt %185 : vector<2x8x1xf32>
    %187 = vector.broadcast %186 : vector<2x8x1xf32> to vector<2x8x32xf32>
    %188 = arith.mulf %183, %187 : vector<2x8x32xf32>
    %189 = vector.shape_cast %168 : vector<1x32xf32> to vector<1x1x32xf32>
    %190 = vector.broadcast %189 : vector<1x1x32xf32> to vector<2x8x32xf32>
    %191 = arith.mulf %188, %190 : vector<2x8x32xf32>
    %192 = vector.shape_cast %170 : vector<1x32xf32> to vector<1x1x32xf32>
    %193 = vector.broadcast %192 : vector<1x1x32xf32> to vector<2x8x32xf32>
    %194 = arith.addf %191, %193 : vector<2x8x32xf32>
    %c0_72 = arith.constant 0 : index
    %c0_73 = arith.constant 0 : index
    %c0_74 = arith.constant 0 : index
    %195 = vector.load %arg20[%c0_72, %c0_73, %c0_74] : memref<2x8x32xf32, #tpu.memory_space<vmem>>, vector<2x8x32xf32>
    tpu.vector_store %arg20[%c0_72, %c0_73, %c0_74], %194 {strides = array<i32>} : memref<2x8x32xf32, #tpu.memory_space<vmem>>, vector<2x8x32xf32>,
    %c1_i32 = arith.constant 1 : i32
    %196 = arith.cmpi eq, %arg1, %c1_i32 : i32
    %197 = arith.extui %196 : i1 to i32
    %c0_i32_75 = arith.constant 0 : i32
    %198 = arith.cmpi ne, %197, %c0_i32_75 : i32
    scf.if %198 {
      %c0_76 = arith.constant 0 : index
      %c0_77 = arith.constant 0 : index
      %c0_78 = arith.constant 0 : index
      %199 = vector.load %arg20[%c0_76, %c0_77, %c0_78] : memref<2x8x32xf32, #tpu.memory_space<vmem>>, vector<2x8x32xf32>
      %cst_79 = arith.constant dense<0.000000e+00> : vector<2x32xf32>
      %200 = vector.multi_reduction <add>, %199, %cst_79 [1] : vector<2x8x32xf32> to vector<2x32xf32>
      %cst_80 = arith.constant 1.250000e-01 : f32
      %201 = vector.broadcast %cst_80 : f32 to vector<2x32xf32>
      %202 = arith.mulf %200, %201 : vector<2x32xf32>
      %203 = arith.truncf %202 : vector<2x32xf32> to vector<2x32xbf16>
      %c0_81 = arith.constant 0 : index
      %c0_82 = arith.constant 0 : index
      %204 = vector.load %arg5[%c0_81, %c0_82] : memref<32x128xbf16, #tpu.memory_space<vmem>>, vector<32x128xbf16>
      %cst_83 = arith.constant dense<0.000000e+00> : vector<2x128xf32>
      %205 = tpu.matmul %203, %204, %cst_83 {dimension_numbers = #tpu.dot_dimension_numbers<[1], [0], [0], [1], [0, 0, 1, 1], [], []>} : vector<2x32xbf16>, vector<32x128xbf16>, vector<2x128xf32> -> vector<2x128xf32>
      %c0_84 = arith.constant 0 : index
      %c0_85 = arith.constant 0 : index
      %206 = vector.load %arg6[%c0_84, %c0_85] : memref<1x128xf32, #tpu.memory_space<vmem>>, vector<1x128xf32>
      %207 = vector.broadcast %206 : vector<1x128xf32> to vector<2x128xf32>
      %208 = arith.addf %205, %207 : vector<2x128xf32>
      %c0_86 = arith.constant 0 : index
      %c0_87 = arith.constant 0 : index
      %209 = vector.load %arg19[%c0_86, %c0_87] : memref<2x128xf32, #tpu.memory_space<vmem>>, vector<2x128xf32>
      tpu.vector_store %arg19[%c0_86, %c0_87], %208 {strides = array<i32>} : memref<2x128xf32, #tpu.memory_space<vmem>>, vector<2x128xf32>,
    } else {
    }
    return
  }
  func.func @transform_0(%arg0: i32, %arg1: i32) -> (i32, i32, i32) {
    %c0_i32 = arith.constant 0 : i32
    %c0_i32_0 = arith.constant 0 : i32
    %c0_i32_1 = arith.constant 0 : i32
    return %arg0, %c0_i32, %c0_i32_0 : i32, i32, i32
  }
  func.func @transform_1(%arg0: i32, %arg1: i32) -> (i32, i32) {
    %c0_i32 = arith.constant 0 : i32
    %c0_i32_0 = arith.constant 0 : i32
    %c0_i32_1 = arith.constant 0 : i32
    return %c0_i32, %c0_i32_0 : i32, i32
  }
  func.func @transform_2(%arg0: i32, %arg1: i32) -> (i32, i32) {
    %c0_i32 = arith.constant 0 : i32
    %c0_i32_0 = arith.constant 0 : i32
    %c0_i32_1 = arith.constant 0 : i32
    return %c0_i32, %c0_i32_0 : i32, i32
  }
  func.func @transform_3(%arg0: i32, %arg1: i32) -> (i32, i32) {
    %c0_i32 = arith.constant 0 : i32
    %c0_i32_0 = arith.constant 0 : i32
    %c0_i32_1 = arith.constant 0 : i32
    return %c0_i32, %c0_i32_0 : i32, i32
  }
  func.func @transform_4(%arg0: i32, %arg1: i32) -> (i32, i32) {
    %c0_i32 = arith.constant 0 : i32
    %c0_i32_0 = arith.constant 0 : i32
    %c0_i32_1 = arith.constant 0 : i32
    return %c0_i32, %c0_i32_0 : i32, i32
  }
  func.func @transform_5(%arg0: i32, %arg1: i32) -> (i32, i32, i32) {
    %c0_i32 = arith.constant 0 : i32
    %c0_i32_0 = arith.constant 0 : i32
    %c0_i32_1 = arith.constant 0 : i32
    return %arg1, %c0_i32, %c0_i32_0 : i32, i32, i32
  }
  func.func @transform_6(%arg0: i32, %arg1: i32) -> (i32, i32, i32) {
    %c0_i32 = arith.constant 0 : i32
    %c0_i32_0 = arith.constant 0 : i32
    %c0_i32_1 = arith.constant 0 : i32
    return %arg1, %c0_i32, %c0_i32_0 : i32, i32, i32
  }
  func.func @transform_7(%arg0: i32, %arg1: i32) -> (i32, i32, i32) {
    %c0_i32 = arith.constant 0 : i32
    %c0_i32_0 = arith.constant 0 : i32
    %c0_i32_1 = arith.constant 0 : i32
    return %arg1, %c0_i32, %c0_i32_0 : i32, i32, i32
  }
  func.func @transform_8(%arg0: i32, %arg1: i32) -> (i32, i32, i32) {
    %c0_i32 = arith.constant 0 : i32
    %c0_i32_0 = arith.constant 0 : i32
    %c0_i32_1 = arith.constant 0 : i32
    return %arg1, %c0_i32, %c0_i32_0 : i32, i32, i32
  }
  func.func @transform_9(%arg0: i32, %arg1: i32) -> (i32, i32, i32) {
    %c0_i32 = arith.constant 0 : i32
    %c0_i32_0 = arith.constant 0 : i32
    %c0_i32_1 = arith.constant 0 : i32
    return %arg1, %c0_i32, %c0_i32_0 : i32, i32, i32
  }
  func.func @transform_10(%arg0: i32, %arg1: i32) -> (i32, i32, i32) {
    %c0_i32 = arith.constant 0 : i32
    %c0_i32_0 = arith.constant 0 : i32
    %c0_i32_1 = arith.constant 0 : i32
    return %arg1, %c0_i32, %c0_i32_0 : i32, i32, i32
  }
  func.func @transform_11(%arg0: i32, %arg1: i32) -> (i32, i32, i32) {
    %c0_i32 = arith.constant 0 : i32
    %c0_i32_0 = arith.constant 0 : i32
    %c0_i32_1 = arith.constant 0 : i32
    return %arg1, %c0_i32, %c0_i32_0 : i32, i32, i32
  }
  func.func @transform_12(%arg0: i32, %arg1: i32) -> (i32, i32, i32) {
    %c0_i32 = arith.constant 0 : i32
    %c0_i32_0 = arith.constant 0 : i32
    %c0_i32_1 = arith.constant 0 : i32
    return %arg1, %c0_i32, %c0_i32_0 : i32, i32, i32
  }
  func.func @transform_13(%arg0: i32, %arg1: i32) -> (i32, i32, i32) {
    %c0_i32 = arith.constant 0 : i32
    %c0_i32_0 = arith.constant 0 : i32
    %c0_i32_1 = arith.constant 0 : i32
    return %arg1, %c0_i32, %c0_i32_0 : i32, i32, i32
  }
  func.func @transform_14(%arg0: i32, %arg1: i32) -> (i32, i32, i32) {
    %c0_i32 = arith.constant 0 : i32
    %c0_i32_0 = arith.constant 0 : i32
    %c0_i32_1 = arith.constant 0 : i32
    return %arg1, %c0_i32, %c0_i32_0 : i32, i32, i32
  }
  func.func @transform_15(%arg0: i32, %arg1: i32) -> (i32, i32, i32) {
    %c0_i32 = arith.constant 0 : i32
    %c0_i32_0 = arith.constant 0 : i32
    %c0_i32_1 = arith.constant 0 : i32
    return %arg1, %c0_i32, %c0_i32_0 : i32, i32, i32
  }
  func.func @transform_16(%arg0: i32, %arg1: i32) -> (i32, i32, i32) {
    %c0_i32 = arith.constant 0 : i32
    %c0_i32_0 = arith.constant 0 : i32
    %c0_i32_1 = arith.constant 0 : i32
    return %arg1, %c0_i32, %c0_i32_0 : i32, i32, i32
  }
  func.func @transform_17(%arg0: i32, %arg1: i32) -> (i32, i32) {
    %c0_i32 = arith.constant 0 : i32
    %c0_i32_0 = arith.constant 0 : i32
    return %arg0, %c0_i32 : i32, i32
  }
}

module attributes {stable_mosaic.version = 11 : i64} {
  func.func @_vit_kernel(%arg0: i32, %arg1: i32, %arg2: memref<2x4x768xf32, #tpu.memory_space<vmem>>, %arg3: memref<768x32xbf16, #tpu.memory_space<vmem>>, %arg4: memref<1x32xf32, #tpu.memory_space<vmem>>, %arg5: memref<8x32xf32, #tpu.memory_space<vmem>>, %arg6: memref<32x128xbf16, #tpu.memory_space<vmem>>, %arg7: memref<1x128xf32, #tpu.memory_space<vmem>>, %arg8: memref<1x32x96xbf16, #tpu.memory_space<vmem>>, %arg9: memref<1x1x96xf32, #tpu.memory_space<vmem>>, %arg10: memref<1x32x32xbf16, #tpu.memory_space<vmem>>, %arg11: memref<1x1x32xf32, #tpu.memory_space<vmem>>, %arg12: memref<1x1x32xf32, #tpu.memory_space<vmem>>, %arg13: memref<1x1x32xf32, #tpu.memory_space<vmem>>, %arg14: memref<1x32x128xbf16, #tpu.memory_space<vmem>>, %arg15: memref<1x1x128xf32, #tpu.memory_space<vmem>>, %arg16: memref<1x128x32xbf16, #tpu.memory_space<vmem>>, %arg17: memref<1x1x32xf32, #tpu.memory_space<vmem>>, %arg18: memref<1x1x32xf32, #tpu.memory_space<vmem>>, %arg19: memref<1x1x32xf32, #tpu.memory_space<vmem>>, %arg20: memref<2x128xf32, #tpu.memory_space<vmem>>, %arg21: memref<2x8x32xf32, #tpu.memory_space<vmem>>) attributes {dimension_semantics = [#tpu.dimension_semantics<parallel>, #tpu.dimension_semantics<arbitrary>], iteration_bounds = array<i64: 1, 2>, scalar_prefetch = 0 : i64, scratch_operands = 1 : i64, tpu.core_type = #tpu.core_type<tc>, window_params = [{transform_indices = @transform_0, window_bounds = array<i64: 2, 4, 768>}, {pipeline_mode = #tpu.pipeline_mode<synchronous>, transform_indices = @transform_1, window_bounds = array<i64: 768, 32>}, {pipeline_mode = #tpu.pipeline_mode<synchronous>, transform_indices = @transform_2, window_bounds = array<i64: 1, 32>}, {pipeline_mode = #tpu.pipeline_mode<synchronous>, transform_indices = @transform_3, window_bounds = array<i64: 8, 32>}, {pipeline_mode = #tpu.pipeline_mode<synchronous>, transform_indices = @transform_4, window_bounds = array<i64: 32, 128>}, {pipeline_mode = #tpu.pipeline_mode<synchronous>, transform_indices = @transform_5, window_bounds = array<i64: 1, 128>}, {transform_indices = @transform_6, window_bounds = array<i64: 1, 32, 96>}, {transform_indices = @transform_7, window_bounds = array<i64: 1, 1, 96>}, {transform_indices = @transform_8, window_bounds = array<i64: 1, 32, 32>}, {transform_indices = @transform_9, window_bounds = array<i64: 1, 1, 32>}, {transform_indices = @transform_10, window_bounds = array<i64: 1, 1, 32>}, {transform_indices = @transform_11, window_bounds = array<i64: 1, 1, 32>}, {transform_indices = @transform_12, window_bounds = array<i64: 1, 32, 128>}, {transform_indices = @transform_13, window_bounds = array<i64: 1, 1, 128>}, {transform_indices = @transform_14, window_bounds = array<i64: 1, 128, 32>}, {transform_indices = @transform_15, window_bounds = array<i64: 1, 1, 32>}, {transform_indices = @transform_16, window_bounds = array<i64: 1, 1, 32>}, {transform_indices = @transform_17, window_bounds = array<i64: 1, 1, 32>}, {transform_indices = @transform_18, window_bounds = array<i64: 2, 128>}]} {
    %c0_i32 = arith.constant 0 : i32
    %0 = arith.cmpi eq, %arg1, %c0_i32 : i32
    %1 = arith.extui %0 : i1 to i32
    %c0_i32_0 = arith.constant 0 : i32
    %2 = arith.cmpi ne, %1, %c0_i32_0 : i32
    scf.if %2 {
      %c0_80 = arith.constant 0 : index
      %c0_81 = arith.constant 0 : index
      %c0_82 = arith.constant 0 : index
      %218 = vector.load %arg2[%c0_80, %c0_81, %c0_82] : memref<2x4x768xf32, #tpu.memory_space<vmem>>, vector<2x4x768xf32>
      %219 = vector.shape_cast %218 : vector<2x4x768xf32> to vector<8x768xf32>
      %220 = arith.truncf %219 : vector<8x768xf32> to vector<8x768xbf16>
      %c0_83 = arith.constant 0 : index
      %c0_84 = arith.constant 0 : index
      %221 = vector.load %arg3[%c0_83, %c0_84] : memref<768x32xbf16, #tpu.memory_space<vmem>>, vector<768x32xbf16>
      %cst_85 = arith.constant dense<0.000000e+00> : vector<8x32xf32>
      %222 = tpu.matmul %220, %221, %cst_85 {dimension_numbers = #tpu.dot_dimension_numbers<[1], [0], [0], [1], [0, 0, 1, 1], [], []>} : vector<8x768xbf16>, vector<768x32xbf16>, vector<8x32xf32> -> vector<8x32xf32>
      %c0_86 = arith.constant 0 : index
      %c0_87 = arith.constant 0 : index
      %223 = vector.load %arg4[%c0_86, %c0_87] : memref<1x32xf32, #tpu.memory_space<vmem>>, vector<1x32xf32>
      %224 = vector.broadcast %223 : vector<1x32xf32> to vector<8x32xf32>
      %225 = arith.addf %222, %224 : vector<8x32xf32>
      %226 = vector.shape_cast %225 : vector<8x32xf32> to vector<2x4x32xf32>
      %cst_88 = arith.constant 0.000000e+00 : f32
      %227 = vector.broadcast %cst_88 : f32 to vector<2x1x32xf32>
      %cst_89 = arith.constant 0.000000e+00 : f32
      %228 = vector.broadcast %cst_89 : f32 to vector<2x3x32xf32>
      %229 = tpu.concatenate %227, %226, %228 in 1 : vector<2x1x32xf32>, vector<2x4x32xf32>, vector<2x3x32xf32> -> vector<2x8x32xf32>
      %c0_90 = arith.constant 0 : index
      %c0_91 = arith.constant 0 : index
      %230 = vector.load %arg5[%c0_90, %c0_91] : memref<8x32xf32, #tpu.memory_space<vmem>>, vector<8x32xf32>
      %231 = vector.shape_cast %230 : vector<8x32xf32> to vector<1x8x32xf32>
      %232 = vector.broadcast %231 : vector<1x8x32xf32> to vector<2x8x32xf32>
      %233 = arith.addf %229, %232 : vector<2x8x32xf32>
      %c0_92 = arith.constant 0 : index
      %c0_93 = arith.constant 0 : index
      %c0_94 = arith.constant 0 : index
      %234 = vector.load %arg21[%c0_92, %c0_93, %c0_94] : memref<2x8x32xf32, #tpu.memory_space<vmem>>, vector<2x8x32xf32>
      tpu.vector_store %arg21[%c0_92, %c0_93, %c0_94], %233 {strides = array<i32>} : memref<2x8x32xf32, #tpu.memory_space<vmem>>, vector<2x8x32xf32>,
    } else {
    }
    %c0 = arith.constant 0 : index
    %c0_1 = arith.constant 0 : index
    %c0_2 = arith.constant 0 : index
    %3 = vector.load %arg21[%c0, %c0_1, %c0_2] : memref<2x8x32xf32, #tpu.memory_space<vmem>>, vector<2x8x32xf32>
    %4 = vector.shape_cast %3 : vector<2x8x32xf32> to vector<16x32xf32>
    %5 = arith.truncf %4 : vector<16x32xf32> to vector<16x32xbf16>
    %c0_3 = arith.constant 0 : index
    %c0_4 = arith.constant 0 : index
    %c0_5 = arith.constant 0 : index
    %6 = vector.load %arg8[%c0_3, %c0_4, %c0_5] : memref<1x32x96xbf16, #tpu.memory_space<vmem>>, vector<1x32x96xbf16>
    %7 = vector.shape_cast %6 : vector<1x32x96xbf16> to vector<32x96xbf16>
    %cst = arith.constant dense<0.000000e+00> : vector<16x96xf32>
    %8 = tpu.matmul %5, %7, %cst {dimension_numbers = #tpu.dot_dimension_numbers<[1], [0], [0], [1], [0, 0, 1, 1], [], []>} : vector<16x32xbf16>, vector<32x96xbf16>, vector<16x96xf32> -> vector<16x96xf32>
    %c0_6 = arith.constant 0 : index
    %c0_7 = arith.constant 0 : index
    %c0_8 = arith.constant 0 : index
    %9 = vector.load %arg9[%c0_6, %c0_7, %c0_8] : memref<1x1x96xf32, #tpu.memory_space<vmem>>, vector<1x1x96xf32>
    %10 = vector.shape_cast %9 : vector<1x1x96xf32> to vector<1x96xf32>
    %11 = vector.broadcast %10 : vector<1x96xf32> to vector<16x96xf32>
    %12 = arith.addf %8, %11 : vector<16x96xf32>
    %13 = vector.shape_cast %12 : vector<16x96xf32> to vector<2x8x96xf32>
    %14 = tpu.iota {dimensions = array<i32: 2>} : vector<1x1x8xi32>
    %c5_i32 = arith.constant 5 : i32
    %15 = vector.broadcast %c5_i32 : i32 to vector<1x1x8xi32>
    %16 = arith.cmpi slt, %14, %15 : vector<1x1x8xi32>
    %c0_9 = arith.constant 0 : index
    %c0_10 = arith.constant 0 : index
    %c0_11 = arith.constant 0 : index
    %17 = vector.load %arg10[%c0_9, %c0_10, %c0_11] : memref<1x32x32xbf16, #tpu.memory_space<vmem>>, vector<1x32x32xbf16>
    %18 = vector.shape_cast %17 : vector<1x32x32xbf16> to vector<32x32xbf16>
    %19 = vector.extract_strided_slice %13 {offsets = [0, 0, 0], sizes = [2, 8, 8], strides = [1, 1, 1]} : vector<2x8x96xf32> to vector<2x8x8xf32>
    %20 = arith.truncf %19 : vector<2x8x8xf32> to vector<2x8x8xbf16>
    %21 = vector.extract_strided_slice %13 {offsets = [0, 0, 32], sizes = [2, 8, 8], strides = [1, 1, 1]} : vector<2x8x96xf32> to vector<2x8x8xf32>
    %22 = arith.truncf %21 : vector<2x8x8xf32> to vector<2x8x8xbf16>
    %23 = vector.extract_strided_slice %13 {offsets = [0, 0, 64], sizes = [2, 8, 8], strides = [1, 1, 1]} : vector<2x8x96xf32> to vector<2x8x8xf32>
    %24 = arith.truncf %23 : vector<2x8x8xf32> to vector<2x8x8xbf16>
    "tpu.trace_start"() <{level = 10 : i32, message = "bqd,bkd->bqk"}> : () -> ()
    %cst_12 = arith.constant dense<0.000000e+00> : vector<2x8x8xf32>
    %25 = tpu.matmul %20, %22, %cst_12 {dimension_numbers = #tpu.dot_dimension_numbers<[2], [2], [1], [1], [0, 0, 0, 1, 1, 1], [0], [0]>} : vector<2x8x8xbf16>, vector<2x8x8xbf16>, vector<2x8x8xf32> -> vector<2x8x8xf32>
    %cst_13 = arith.constant -1.000000e+30 : f32
    "tpu.trace_stop"() : () -> ()
    %26 = vector.shape_cast %16 : vector<1x1x8xi1> to vector<1x1x8xi1>
    %27 = vector.broadcast %26 : vector<1x1x8xi1> to vector<2x8x8xi1>
    %28 = vector.broadcast %cst_13 : f32 to vector<2x8x8xf32>
    %29 = arith.select %27, %25, %28 : vector<2x8x8xi1>, vector<2x8x8xf32>
    %cst_14 = arith.constant dense<0xFF800000> : vector<2x8xf32>
    %30 = vector.multi_reduction <maximumf>, %29, %cst_14 [2] : vector<2x8x8xf32> to vector<2x8xf32>
    %31 = vector.shape_cast %30 : vector<2x8xf32> to vector<2x8x1xf32>
    %32 = vector.broadcast %31 : vector<2x8x1xf32> to vector<2x8x8xf32>
    %33 = arith.subf %29, %32 : vector<2x8x8xf32>
    %34 = math.exp %33 : vector<2x8x8xf32>
    %cst_15 = arith.constant dense<0.000000e+00> : vector<2x8xf32>
    %35 = vector.multi_reduction <add>, %34, %cst_15 [2] : vector<2x8x8xf32> to vector<2x8xf32>
    %36 = vector.shape_cast %35 : vector<2x8xf32> to vector<2x8x1xf32>
    %37 = tpu.reciprocal %36 {approx = true} : vector<2x8x1xf32> -> vector<2x8x1xf32>
    %38 = vector.broadcast %37 : vector<2x8x1xf32> to vector<2x8x8xf32>
    %39 = arith.mulf %34, %38 : vector<2x8x8xf32>
    %40 = arith.truncf %39 : vector<2x8x8xf32> to vector<2x8x8xbf16>
    "tpu.trace_start"() <{level = 10 : i32, message = "bqk,bkd->bqd"}> : () -> ()
    %cst_16 = arith.constant dense<0.000000e+00> : vector<2x8x8xf32>
    %41 = tpu.matmul %40, %24, %cst_16 {dimension_numbers = #tpu.dot_dimension_numbers<[2], [1], [1], [2], [0, 0, 0, 1, 1, 2], [0], [0]>} : vector<2x8x8xbf16>, vector<2x8x8xbf16>, vector<2x8x8xf32> -> vector<2x8x8xf32>
    "tpu.trace_stop"() : () -> ()
    %42 = vector.shape_cast %41 : vector<2x8x8xf32> to vector<16x8xf32>
    %43 = arith.truncf %42 : vector<16x8xf32> to vector<16x8xbf16>
    %44 = vector.extract_strided_slice %18 {offsets = [0, 0], sizes = [8, 32], strides = [1, 1]} : vector<32x32xbf16> to vector<8x32xbf16>
    %cst_17 = arith.constant dense<0.000000e+00> : vector<16x32xf32>
    %45 = tpu.matmul %43, %44, %cst_17 {dimension_numbers = #tpu.dot_dimension_numbers<[1], [0], [0], [1], [0, 0, 1, 1], [], []>} : vector<16x8xbf16>, vector<8x32xbf16>, vector<16x32xf32> -> vector<16x32xf32>
    %46 = vector.extract_strided_slice %13 {offsets = [0, 0, 8], sizes = [2, 8, 8], strides = [1, 1, 1]} : vector<2x8x96xf32> to vector<2x8x8xf32>
    %47 = arith.truncf %46 : vector<2x8x8xf32> to vector<2x8x8xbf16>
    %48 = vector.extract_strided_slice %13 {offsets = [0, 0, 40], sizes = [2, 8, 8], strides = [1, 1, 1]} : vector<2x8x96xf32> to vector<2x8x8xf32>
    %49 = arith.truncf %48 : vector<2x8x8xf32> to vector<2x8x8xbf16>
    %50 = vector.extract_strided_slice %13 {offsets = [0, 0, 72], sizes = [2, 8, 8], strides = [1, 1, 1]} : vector<2x8x96xf32> to vector<2x8x8xf32>
    %51 = arith.truncf %50 : vector<2x8x8xf32> to vector<2x8x8xbf16>
    "tpu.trace_start"() <{level = 10 : i32, message = "bqd,bkd->bqk"}> : () -> ()
    %cst_18 = arith.constant dense<0.000000e+00> : vector<2x8x8xf32>
    %52 = tpu.matmul %47, %49, %cst_18 {dimension_numbers = #tpu.dot_dimension_numbers<[2], [2], [1], [1], [0, 0, 0, 1, 1, 1], [0], [0]>} : vector<2x8x8xbf16>, vector<2x8x8xbf16>, vector<2x8x8xf32> -> vector<2x8x8xf32>
    %cst_19 = arith.constant -1.000000e+30 : f32
    "tpu.trace_stop"() : () -> ()
    %53 = vector.shape_cast %16 : vector<1x1x8xi1> to vector<1x1x8xi1>
    %54 = vector.broadcast %53 : vector<1x1x8xi1> to vector<2x8x8xi1>
    %55 = vector.broadcast %cst_19 : f32 to vector<2x8x8xf32>
    %56 = arith.select %54, %52, %55 : vector<2x8x8xi1>, vector<2x8x8xf32>
    %cst_20 = arith.constant dense<0xFF800000> : vector<2x8xf32>
    %57 = vector.multi_reduction <maximumf>, %56, %cst_20 [2] : vector<2x8x8xf32> to vector<2x8xf32>
    %58 = vector.shape_cast %57 : vector<2x8xf32> to vector<2x8x1xf32>
    %59 = vector.broadcast %58 : vector<2x8x1xf32> to vector<2x8x8xf32>
    %60 = arith.subf %56, %59 : vector<2x8x8xf32>
    %61 = math.exp %60 : vector<2x8x8xf32>
    %cst_21 = arith.constant dense<0.000000e+00> : vector<2x8xf32>
    %62 = vector.multi_reduction <add>, %61, %cst_21 [2] : vector<2x8x8xf32> to vector<2x8xf32>
    %63 = vector.shape_cast %62 : vector<2x8xf32> to vector<2x8x1xf32>
    %64 = tpu.reciprocal %63 {approx = true} : vector<2x8x1xf32> -> vector<2x8x1xf32>
    %65 = vector.broadcast %64 : vector<2x8x1xf32> to vector<2x8x8xf32>
    %66 = arith.mulf %61, %65 : vector<2x8x8xf32>
    %67 = arith.truncf %66 : vector<2x8x8xf32> to vector<2x8x8xbf16>
    "tpu.trace_start"() <{level = 10 : i32, message = "bqk,bkd->bqd"}> : () -> ()
    %cst_22 = arith.constant dense<0.000000e+00> : vector<2x8x8xf32>
    %68 = tpu.matmul %67, %51, %cst_22 {dimension_numbers = #tpu.dot_dimension_numbers<[2], [1], [1], [2], [0, 0, 0, 1, 1, 2], [0], [0]>} : vector<2x8x8xbf16>, vector<2x8x8xbf16>, vector<2x8x8xf32> -> vector<2x8x8xf32>
    "tpu.trace_stop"() : () -> ()
    %69 = vector.shape_cast %68 : vector<2x8x8xf32> to vector<16x8xf32>
    %70 = arith.truncf %69 : vector<16x8xf32> to vector<16x8xbf16>
    %71 = vector.extract_strided_slice %18 {offsets = [8, 0], sizes = [8, 32], strides = [1, 1]} : vector<32x32xbf16> to vector<8x32xbf16>
    %cst_23 = arith.constant dense<0.000000e+00> : vector<16x32xf32>
    %72 = tpu.matmul %70, %71, %cst_23 {dimension_numbers = #tpu.dot_dimension_numbers<[1], [0], [0], [1], [0, 0, 1, 1], [], []>} : vector<16x8xbf16>, vector<8x32xbf16>, vector<16x32xf32> -> vector<16x32xf32>
    %73 = arith.addf %45, %72 : vector<16x32xf32>
    %74 = vector.extract_strided_slice %13 {offsets = [0, 0, 16], sizes = [2, 8, 8], strides = [1, 1, 1]} : vector<2x8x96xf32> to vector<2x8x8xf32>
    %75 = arith.truncf %74 : vector<2x8x8xf32> to vector<2x8x8xbf16>
    %76 = vector.extract_strided_slice %13 {offsets = [0, 0, 48], sizes = [2, 8, 8], strides = [1, 1, 1]} : vector<2x8x96xf32> to vector<2x8x8xf32>
    %77 = arith.truncf %76 : vector<2x8x8xf32> to vector<2x8x8xbf16>
    %78 = vector.extract_strided_slice %13 {offsets = [0, 0, 80], sizes = [2, 8, 8], strides = [1, 1, 1]} : vector<2x8x96xf32> to vector<2x8x8xf32>
    %79 = arith.truncf %78 : vector<2x8x8xf32> to vector<2x8x8xbf16>
    "tpu.trace_start"() <{level = 10 : i32, message = "bqd,bkd->bqk"}> : () -> ()
    %cst_24 = arith.constant dense<0.000000e+00> : vector<2x8x8xf32>
    %80 = tpu.matmul %75, %77, %cst_24 {dimension_numbers = #tpu.dot_dimension_numbers<[2], [2], [1], [1], [0, 0, 0, 1, 1, 1], [0], [0]>} : vector<2x8x8xbf16>, vector<2x8x8xbf16>, vector<2x8x8xf32> -> vector<2x8x8xf32>
    %cst_25 = arith.constant -1.000000e+30 : f32
    "tpu.trace_stop"() : () -> ()
    %81 = vector.shape_cast %16 : vector<1x1x8xi1> to vector<1x1x8xi1>
    %82 = vector.broadcast %81 : vector<1x1x8xi1> to vector<2x8x8xi1>
    %83 = vector.broadcast %cst_25 : f32 to vector<2x8x8xf32>
    %84 = arith.select %82, %80, %83 : vector<2x8x8xi1>, vector<2x8x8xf32>
    %cst_26 = arith.constant dense<0xFF800000> : vector<2x8xf32>
    %85 = vector.multi_reduction <maximumf>, %84, %cst_26 [2] : vector<2x8x8xf32> to vector<2x8xf32>
    %86 = vector.shape_cast %85 : vector<2x8xf32> to vector<2x8x1xf32>
    %87 = vector.broadcast %86 : vector<2x8x1xf32> to vector<2x8x8xf32>
    %88 = arith.subf %84, %87 : vector<2x8x8xf32>
    %89 = math.exp %88 : vector<2x8x8xf32>
    %cst_27 = arith.constant dense<0.000000e+00> : vector<2x8xf32>
    %90 = vector.multi_reduction <add>, %89, %cst_27 [2] : vector<2x8x8xf32> to vector<2x8xf32>
    %91 = vector.shape_cast %90 : vector<2x8xf32> to vector<2x8x1xf32>
    %92 = tpu.reciprocal %91 {approx = true} : vector<2x8x1xf32> -> vector<2x8x1xf32>
    %93 = vector.broadcast %92 : vector<2x8x1xf32> to vector<2x8x8xf32>
    %94 = arith.mulf %89, %93 : vector<2x8x8xf32>
    %95 = arith.truncf %94 : vector<2x8x8xf32> to vector<2x8x8xbf16>
    "tpu.trace_start"() <{level = 10 : i32, message = "bqk,bkd->bqd"}> : () -> ()
    %cst_28 = arith.constant dense<0.000000e+00> : vector<2x8x8xf32>
    %96 = tpu.matmul %95, %79, %cst_28 {dimension_numbers = #tpu.dot_dimension_numbers<[2], [1], [1], [2], [0, 0, 0, 1, 1, 2], [0], [0]>} : vector<2x8x8xbf16>, vector<2x8x8xbf16>, vector<2x8x8xf32> -> vector<2x8x8xf32>
    "tpu.trace_stop"() : () -> ()
    %97 = vector.shape_cast %96 : vector<2x8x8xf32> to vector<16x8xf32>
    %98 = arith.truncf %97 : vector<16x8xf32> to vector<16x8xbf16>
    %99 = vector.extract_strided_slice %18 {offsets = [16, 0], sizes = [8, 32], strides = [1, 1]} : vector<32x32xbf16> to vector<8x32xbf16>
    %cst_29 = arith.constant dense<0.000000e+00> : vector<16x32xf32>
    %100 = tpu.matmul %98, %99, %cst_29 {dimension_numbers = #tpu.dot_dimension_numbers<[1], [0], [0], [1], [0, 0, 1, 1], [], []>} : vector<16x8xbf16>, vector<8x32xbf16>, vector<16x32xf32> -> vector<16x32xf32>
    %101 = arith.addf %73, %100 : vector<16x32xf32>
    %102 = vector.extract_strided_slice %13 {offsets = [0, 0, 24], sizes = [2, 8, 8], strides = [1, 1, 1]} : vector<2x8x96xf32> to vector<2x8x8xf32>
    %103 = arith.truncf %102 : vector<2x8x8xf32> to vector<2x8x8xbf16>
    %104 = vector.extract_strided_slice %13 {offsets = [0, 0, 56], sizes = [2, 8, 8], strides = [1, 1, 1]} : vector<2x8x96xf32> to vector<2x8x8xf32>
    %105 = arith.truncf %104 : vector<2x8x8xf32> to vector<2x8x8xbf16>
    %106 = vector.extract_strided_slice %13 {offsets = [0, 0, 88], sizes = [2, 8, 8], strides = [1, 1, 1]} : vector<2x8x96xf32> to vector<2x8x8xf32>
    %107 = arith.truncf %106 : vector<2x8x8xf32> to vector<2x8x8xbf16>
    "tpu.trace_start"() <{level = 10 : i32, message = "bqd,bkd->bqk"}> : () -> ()
    %cst_30 = arith.constant dense<0.000000e+00> : vector<2x8x8xf32>
    %108 = tpu.matmul %103, %105, %cst_30 {dimension_numbers = #tpu.dot_dimension_numbers<[2], [2], [1], [1], [0, 0, 0, 1, 1, 1], [0], [0]>} : vector<2x8x8xbf16>, vector<2x8x8xbf16>, vector<2x8x8xf32> -> vector<2x8x8xf32>
    %cst_31 = arith.constant -1.000000e+30 : f32
    "tpu.trace_stop"() : () -> ()
    %109 = vector.shape_cast %16 : vector<1x1x8xi1> to vector<1x1x8xi1>
    %110 = vector.broadcast %109 : vector<1x1x8xi1> to vector<2x8x8xi1>
    %111 = vector.broadcast %cst_31 : f32 to vector<2x8x8xf32>
    %112 = arith.select %110, %108, %111 : vector<2x8x8xi1>, vector<2x8x8xf32>
    %cst_32 = arith.constant dense<0xFF800000> : vector<2x8xf32>
    %113 = vector.multi_reduction <maximumf>, %112, %cst_32 [2] : vector<2x8x8xf32> to vector<2x8xf32>
    %114 = vector.shape_cast %113 : vector<2x8xf32> to vector<2x8x1xf32>
    %115 = vector.broadcast %114 : vector<2x8x1xf32> to vector<2x8x8xf32>
    %116 = arith.subf %112, %115 : vector<2x8x8xf32>
    %117 = math.exp %116 : vector<2x8x8xf32>
    %cst_33 = arith.constant dense<0.000000e+00> : vector<2x8xf32>
    %118 = vector.multi_reduction <add>, %117, %cst_33 [2] : vector<2x8x8xf32> to vector<2x8xf32>
    %119 = vector.shape_cast %118 : vector<2x8xf32> to vector<2x8x1xf32>
    %120 = tpu.reciprocal %119 {approx = true} : vector<2x8x1xf32> -> vector<2x8x1xf32>
    %121 = vector.broadcast %120 : vector<2x8x1xf32> to vector<2x8x8xf32>
    %122 = arith.mulf %117, %121 : vector<2x8x8xf32>
    %123 = arith.truncf %122 : vector<2x8x8xf32> to vector<2x8x8xbf16>
    "tpu.trace_start"() <{level = 10 : i32, message = "bqk,bkd->bqd"}> : () -> ()
    %cst_34 = arith.constant dense<0.000000e+00> : vector<2x8x8xf32>
    %124 = tpu.matmul %123, %107, %cst_34 {dimension_numbers = #tpu.dot_dimension_numbers<[2], [1], [1], [2], [0, 0, 0, 1, 1, 2], [0], [0]>} : vector<2x8x8xbf16>, vector<2x8x8xbf16>, vector<2x8x8xf32> -> vector<2x8x8xf32>
    "tpu.trace_stop"() : () -> ()
    %125 = vector.shape_cast %124 : vector<2x8x8xf32> to vector<16x8xf32>
    %126 = arith.truncf %125 : vector<16x8xf32> to vector<16x8xbf16>
    %127 = vector.extract_strided_slice %18 {offsets = [24, 0], sizes = [8, 32], strides = [1, 1]} : vector<32x32xbf16> to vector<8x32xbf16>
    %cst_35 = arith.constant dense<0.000000e+00> : vector<16x32xf32>
    %128 = tpu.matmul %126, %127, %cst_35 {dimension_numbers = #tpu.dot_dimension_numbers<[1], [0], [0], [1], [0, 0, 1, 1], [], []>} : vector<16x8xbf16>, vector<8x32xbf16>, vector<16x32xf32> -> vector<16x32xf32>
    %129 = arith.addf %101, %128 : vector<16x32xf32>
    %130 = vector.shape_cast %129 : vector<16x32xf32> to vector<2x8x32xf32>
    %c0_36 = arith.constant 0 : index
    %c0_37 = arith.constant 0 : index
    %c0_38 = arith.constant 0 : index
    %131 = vector.load %arg11[%c0_36, %c0_37, %c0_38] : memref<1x1x32xf32, #tpu.memory_space<vmem>>, vector<1x1x32xf32>
    %132 = vector.shape_cast %131 : vector<1x1x32xf32> to vector<1x32xf32>
    %133 = vector.shape_cast %132 : vector<1x32xf32> to vector<1x1x32xf32>
    %134 = vector.broadcast %133 : vector<1x1x32xf32> to vector<2x8x32xf32>
    %135 = arith.addf %130, %134 : vector<2x8x32xf32>
    %136 = arith.addf %3, %135 : vector<2x8x32xf32>
    %c0_39 = arith.constant 0 : index
    %c0_40 = arith.constant 0 : index
    %c0_41 = arith.constant 0 : index
    %137 = vector.load %arg12[%c0_39, %c0_40, %c0_41] : memref<1x1x32xf32, #tpu.memory_space<vmem>>, vector<1x1x32xf32>
    %138 = vector.shape_cast %137 : vector<1x1x32xf32> to vector<1x32xf32>
    %c0_42 = arith.constant 0 : index
    %c0_43 = arith.constant 0 : index
    %c0_44 = arith.constant 0 : index
    %139 = vector.load %arg13[%c0_42, %c0_43, %c0_44] : memref<1x1x32xf32, #tpu.memory_space<vmem>>, vector<1x1x32xf32>
    %140 = vector.shape_cast %139 : vector<1x1x32xf32> to vector<1x32xf32>
    %cst_45 = arith.constant dense<0.000000e+00> : vector<2x8xf32>
    %141 = vector.multi_reduction <add>, %136, %cst_45 [2] : vector<2x8x32xf32> to vector<2x8xf32>
    %142 = vector.shape_cast %141 : vector<2x8xf32> to vector<2x8x1xf32>
    %cst_46 = arith.constant 3.200000e+01 : f32
    %143 = vector.broadcast %cst_46 : f32 to vector<2x8x1xf32>
    %144 = arith.divf %142, %143 : vector<2x8x1xf32>
    %145 = vector.broadcast %144 : vector<2x8x1xf32> to vector<2x8x32xf32>
    %146 = arith.subf %136, %145 : vector<2x8x32xf32>
    %147 = arith.mulf %146, %146 : vector<2x8x32xf32>
    %cst_47 = arith.constant dense<0.000000e+00> : vector<2x8xf32>
    %148 = vector.multi_reduction <add>, %147, %cst_47 [2] : vector<2x8x32xf32> to vector<2x8xf32>
    %149 = vector.shape_cast %148 : vector<2x8xf32> to vector<2x8x1xf32>
    %cst_48 = arith.constant 3.200000e+01 : f32
    %150 = vector.broadcast %cst_48 : f32 to vector<2x8x1xf32>
    %151 = arith.divf %149, %150 : vector<2x8x1xf32>
    %152 = vector.broadcast %144 : vector<2x8x1xf32> to vector<2x8x32xf32>
    %153 = arith.subf %136, %152 : vector<2x8x32xf32>
    %cst_49 = arith.constant 9.99999974E-6 : f32
    %154 = vector.broadcast %cst_49 : f32 to vector<2x8x1xf32>
    %155 = arith.addf %151, %154 : vector<2x8x1xf32>
    %156 = math.rsqrt %155 : vector<2x8x1xf32>
    %157 = vector.broadcast %156 : vector<2x8x1xf32> to vector<2x8x32xf32>
    %158 = arith.mulf %153, %157 : vector<2x8x32xf32>
    %159 = vector.shape_cast %138 : vector<1x32xf32> to vector<1x1x32xf32>
    %160 = vector.broadcast %159 : vector<1x1x32xf32> to vector<2x8x32xf32>
    %161 = arith.mulf %158, %160 : vector<2x8x32xf32>
    %162 = vector.shape_cast %140 : vector<1x32xf32> to vector<1x1x32xf32>
    %163 = vector.broadcast %162 : vector<1x1x32xf32> to vector<2x8x32xf32>
    %164 = arith.addf %161, %163 : vector<2x8x32xf32>
    %165 = vector.shape_cast %164 : vector<2x8x32xf32> to vector<16x32xf32>
    %166 = arith.truncf %165 : vector<16x32xf32> to vector<16x32xbf16>
    %c0_50 = arith.constant 0 : index
    %c0_51 = arith.constant 0 : index
    %c0_52 = arith.constant 0 : index
    %167 = vector.load %arg14[%c0_50, %c0_51, %c0_52] : memref<1x32x128xbf16, #tpu.memory_space<vmem>>, vector<1x32x128xbf16>
    %168 = vector.shape_cast %167 : vector<1x32x128xbf16> to vector<32x128xbf16>
    %cst_53 = arith.constant dense<0.000000e+00> : vector<16x128xf32>
    %169 = tpu.matmul %166, %168, %cst_53 {dimension_numbers = #tpu.dot_dimension_numbers<[1], [0], [0], [1], [0, 0, 1, 1], [], []>} : vector<16x32xbf16>, vector<32x128xbf16>, vector<16x128xf32> -> vector<16x128xf32>
    %c0_54 = arith.constant 0 : index
    %c0_55 = arith.constant 0 : index
    %c0_56 = arith.constant 0 : index
    %170 = vector.load %arg15[%c0_54, %c0_55, %c0_56] : memref<1x1x128xf32, #tpu.memory_space<vmem>>, vector<1x1x128xf32>
    %171 = vector.shape_cast %170 : vector<1x1x128xf32> to vector<1x128xf32>
    %172 = vector.broadcast %171 : vector<1x128xf32> to vector<16x128xf32>
    %173 = arith.addf %169, %172 : vector<16x128xf32>
    %cst_57 = arith.constant 0.000000e+00 : f32
    %174 = vector.broadcast %cst_57 : f32 to vector<16x128xf32>
    %175 = arith.maximumf %173, %174 : vector<16x128xf32>
    %176 = arith.truncf %175 : vector<16x128xf32> to vector<16x128xbf16>
    %c0_58 = arith.constant 0 : index
    %c0_59 = arith.constant 0 : index
    %c0_60 = arith.constant 0 : index
    %177 = vector.load %arg16[%c0_58, %c0_59, %c0_60] : memref<1x128x32xbf16, #tpu.memory_space<vmem>>, vector<1x128x32xbf16>
    %178 = vector.shape_cast %177 : vector<1x128x32xbf16> to vector<128x32xbf16>
    %cst_61 = arith.constant dense<0.000000e+00> : vector<16x32xf32>
    %179 = tpu.matmul %176, %178, %cst_61 {dimension_numbers = #tpu.dot_dimension_numbers<[1], [0], [0], [1], [0, 0, 1, 1], [], []>} : vector<16x128xbf16>, vector<128x32xbf16>, vector<16x32xf32> -> vector<16x32xf32>
    %c0_62 = arith.constant 0 : index
    %c0_63 = arith.constant 0 : index
    %c0_64 = arith.constant 0 : index
    %180 = vector.load %arg17[%c0_62, %c0_63, %c0_64] : memref<1x1x32xf32, #tpu.memory_space<vmem>>, vector<1x1x32xf32>
    %181 = vector.shape_cast %180 : vector<1x1x32xf32> to vector<1x32xf32>
    %182 = vector.broadcast %181 : vector<1x32xf32> to vector<16x32xf32>
    %183 = arith.addf %179, %182 : vector<16x32xf32>
    %184 = vector.shape_cast %183 : vector<16x32xf32> to vector<2x8x32xf32>
    %185 = arith.addf %164, %184 : vector<2x8x32xf32>
    %c0_65 = arith.constant 0 : index
    %c0_66 = arith.constant 0 : index
    %c0_67 = arith.constant 0 : index
    %186 = vector.load %arg18[%c0_65, %c0_66, %c0_67] : memref<1x1x32xf32, #tpu.memory_space<vmem>>, vector<1x1x32xf32>
    %187 = vector.shape_cast %186 : vector<1x1x32xf32> to vector<1x32xf32>
    %c0_68 = arith.constant 0 : index
    %c0_69 = arith.constant 0 : index
    %c0_70 = arith.constant 0 : index
    %188 = vector.load %arg19[%c0_68, %c0_69, %c0_70] : memref<1x1x32xf32, #tpu.memory_space<vmem>>, vector<1x1x32xf32>
    %189 = vector.shape_cast %188 : vector<1x1x32xf32> to vector<1x32xf32>
    %cst_71 = arith.constant dense<0.000000e+00> : vector<2x8xf32>
    %190 = vector.multi_reduction <add>, %185, %cst_71 [2] : vector<2x8x32xf32> to vector<2x8xf32>
    %191 = vector.shape_cast %190 : vector<2x8xf32> to vector<2x8x1xf32>
    %cst_72 = arith.constant 3.200000e+01 : f32
    %192 = vector.broadcast %cst_72 : f32 to vector<2x8x1xf32>
    %193 = arith.divf %191, %192 : vector<2x8x1xf32>
    %194 = vector.broadcast %193 : vector<2x8x1xf32> to vector<2x8x32xf32>
    %195 = arith.subf %185, %194 : vector<2x8x32xf32>
    %196 = arith.mulf %195, %195 : vector<2x8x32xf32>
    %cst_73 = arith.constant dense<0.000000e+00> : vector<2x8xf32>
    %197 = vector.multi_reduction <add>, %196, %cst_73 [2] : vector<2x8x32xf32> to vector<2x8xf32>
    %198 = vector.shape_cast %197 : vector<2x8xf32> to vector<2x8x1xf32>
    %cst_74 = arith.constant 3.200000e+01 : f32
    %199 = vector.broadcast %cst_74 : f32 to vector<2x8x1xf32>
    %200 = arith.divf %198, %199 : vector<2x8x1xf32>
    %201 = vector.broadcast %193 : vector<2x8x1xf32> to vector<2x8x32xf32>
    %202 = arith.subf %185, %201 : vector<2x8x32xf32>
    %cst_75 = arith.constant 9.99999974E-6 : f32
    %203 = vector.broadcast %cst_75 : f32 to vector<2x8x1xf32>
    %204 = arith.addf %200, %203 : vector<2x8x1xf32>
    %205 = math.rsqrt %204 : vector<2x8x1xf32>
    %206 = vector.broadcast %205 : vector<2x8x1xf32> to vector<2x8x32xf32>
    %207 = arith.mulf %202, %206 : vector<2x8x32xf32>
    %208 = vector.shape_cast %187 : vector<1x32xf32> to vector<1x1x32xf32>
    %209 = vector.broadcast %208 : vector<1x1x32xf32> to vector<2x8x32xf32>
    %210 = arith.mulf %207, %209 : vector<2x8x32xf32>
    %211 = vector.shape_cast %189 : vector<1x32xf32> to vector<1x1x32xf32>
    %212 = vector.broadcast %211 : vector<1x1x32xf32> to vector<2x8x32xf32>
    %213 = arith.addf %210, %212 : vector<2x8x32xf32>
    %c0_76 = arith.constant 0 : index
    %c0_77 = arith.constant 0 : index
    %c0_78 = arith.constant 0 : index
    %214 = vector.load %arg21[%c0_76, %c0_77, %c0_78] : memref<2x8x32xf32, #tpu.memory_space<vmem>>, vector<2x8x32xf32>
    tpu.vector_store %arg21[%c0_76, %c0_77, %c0_78], %213 {strides = array<i32>} : memref<2x8x32xf32, #tpu.memory_space<vmem>>, vector<2x8x32xf32>,
    %c1_i32 = arith.constant 1 : i32
    %215 = arith.cmpi eq, %arg1, %c1_i32 : i32
    %216 = arith.extui %215 : i1 to i32
    %c0_i32_79 = arith.constant 0 : i32
    %217 = arith.cmpi ne, %216, %c0_i32_79 : i32
    scf.if %217 {
      %c0_80 = arith.constant 0 : index
      %c0_81 = arith.constant 0 : index
      %c0_82 = arith.constant 0 : index
      %218 = vector.load %arg21[%c0_80, %c0_81, %c0_82] : memref<2x8x32xf32, #tpu.memory_space<vmem>>, vector<2x8x32xf32>
      %219 = vector.extract_strided_slice %218 {offsets = [0, 0, 0], sizes = [2, 1, 32], strides = [1, 1, 1]} : vector<2x8x32xf32> to vector<2x1x32xf32>
      %220 = vector.shape_cast %219 : vector<2x1x32xf32> to vector<2x32xf32>
      %221 = arith.truncf %220 : vector<2x32xf32> to vector<2x32xbf16>
      %c0_83 = arith.constant 0 : index
      %c0_84 = arith.constant 0 : index
      %222 = vector.load %arg6[%c0_83, %c0_84] : memref<32x128xbf16, #tpu.memory_space<vmem>>, vector<32x128xbf16>
      %cst_85 = arith.constant dense<0.000000e+00> : vector<2x128xf32>
      %223 = tpu.matmul %221, %222, %cst_85 {dimension_numbers = #tpu.dot_dimension_numbers<[1], [0], [0], [1], [0, 0, 1, 1], [], []>} : vector<2x32xbf16>, vector<32x128xbf16>, vector<2x128xf32> -> vector<2x128xf32>
      %c0_86 = arith.constant 0 : index
      %c0_87 = arith.constant 0 : index
      %224 = vector.load %arg7[%c0_86, %c0_87] : memref<1x128xf32, #tpu.memory_space<vmem>>, vector<1x128xf32>
      %225 = vector.broadcast %224 : vector<1x128xf32> to vector<2x128xf32>
      %226 = arith.addf %223, %225 : vector<2x128xf32>
      %c0_88 = arith.constant 0 : index
      %c0_89 = arith.constant 0 : index
      %227 = vector.load %arg20[%c0_88, %c0_89] : memref<2x128xf32, #tpu.memory_space<vmem>>, vector<2x128xf32>
      tpu.vector_store %arg20[%c0_88, %c0_89], %226 {strides = array<i32>} : memref<2x128xf32, #tpu.memory_space<vmem>>, vector<2x128xf32>,
    } else {
    }
    return
  }
  func.func @transform_0(%arg0: i32, %arg1: i32) -> (i32, i32, i32) {
    %c0_i32 = arith.constant 0 : i32
    %c0_i32_0 = arith.constant 0 : i32
    %c0_i32_1 = arith.constant 0 : i32
    return %arg0, %c0_i32, %c0_i32_0 : i32, i32, i32
  }
  func.func @transform_1(%arg0: i32, %arg1: i32) -> (i32, i32) {
    %c0_i32 = arith.constant 0 : i32
    %c0_i32_0 = arith.constant 0 : i32
    %c0_i32_1 = arith.constant 0 : i32
    return %c0_i32, %c0_i32_0 : i32, i32
  }
  func.func @transform_2(%arg0: i32, %arg1: i32) -> (i32, i32) {
    %c0_i32 = arith.constant 0 : i32
    %c0_i32_0 = arith.constant 0 : i32
    %c0_i32_1 = arith.constant 0 : i32
    return %c0_i32, %c0_i32_0 : i32, i32
  }
  func.func @transform_3(%arg0: i32, %arg1: i32) -> (i32, i32) {
    %c0_i32 = arith.constant 0 : i32
    %c0_i32_0 = arith.constant 0 : i32
    %c0_i32_1 = arith.constant 0 : i32
    return %c0_i32, %c0_i32_0 : i32, i32
  }
  func.func @transform_4(%arg0: i32, %arg1: i32) -> (i32, i32) {
    %c0_i32 = arith.constant 0 : i32
    %c0_i32_0 = arith.constant 0 : i32
    %c0_i32_1 = arith.constant 0 : i32
    return %c0_i32, %c0_i32_0 : i32, i32
  }
  func.func @transform_5(%arg0: i32, %arg1: i32) -> (i32, i32) {
    %c0_i32 = arith.constant 0 : i32
    %c0_i32_0 = arith.constant 0 : i32
    %c0_i32_1 = arith.constant 0 : i32
    return %c0_i32, %c0_i32_0 : i32, i32
  }
  func.func @transform_6(%arg0: i32, %arg1: i32) -> (i32, i32, i32) {
    %c0_i32 = arith.constant 0 : i32
    %c0_i32_0 = arith.constant 0 : i32
    %c0_i32_1 = arith.constant 0 : i32
    return %arg1, %c0_i32, %c0_i32_0 : i32, i32, i32
  }
  func.func @transform_7(%arg0: i32, %arg1: i32) -> (i32, i32, i32) {
    %c0_i32 = arith.constant 0 : i32
    %c0_i32_0 = arith.constant 0 : i32
    %c0_i32_1 = arith.constant 0 : i32
    return %arg1, %c0_i32, %c0_i32_0 : i32, i32, i32
  }
  func.func @transform_8(%arg0: i32, %arg1: i32) -> (i32, i32, i32) {
    %c0_i32 = arith.constant 0 : i32
    %c0_i32_0 = arith.constant 0 : i32
    %c0_i32_1 = arith.constant 0 : i32
    return %arg1, %c0_i32, %c0_i32_0 : i32, i32, i32
  }
  func.func @transform_9(%arg0: i32, %arg1: i32) -> (i32, i32, i32) {
    %c0_i32 = arith.constant 0 : i32
    %c0_i32_0 = arith.constant 0 : i32
    %c0_i32_1 = arith.constant 0 : i32
    return %arg1, %c0_i32, %c0_i32_0 : i32, i32, i32
  }
  func.func @transform_10(%arg0: i32, %arg1: i32) -> (i32, i32, i32) {
    %c0_i32 = arith.constant 0 : i32
    %c0_i32_0 = arith.constant 0 : i32
    %c0_i32_1 = arith.constant 0 : i32
    return %arg1, %c0_i32, %c0_i32_0 : i32, i32, i32
  }
  func.func @transform_11(%arg0: i32, %arg1: i32) -> (i32, i32, i32) {
    %c0_i32 = arith.constant 0 : i32
    %c0_i32_0 = arith.constant 0 : i32
    %c0_i32_1 = arith.constant 0 : i32
    return %arg1, %c0_i32, %c0_i32_0 : i32, i32, i32
  }
  func.func @transform_12(%arg0: i32, %arg1: i32) -> (i32, i32, i32) {
    %c0_i32 = arith.constant 0 : i32
    %c0_i32_0 = arith.constant 0 : i32
    %c0_i32_1 = arith.constant 0 : i32
    return %arg1, %c0_i32, %c0_i32_0 : i32, i32, i32
  }
  func.func @transform_13(%arg0: i32, %arg1: i32) -> (i32, i32, i32) {
    %c0_i32 = arith.constant 0 : i32
    %c0_i32_0 = arith.constant 0 : i32
    %c0_i32_1 = arith.constant 0 : i32
    return %arg1, %c0_i32, %c0_i32_0 : i32, i32, i32
  }
  func.func @transform_14(%arg0: i32, %arg1: i32) -> (i32, i32, i32) {
    %c0_i32 = arith.constant 0 : i32
    %c0_i32_0 = arith.constant 0 : i32
    %c0_i32_1 = arith.constant 0 : i32
    return %arg1, %c0_i32, %c0_i32_0 : i32, i32, i32
  }
  func.func @transform_15(%arg0: i32, %arg1: i32) -> (i32, i32, i32) {
    %c0_i32 = arith.constant 0 : i32
    %c0_i32_0 = arith.constant 0 : i32
    %c0_i32_1 = arith.constant 0 : i32
    return %arg1, %c0_i32, %c0_i32_0 : i32, i32, i32
  }
  func.func @transform_16(%arg0: i32, %arg1: i32) -> (i32, i32, i32) {
    %c0_i32 = arith.constant 0 : i32
    %c0_i32_0 = arith.constant 0 : i32
    %c0_i32_1 = arith.constant 0 : i32
    return %arg1, %c0_i32, %c0_i32_0 : i32, i32, i32
  }
  func.func @transform_17(%arg0: i32, %arg1: i32) -> (i32, i32, i32) {
    %c0_i32 = arith.constant 0 : i32
    %c0_i32_0 = arith.constant 0 : i32
    %c0_i32_1 = arith.constant 0 : i32
    return %arg1, %c0_i32, %c0_i32_0 : i32, i32, i32
  }
  func.func @transform_18(%arg0: i32, %arg1: i32) -> (i32, i32) {
    %c0_i32 = arith.constant 0 : i32
    %c0_i32_0 = arith.constant 0 : i32
    return %arg0, %c0_i32 : i32, i32
  }
}

</mosaic_0001>

<llo_original>
// kernel: _lambda_.2
$region0: #{_lambda_.2}
  #allocation0 [shape = 'u32[]', space=smem, size = 0x4, offset = 0x4, fixed_abs, tag = 'smem constant byte address 0x4 - core index']
  #allocation1 [shape = 'u32[72,128]{1,0:T(1,128)}', space=vmem, size = 0x9000, scoped, tag = 'internal scratch']
  #allocation2 [shape = 'f32[2,8,32]{2,1,0:T(8,128)}', space=vmem, size = 0x2000, scoped, tag = 'scratch operand']
  %s0 = inlined_call_operand.vmem [shape: f32[2,8,4], index: 0, kind: input, shape index: {}]
  %s1 = inlined_call_operand.vmem [shape: bf16[4,32], index: 1, kind: input, shape index: {}]
  %s2 = inlined_call_operand.vmem [shape: f32[1,32], index: 2, kind: input, shape index: {}]
  %s3 = inlined_call_operand.vmem [shape: bf16[32,128], index: 3, kind: input, shape index: {}]
  %s4 = inlined_call_operand.vmem [shape: f32[1,128], index: 4, kind: input, shape index: {}]
  %s5 = inlined_call_operand.vmem [shape: bf16[2,32,96], index: 5, kind: input, shape index: {}]
  %s6 = inlined_call_operand.vmem [shape: f32[2,1,96], index: 6, kind: input, shape index: {}]
  %s7 = inlined_call_operand.vmem [shape: bf16[2,32,32], index: 7, kind: input, shape index: {}]
  %s8 = inlined_call_operand.vmem [shape: f32[2,1,32], index: 8, kind: input, shape index: {}, may-alias: {8,10,14,16}]
  %s9 = inlined_call_operand.vmem [shape: f32[2,1,32], index: 9, kind: input, shape index: {}, may-alias: {9,15}]
  %s10 = inlined_call_operand.vmem [shape: f32[2,1,32], index: 10, kind: input, shape index: {}, may-alias: {8,10,14,16}]
  %s11 = inlined_call_operand.vmem [shape: bf16[2,32,128], index: 11, kind: input, shape index: {}]
  %s12 = inlined_call_operand.vmem [shape: f32[2,1,128], index: 12, kind: input, shape index: {}]
  %s13 = inlined_call_operand.vmem [shape: bf16[2,128,32], index: 13, kind: input, shape index: {}]
  %s14 = inlined_call_operand.vmem [shape: f32[2,1,32], index: 14, kind: input, shape index: {}, may-alias: {8,10,14,16}]
  %s15 = inlined_call_operand.vmem [shape: f32[2,1,32], index: 15, kind: input, shape index: {}, may-alias: {9,15}]
  %s16 = inlined_call_operand.vmem [shape: f32[2,1,32], index: 16, kind: input, shape index: {}, may-alias: {8,10,14,16}]
  %s17 = inlined_call_operand.vmem [shape: f32[2,128], index: 17, kind: output, shape index: {}]
  %s18 = sld [smem:[#allocation0]]
  $region109: #{_lambda_.2} parent=0
    _
  %s20 = ssub.s32 1, %s18
  %s21 = scalar_select 0, %s20, %s18
  loop: start=0, step=1, limit=4
  $region2: #{_lambda_.2} parent=0 // loop_pre_header
    _
  $region3: #{_lambda_.2} parent=0 // loop_header
    %s23 = sphi 0, %s27
    %p24 = scmp.ge.s32.totalorder %s23, 4
    %s30 = sphi 0, %s42
    %s31 = sphi 0, %s38
    %s32 = sphi 0, %s30
    %s33 = sphi 0, %s31
    %s34 = sphi 0, %s32
    %s35 = sphi 0, %s33
    %s45 = sphi 0, %s47
    %s48 = sphi 0, %s45
    %s49 = sphi 0, %s48
    %s65 = sphi 0, %s49
    %s69 = sphi 0, %s69
    %s71 = sphi 0, %s69
    %s72 = sphi 0, %s71
    %s86 = sphi 0, %s72
    %s90 = sphi 0, %s90
    %s92 = sphi 0, %s90
    %s93 = sphi 0, %s92
    %s107 = sphi 0, %s93
    %s111 = sphi 0, %s111
    %s113 = sphi 0, %s111
    %s114 = sphi 0, %s113
    %s128 = sphi 0, %s114
    %s132 = sphi 0, %s132
    %s134 = sphi 0, %s132
    %s135 = sphi 0, %s134
    %s149 = sphi 0, %s135
    %s155 = sphi 0, %s157
    %s158 = sphi 0, %s155
    %s159 = sphi 0, %s158
    %s175 = sphi 0, %s159
    %s181 = sphi 0, %s183
    %s184 = sphi 0, %s181
    %s185 = sphi 0, %s184
    %s201 = sphi 0, %s185
    %s207 = sphi 0, %s209
    %s210 = sphi 0, %s207
    %s211 = sphi 0, %s210
    %s227 = sphi 0, %s211
    %s233 = sphi 0, %s235
    %s236 = sphi 0, %s233
    %s237 = sphi 0, %s236
    %s253 = sphi 0, %s237
    %s259 = sphi 0, %s261
    %s262 = sphi 0, %s259
    %s263 = sphi 0, %s262
    %s279 = sphi 0, %s263
    %s285 = sphi 0, %s287
    %s288 = sphi 0, %s285
    %s289 = sphi 0, %s288
    %s305 = sphi 0, %s289
    %s311 = sphi 0, %s313
    %s314 = sphi 0, %s311
    %s315 = sphi 0, %s314
    %s331 = sphi 0, %s315
    %s337 = sphi 0, %s339
    %s340 = sphi 0, %s337
    %s341 = sphi 0, %s340
    %s357 = sphi 0, %s341
    %s363 = sphi 0, %s365
    %s366 = sphi 0, %s363
    %s367 = sphi 0, %s366
    %s383 = sphi 0, %s367
    %s389 = sphi 0, %s391
    %s392 = sphi 0, %s389
    %s393 = sphi 0, %s392
    %s409 = sphi 0, %s393
    %s415 = sphi 0, %s417
    %s418 = sphi 0, %s415
    %s419 = sphi 0, %s418
    %s435 = sphi 0, %s419
    %s441 = sphi 0, %s443
    %s444 = sphi 0, %s441
    %s445 = sphi 0, %s444
    %s461 = sphi 0, %s445
    %s467 = sphi 0, %s469
    %s470 = sphi 0, %s467
    %s471 = sphi 0, %s470
    %s487 = sphi 0, %s471
  $region4: #{_lambda_.2} parent=0 // loop_header_branch
    %26 = sbr.rel (%p24) target = $region8
  $region5: #{_lambda_.2} parent=0 // loop_body
    %s28 = ssub.s32 %s23, 1
    %s29 = ssub.s32 %s23, 2
    %s36 = sadd.s32 1, %s31
    %p37 = scmp.ge.s32.totalorder %s36, 2
    %s38 = scalar_select %p37, 0, %s36
    %s39 = sadd.s32 1, %s30
    %s40 = scalar_select %p37, %s39, %s30
    %p41 = scmp.ge.s32.totalorder %s40, 1
    %s42 = scalar_select %p41, 0, %s40
    %s43 = ssub.s32 %s30, %s42
    %p44 = scmp.eq.s32.totalorder %s43, 0
    %s46 = sadd.s32 %s45, 1
    %s47 = scalar_select %p44, %s45, %s46
    %p50 = pneg %p44
    %p51 = scmp.eq.s32.totalorder %s23, 1
    %p52 = por %p50, %p51
    %p53 = scmp.ne.s32.totalorder %s45, %s48
    %p54 = scmp.eq.s32.totalorder %s23, 0
    %p55 = por %p53, %p54
    %p56 = scmp.ne.s32.totalorder %s45, %s48
    %p57 = scmp.eq.s32.totalorder %s28, 1
    %p58 = por %p56, %p57
    %p59 = scmp.ne.s32.totalorder %s48, %s49
    %p60 = scmp.eq.s32.totalorder %s28, 0
    %p61 = por %p59, %p60
    %p62 = scmp.ne.s32.totalorder %s48, %s49
    %p63 = scmp.eq.s32.totalorder %s29, 1
    %p64 = por %p62, %p63
    %p66 = scmp.ne.s32.totalorder %s49, %s65
    %p67 = scmp.eq.s32.totalorder %s29, 0
    %p68 = por %p66, %p67
    %s70 = sadd.s32 %s69, 1
    %p73 = scmp.eq.s32.totalorder %s23, 1
    %p74 = scmp.ne.s32.totalorder %s69, %s71
    %p75 = scmp.eq.s32.totalorder %s23, 0
    %p76 = por %p74, %p75
    %p77 = scmp.ne.s32.totalorder %s69, %s71
    %p78 = scmp.eq.s32.totalorder %s28, 1
    %p79 = por %p77, %p78
    %p80 = scmp.ne.s32.totalorder %s71, %s72
    %p81 = scmp.eq.s32.totalorder %s28, 0
    %p82 = por %p80, %p81
    %p83 = scmp.ne.s32.totalorder %s71, %s72
    %p84 = scmp.eq.s32.totalorder %s29, 1
    %p85 = por %p83, %p84
    %p87 = scmp.ne.s32.totalorder %s72, %s86
    %p88 = scmp.eq.s32.totalorder %s29, 0
    %p89 = por %p87, %p88
    %s91 = sadd.s32 %s90, 1
    %p94 = scmp.eq.s32.totalorder %s23, 1
    %p95 = scmp.ne.s32.totalorder %s90, %s92
    %p96 = scmp.eq.s32.totalorder %s23, 0
    %p97 = por %p95, %p96
    %p98 = scmp.ne.s32.totalorder %s90, %s92
    %p99 = scmp.eq.s32.totalorder %s28, 1
    %p100 = por %p98, %p99
    %p101 = scmp.ne.s32.totalorder %s92, %s93
    %p102 = scmp.eq.s32.totalorder %s28, 0
    %p103 = por %p101, %p102
    %p104 = scmp.ne.s32.totalorder %s92, %s93
    %p105 = scmp.eq.s32.totalorder %s29, 1
    %p106 = por %p104, %p105
    %p108 = scmp.ne.s32.totalorder %s93, %s107
    %p109 = scmp.eq.s32.totalorder %s29, 0
    %p110 = por %p108, %p109
    %s112 = sadd.s32 %s111, 1
    %p115 = scmp.eq.s32.totalorder %s23, 1
    %p116 = scmp.ne.s32.totalorder %s111, %s113
    %p117 = scmp.eq.s32.totalorder %s23, 0
    %p118 = por %p116, %p117
    %p119 = scmp.ne.s32.totalorder %s111, %s113
    %p120 = scmp.eq.s32.totalorder %s28, 1
    %p121 = por %p119, %p120
    %p122 = scmp.ne.s32.totalorder %s113, %s114
    %p123 = scmp.eq.s32.totalorder %s28, 0
    %p124 = por %p122, %p123
    %p125 = scmp.ne.s32.totalorder %s113, %s114
    %p126 = scmp.eq.s32.totalorder %s29, 1
    %p127 = por %p125, %p126
    %p129 = scmp.ne.s32.totalorder %s114, %s128
    %p130 = scmp.eq.s32.totalorder %s29, 0
    %p131 = por %p129, %p130
    %s133 = sadd.s32 %s132, 1
    %p136 = scmp.eq.s32.totalorder %s23, 1
    %p137 = scmp.ne.s32.totalorder %s132, %s134
    %p138 = scmp.eq.s32.totalorder %s23, 0
    %p139 = por %p137, %p138
    %p140 = scmp.ne.s32.totalorder %s132, %s134
    %p141 = scmp.eq.s32.totalorder %s28, 1
    %p142 = por %p140, %p141
    %p143 = scmp.ne.s32.totalorder %s134, %s135
    %p144 = scmp.eq.s32.totalorder %s28, 0
    %p145 = por %p143, %p144
    %p146 = scmp.ne.s32.totalorder %s134, %s135
    %p147 = scmp.eq.s32.totalorder %s29, 1
    %p148 = por %p146, %p147
    %p150 = scmp.ne.s32.totalorder %s135, %s149
    %p151 = scmp.eq.s32.totalorder %s29, 0
    %p152 = por %p150, %p151
    %s153 = ssub.s32 %s31, %s38
    %p154 = scmp.eq.s32.totalorder %s153, 0
    %s156 = sadd.s32 %s155, 1
    %s157 = scalar_select %p154, %s155, %s156
    %p160 = pneg %p154
    %p161 = scmp.eq.s32.totalorder %s23, 1
    %p162 = por %p160, %p161
    %p163 = scmp.ne.s32.totalorder %s155, %s158
    %p164 = scmp.eq.s32.totalorder %s23, 0
    %p165 = por %p163, %p164
    %p166 = scmp.ne.s32.totalorder %s155, %s158
    %p167 = scmp.eq.s32.totalorder %s28, 1
    %p168 = por %p166, %p167
    %p169 = scmp.ne.s32.totalorder %s158, %s159
    %p170 = scmp.eq.s32.totalorder %s28, 0
    %p171 = por %p169, %p170
    %p172 = scmp.ne.s32.totalorder %s158, %s159
    %p173 = scmp.eq.s32.totalorder %s29, 1
    %p174 = por %p172, %p173
    %p176 = scmp.ne.s32.totalorder %s159, %s175
    %p177 = scmp.eq.s32.totalorder %s29, 0
    %p178 = por %p176, %p177
    %s179 = ssub.s32 %s31, %s38
    %p180 = scmp.eq.s32.totalorder %s179, 0
    %s182 = sadd.s32 %s181, 1
    %s183 = scalar_select %p180, %s181, %s182
    %p186 = pneg %p180
    %p187 = scmp.eq.s32.totalorder %s23, 1
    %p188 = por %p186, %p187
    %p189 = scmp.ne.s32.totalorder %s181, %s184
    %p190 = scmp.eq.s32.totalorder %s23, 0
    %p191 = por %p189, %p190
    %p192 = scmp.ne.s32.totalorder %s181, %s184
    %p193 = scmp.eq.s32.totalorder %s28, 1
    %p194 = por %p192, %p193
    %p195 = scmp.ne.s32.totalorder %s184, %s185
    %p196 = scmp.eq.s32.totalorder %s28, 0
    %p197 = por %p195, %p196
    %p198 = scmp.ne.s32.totalorder %s184, %s185
    %p199 = scmp.eq.s32.totalorder %s29, 1
    %p200 = por %p198, %p199
    %p202 = scmp.ne.s32.totalorder %s185, %s201
    %p203 = scmp.eq.s32.totalorder %s29, 0
    %p204 = por %p202, %p203
    %s205 = ssub.s32 %s31, %s38
    %p206 = scmp.eq.s32.totalorder %s205, 0
    %s208 = sadd.s32 %s207, 1
    %s209 = scalar_select %p206, %s207, %s208
    %p212 = pneg %p206
    %p213 = scmp.eq.s32.totalorder %s23, 1
    %p214 = por %p212, %p213
    %p215 = scmp.ne.s32.totalorder %s207, %s210
    %p216 = scmp.eq.s32.totalorder %s23, 0
    %p217 = por %p215, %p216
    %p218 = scmp.ne.s32.totalorder %s207, %s210
    %p219 = scmp.eq.s32.totalorder %s28, 1
    %p220 = por %p218, %p219
    %p221 = scmp.ne.s32.totalorder %s210, %s211
    %p222 = scmp.eq.s32.totalorder %s28, 0
    %p223 = por %p221, %p222
    %p224 = scmp.ne.s32.totalorder %s210, %s211
    %p225 = scmp.eq.s32.totalorder %s29, 1
    %p226 = por %p224, %p225
    %p228 = scmp.ne.s32.totalorder %s211, %s227
    %p229 = scmp.eq.s32.totalorder %s29, 0
    %p230 = por %p228, %p229
    %s231 = ssub.s32 %s31, %s38
    %p232 = scmp.eq.s32.totalorder %s231, 0
    %s234 = sadd.s32 %s233, 1
    %s235 = scalar_select %p232, %s233, %s234
    %p238 = pneg %p232
    %p239 = scmp.eq.s32.totalorder %s23, 1
    %p240 = por %p238, %p239
    %p241 = scmp.ne.s32.totalorder %s233, %s236
    %p242 = scmp.eq.s32.totalorder %s23, 0
    %p243 = por %p241, %p242
    %p244 = scmp.ne.s32.totalorder %s233, %s236
    %p245 = scmp.eq.s32.totalorder %s28, 1
    %p246 = por %p244, %p245
    %p247 = scmp.ne.s32.totalorder %s236, %s237
    %p248 = scmp.eq.s32.totalorder %s28, 0
    %p249 = por %p247, %p248
    %p250 = scmp.ne.s32.totalorder %s236, %s237
    %p251 = scmp.eq.s32.totalorder %s29, 1
    %p252 = por %p250, %p251
    %p254 = scmp.ne.s32.totalorder %s237, %s253
    %p255 = scmp.eq.s32.totalorder %s29, 0
    %p256 = por %p254, %p255
    %s257 = ssub.s32 %s31, %s38
    %p258 = scmp.eq.s32.totalorder %s257, 0
    %s260 = sadd.s32 %s259, 1
    %s261 = scalar_select %p258, %s259, %s260
    %p264 = pneg %p258
    %p265 = scmp.eq.s32.totalorder %s23, 1
    %p266 = por %p264, %p265
    %p267 = scmp.ne.s32.totalorder %s259, %s262
    %p268 = scmp.eq.s32.totalorder %s23, 0
    %p269 = por %p267, %p268
    %p270 = scmp.ne.s32.totalorder %s259, %s262
    %p271 = scmp.eq.s32.totalorder %s28, 1
    %p272 = por %p270, %p271
    %p273 = scmp.ne.s32.totalorder %s262, %s263
    %p274 = scmp.eq.s32.totalorder %s28, 0
    %p275 = por %p273, %p274
    %p276 = scmp.ne.s32.totalorder %s262, %s263
    %p277 = scmp.eq.s32.totalorder %s29, 1
    %p278 = por %p276, %p277
    %p280 = scmp.ne.s32.totalorder %s263, %s279
    %p281 = scmp.eq.s32.totalorder %s29, 0
    %p282 = por %p280, %p281
    %s283 = ssub.s32 %s31, %s38
    %p284 = scmp.eq.s32.totalorder %s283, 0
    %s286 = sadd.s32 %s285, 1
    %s287 = scalar_select %p284, %s285, %s286
    %p290 = pneg %p284
    %p291 = scmp.eq.s32.totalorder %s23, 1
    %p292 = por %p290, %p291
    %p293 = scmp.ne.s32.totalorder %s285, %s288
    %p294 = scmp.eq.s32.totalorder %s23, 0
    %p295 = por %p293, %p294
    %p296 = scmp.ne.s32.totalorder %s285, %s288
    %p297 = scmp.eq.s32.totalorder %s28, 1
    %p298 = por %p296, %p297
    %p299 = scmp.ne.s32.totalorder %s288, %s289
    %p300 = scmp.eq.s32.totalorder %s28, 0
    %p301 = por %p299, %p300
    %p302 = scmp.ne.s32.totalorder %s288, %s289
    %p303 = scmp.eq.s32.totalorder %s29, 1
    %p304 = por %p302, %p303
    %p306 = scmp.ne.s32.totalorder %s289, %s305
    %p307 = scmp.eq.s32.totalorder %s29, 0
    %p308 = por %p306, %p307
    %s309 = ssub.s32 %s31, %s38
    %p310 = scmp.eq.s32.totalorder %s309, 0
    %s312 = sadd.s32 %s311, 1
    %s313 = scalar_select %p310, %s311, %s312
    %p316 = pneg %p310
    %p317 = scmp.eq.s32.totalorder %s23, 1
    %p318 = por %p316, %p317
    %p319 = scmp.ne.s32.totalorder %s311, %s314
    %p320 = scmp.eq.s32.totalorder %s23, 0
    %p321 = por %p319, %p320
    %p322 = scmp.ne.s32.totalorder %s311, %s314
    %p323 = scmp.eq.s32.totalorder %s28, 1
    %p324 = por %p322, %p323
    %p325 = scmp.ne.s32.totalorder %s314, %s315
    %p326 = scmp.eq.s32.totalorder %s28, 0
    %p327 = por %p325, %p326
    %p328 = scmp.ne.s32.totalorder %s314, %s315
    %p329 = scmp.eq.s32.totalorder %s29, 1
    %p330 = por %p328, %p329
    %p332 = scmp.ne.s32.totalorder %s315, %s331
    %p333 = scmp.eq.s32.totalorder %s29, 0
    %p334 = por %p332, %p333
    %s335 = ssub.s32 %s31, %s38
    %p336 = scmp.eq.s32.totalorder %s335, 0
    %s338 = sadd.s32 %s337, 1
    %s339 = scalar_select %p336, %s337, %s338
    %p342 = pneg %p336
    %p343 = scmp.eq.s32.totalorder %s23, 1
    %p344 = por %p342, %p343
    %p345 = scmp.ne.s32.totalorder %s337, %s340
    %p346 = scmp.eq.s32.totalorder %s23, 0
    %p347 = por %p345, %p346
    %p348 = scmp.ne.s32.totalorder %s337, %s340
    %p349 = scmp.eq.s32.totalorder %s28, 1
    %p350 = por %p348, %p349
    %p351 = scmp.ne.s32.totalorder %s340, %s341
    %p352 = scmp.eq.s32.totalorder %s28, 0
    %p353 = por %p351, %p352
    %p354 = scmp.ne.s32.totalorder %s340, %s341
    %p355 = scmp.eq.s32.totalorder %s29, 1
    %p356 = por %p354, %p355
    %p358 = scmp.ne.s32.totalorder %s341, %s357
    %p359 = scmp.eq.s32.totalorder %s29, 0
    %p360 = por %p358, %p359
    %s361 = ssub.s32 %s31, %s38
    %p362 = scmp.eq.s32.totalorder %s361, 0
    %s364 = sadd.s32 %s363, 1
    %s365 = scalar_select %p362, %s363, %s364
    %p368 = pneg %p362
    %p369 = scmp.eq.s32.totalorder %s23, 1
    %p370 = por %p368, %p369
    %p371 = scmp.ne.s32.totalorder %s363, %s366
    %p372 = scmp.eq.s32.totalorder %s23, 0
    %p373 = por %p371, %p372
    %p374 = scmp.ne.s32.totalorder %s363, %s366
    %p375 = scmp.eq.s32.totalorder %s28, 1
    %p376 = por %p374, %p375
    %p377 = scmp.ne.s32.totalorder %s366, %s367
    %p378 = scmp.eq.s32.totalorder %s28, 0
    %p379 = por %p377, %p378
    %p380 = scmp.ne.s32.totalorder %s366, %s367
    %p381 = scmp.eq.s32.totalorder %s29, 1
    %p382 = por %p380, %p381
    %p384 = scmp.ne.s32.totalorder %s367, %s383
    %p385 = scmp.eq.s32.totalorder %s29, 0
    %p386 = por %p384, %p385
    %s387 = ssub.s32 %s31, %s38
    %p388 = scmp.eq.s32.totalorder %s387, 0
    %s390 = sadd.s32 %s389, 1
    %s391 = scalar_select %p388, %s389, %s390
    %p394 = pneg %p388
    %p395 = scmp.eq.s32.totalorder %s23, 1
    %p396 = por %p394, %p395
    %p397 = scmp.ne.s32.totalorder %s389, %s392
    %p398 = scmp.eq.s32.totalorder %s23, 0
    %p399 = por %p397, %p398
    %p400 = scmp.ne.s32.totalorder %s389, %s392
    %p401 = scmp.eq.s32.totalorder %s28, 1
    %p402 = por %p400, %p401
    %p403 = scmp.ne.s32.totalorder %s392, %s393
    %p404 = scmp.eq.s32.totalorder %s28, 0
    %p405 = por %p403, %p404
    %p406 = scmp.ne.s32.totalorder %s392, %s393
    %p407 = scmp.eq.s32.totalorder %s29, 1
    %p408 = por %p406, %p407
    %p410 = scmp.ne.s32.totalorder %s393, %s409
    %p411 = scmp.eq.s32.totalorder %s29, 0
    %p412 = por %p410, %p411
    %s413 = ssub.s32 %s31, %s38
    %p414 = scmp.eq.s32.totalorder %s413, 0
    %s416 = sadd.s32 %s415, 1
    %s417 = scalar_select %p414, %s415, %s416
    %p420 = pneg %p414
    %p421 = scmp.eq.s32.totalorder %s23, 1
    %p422 = por %p420, %p421
    %p423 = scmp.ne.s32.totalorder %s415, %s418
    %p424 = scmp.eq.s32.totalorder %s23, 0
    %p425 = por %p423, %p424
    %p426 = scmp.ne.s32.totalorder %s415, %s418
    %p427 = scmp.eq.s32.totalorder %s28, 1
    %p428 = por %p426, %p427
    %p429 = scmp.ne.s32.totalorder %s418, %s419
    %p430 = scmp.eq.s32.totalorder %s28, 0
    %p431 = por %p429, %p430
    %p432 = scmp.ne.s32.totalorder %s418, %s419
    %p433 = scmp.eq.s32.totalorder %s29, 1
    %p434 = por %p432, %p433
    %p436 = scmp.ne.s32.totalorder %s419, %s435
    %p437 = scmp.eq.s32.totalorder %s29, 0
    %p438 = por %p436, %p437
    %s439 = ssub.s32 %s31, %s38
    %p440 = scmp.eq.s32.totalorder %s439, 0
    %s442 = sadd.s32 %s441, 1
    %s443 = scalar_select %p440, %s441, %s442
    %p446 = pneg %p440
    %p447 = scmp.eq.s32.totalorder %s23, 1
    %p448 = por %p446, %p447
    %p449 = scmp.ne.s32.totalorder %s441, %s444
    %p450 = scmp.eq.s32.totalorder %s23, 0
    %p451 = por %p449, %p450
    %p452 = scmp.ne.s32.totalorder %s441, %s444
    %p453 = scmp.eq.s32.totalorder %s28, 1
    %p454 = por %p452, %p453
    %p455 = scmp.ne.s32.totalorder %s444, %s445
    %p456 = scmp.eq.s32.totalorder %s28, 0
    %p457 = por %p455, %p456
    %p458 = scmp.ne.s32.totalorder %s444, %s445
    %p459 = scmp.eq.s32.totalorder %s29, 1
    %p460 = por %p458, %p459
    %p462 = scmp.ne.s32.totalorder %s445, %s461
    %p463 = scmp.eq.s32.totalorder %s29, 0
    %p464 = por %p462, %p463
    %s465 = ssub.s32 %s30, %s42
    %p466 = scmp.eq.s32.totalorder %s465, 0
    %s468 = sadd.s32 %s467, 1
    %s469 = scalar_select %p466, %s467, %s468
    %p472 = pneg %p466
    %p473 = scmp.eq.s32.totalorder %s23, 1
    %p474 = por %p472, %p473
    %p475 = scmp.ne.s32.totalorder %s467, %s470
    %p476 = scmp.eq.s32.totalorder %s23, 0
    %p477 = por %p475, %p476
    %p478 = scmp.ne.s32.totalorder %s467, %s470
    %p479 = scmp.eq.s32.totalorder %s28, 1
    %p480 = por %p478, %p479
    %p481 = scmp.ne.s32.totalorder %s470, %s471
    %p482 = scmp.eq.s32.totalorder %s28, 0
    %p483 = por %p481, %p482
    %p484 = scmp.ne.s32.totalorder %s470, %s471
    %p485 = scmp.eq.s32.totalorder %s29, 1
    %p486 = por %p484, %p485
    %p488 = scmp.ne.s32.totalorder %s471, %s487
    %p489 = scmp.eq.s32.totalorder %s29, 0
    %p490 = por %p488, %p489
    %p491 = scmp.le.s32.totalorder 1, %s23
    %p492 = scmp.lt.s32.totalorder %s23, 3
    %p493 = pnand %p491, %p492
    %p494 = pneg %p493
    // Predicated region
    $region9: #{_lambda_.2} parent=5 // pred_check
      _
    $region10: #{_lambda_.2} parent=5 // pred_check_branch
      %496 = sbr.rel (%p493) target = $region12
    $region11: #{_lambda_.2} parent=5 // pred_region
      %s497 = ssub.s32 %s23, 1
      // Predicated region
      $region13: #{_lambda_.2} parent=11 // pred_check
        %p498 = pneg %p61
      $region14: #{_lambda_.2} parent=11 // pred_check_branch
        %500 = sbr.rel (%p498) target = $region16
      $region15: #{_lambda_.2} parent=11 // pred_region
        %s501 = smul.u32 2, %s32
        %p502 = scmp.lt.s32.totalorder %s501, 1
        %s503 = scalar_select %p502, %s501, 1
        %s504 = smul.addr %s503, 8
        %s505 = scalar_lea.vmem %s0, %s504
        %s506 = smul.u32 2, %s32
      $region16: #{_lambda_.2} parent=11 // pred_fallthru
        _
      // Predicated region
      $region17: #{_lambda_.2} parent=11 // pred_check
        %p507 = pneg %p82
      $region18: #{_lambda_.2} parent=11 // pred_check_branch
        %509 = sbr.rel (%p507) target = $region20
      $region19: #{_lambda_.2} parent=11 // pred_region
        _
      $region20: #{_lambda_.2} parent=11 // pred_fallthru
        _
      // Predicated region
      $region21: #{_lambda_.2} parent=11 // pred_check
        %p510 = pneg %p103
      $region22: #{_lambda_.2} parent=11 // pred_check_branch
        %512 = sbr.rel (%p510) target = $region24
      $region23: #{_lambda_.2} parent=11 // pred_region
        _
      $region24: #{_lambda_.2} parent=11 // pred_fallthru
        _
      // Predicated region
      $region25: #{_lambda_.2} parent=11 // pred_check
        %p513 = pneg %p124
      $region26: #{_lambda_.2} parent=11 // pred_check_branch
        %515 = sbr.rel (%p513) target = $region28
      $region27: #{_lambda_.2} parent=11 // pred_region
        _
      $region28: #{_lambda_.2} parent=11 // pred_fallthru
        _
      // Predicated region
      $region29: #{_lambda_.2} parent=11 // pred_check
        %p516 = pneg %p145
      $region30: #{_lambda_.2} parent=11 // pred_check_branch
        %518 = sbr.rel (%p516) target = $region32
      $region31: #{_lambda_.2} parent=11 // pred_region
        _
      $region32: #{_lambda_.2} parent=11 // pred_fallthru
        _
    $region12: #{_lambda_.2} parent=5 // pred_fallthru
      _
    %p519 = scmp.lt.s32.totalorder %s23, 2
    // Predicated region
    $region33: #{_lambda_.2} parent=5 // pred_check
      %p520 = pneg %p519
    $region34: #{_lambda_.2} parent=5 // pred_check_branch
      %522 = sbr.rel (%p520) target = $region36
    $region35: #{_lambda_.2} parent=5 // pred_region
      // Predicated region
      $region37: #{_lambda_.2} parent=35 // pred_check
        %p523 = pneg %p165
      $region38: #{_lambda_.2} parent=35 // pred_check_branch
        %525 = sbr.rel (%p523) target = $region40
      $region39: #{_lambda_.2} parent=35 // pred_region
        %p526 = scmp.lt.s32.totalorder %s31, 1
        %s527 = scalar_select %p526, %s31, 1
        %s528 = smul.addr %s527, 4
        %s529 = smul.addr %s528, 4
        %s530 = scalar_lea.vmem %s5, %s529
      $region40: #{_lambda_.2} parent=35 // pred_fallthru
        _
      // Predicated region
      $region41: #{_lambda_.2} parent=35 // pred_check
        %p531 = pneg %p191
      $region42: #{_lambda_.2} parent=35 // pred_check_branch
        %533 = sbr.rel (%p531) target = $region44
      $region43: #{_lambda_.2} parent=35 // pred_region
        %p534 = scmp.lt.s32.totalorder %s31, 1
        %s535 = scalar_select %p534, %s31, 1
        %s536 = scalar_lea.vmem %s6, %s535
      $region44: #{_lambda_.2} parent=35 // pred_fallthru
        _
      // Predicated region
      $region45: #{_lambda_.2} parent=35 // pred_check
        %p537 = pneg %p217
      $region46: #{_lambda_.2} parent=35 // pred_check_branch
        %539 = sbr.rel (%p537) target = $region48
      $region47: #{_lambda_.2} parent=35 // pred_region
        %p540 = scmp.lt.s32.totalorder %s31, 1
        %s541 = scalar_select %p540, %s31, 1
        %s542 = smul.addr %s541, 4
        %s543 = smul.addr %s542, 4
        %s544 = scalar_lea.vmem %s7, %s543
      $region48: #{_lambda_.2} parent=35 // pred_fallthru
        _
      // Predicated region
      $region49: #{_lambda_.2} parent=35 // pred_check
        %p545 = pneg %p243
      $region50: #{_lambda_.2} parent=35 // pred_check_branch
        %547 = sbr.rel (%p545) target = $region52
      $region51: #{_lambda_.2} parent=35 // pred_region
        %p548 = scmp.lt.s32.totalorder %s31, 1
        %s549 = scalar_select %p548, %s31, 1
        %s550 = scalar_lea.vmem %s8, %s549
      $region52: #{_lambda_.2} parent=35 // pred_fallthru
        _
      // Predicated region
      $region53: #{_lambda_.2} parent=35 // pred_check
        %p551 = pneg %p269
      $region54: #{_lambda_.2} parent=35 // pred_check_branch
        %553 = sbr.rel (%p551) target = $region56
      $region55: #{_lambda_.2} parent=35 // pred_region
        %p554 = scmp.lt.s32.totalorder %s31, 1
        %s555 = scalar_select %p554, %s31, 1
        %s556 = scalar_lea.vmem %s9, %s555
      $region56: #{_lambda_.2} parent=35 // pred_fallthru
        _
      // Predicated region
      $region57: #{_lambda_.2} parent=35 // pred_check
        %p557 = pneg %p295
      $region58: #{_lambda_.2} parent=35 // pred_check_branch
        %559 = sbr.rel (%p557) target = $region60
      $region59: #{_lambda_.2} parent=35 // pred_region
        %p560 = scmp.lt.s32.totalorder %s31, 1
        %s561 = scalar_select %p560, %s31, 1
        %s562 = scalar_lea.vmem %s10, %s561
      $region60: #{_lambda_.2} parent=35 // pred_fallthru
        _
      // Predicated region
      $region61: #{_lambda_.2} parent=35 // pred_check
        %p563 = pneg %p321
      $region62: #{_lambda_.2} parent=35 // pred_check_branch
        %565 = sbr.rel (%p563) target = $region64
      $region63: #{_lambda_.2} parent=35 // pred_region
        %p566 = scmp.lt.s32.totalorder %s31, 1
        %s567 = scalar_select %p566, %s31, 1
        %s568 = smul.addr %s567, 4
        %s569 = smul.addr %s568, 4
        %s570 = scalar_lea.vmem %s11, %s569
      $region64: #{_lambda_.2} parent=35 // pred_fallthru
        _
      // Predicated region
      $region65: #{_lambda_.2} parent=35 // pred_check
        %p571 = pneg %p347
      $region66: #{_lambda_.2} parent=35 // pred_check_branch
        %573 = sbr.rel (%p571) target = $region68
      $region67: #{_lambda_.2} parent=35 // pred_region
        %p574 = scmp.lt.s32.totalorder %s31, 1
        %s575 = scalar_select %p574, %s31, 1
        %s576 = scalar_lea.vmem %s12, %s575
      $region68: #{_lambda_.2} parent=35 // pred_fallthru
        _
      // Predicated region
      $region69: #{_lambda_.2} parent=35 // pred_check
        %p577 = pneg %p373
      $region70: #{_lambda_.2} parent=35 // pred_check_branch
        %579 = sbr.rel (%p577) target = $region72
      $region71: #{_lambda_.2} parent=35 // pred_region
        %p580 = scmp.lt.s32.totalorder %s31, 1
        %s581 = scalar_select %p580, %s31, 1
        %s582 = smul.addr %s581, 16
        %s583 = smul.addr %s582, 4
        %s584 = scalar_lea.vmem %s13, %s583
      $region72: #{_lambda_.2} parent=35 // pred_fallthru
        _
      // Predicated region
      $region73: #{_lambda_.2} parent=35 // pred_check
        %p585 = pneg %p399
      $region74: #{_lambda_.2} parent=35 // pred_check_branch
        %587 = sbr.rel (%p585) target = $region76
      $region75: #{_lambda_.2} parent=35 // pred_region
        %p588 = scmp.lt.s32.totalorder %s31, 1
        %s589 = scalar_select %p588, %s31, 1
        %s590 = scalar_lea.vmem %s14, %s589
      $region76: #{_lambda_.2} parent=35 // pred_fallthru
        _
      // Predicated region
      $region77: #{_lambda_.2} parent=35 // pred_check
        %p591 = pneg %p425
      $region78: #{_lambda_.2} parent=35 // pred_check_branch
        %593 = sbr.rel (%p591) target = $region80
      $region79: #{_lambda_.2} parent=35 // pred_region
        %p594 = scmp.lt.s32.totalorder %s31, 1
        %s595 = scalar_select %p594, %s31, 1
        %s596 = scalar_lea.vmem %s15, %s595
      $region80: #{_lambda_.2} parent=35 // pred_fallthru
        _
      // Predicated region
      $region81: #{_lambda_.2} parent=35 // pred_check
        %p597 = pneg %p451
      $region82: #{_lambda_.2} parent=35 // pred_check_branch
        %599 = sbr.rel (%p597) target = $region84
      $region83: #{_lambda_.2} parent=35 // pred_region
        %p600 = scmp.lt.s32.totalorder %s31, 1
        %s601 = scalar_select %p600, %s31, 1
        %s602 = scalar_lea.vmem %s16, %s601
      $region84: #{_lambda_.2} parent=35 // pred_fallthru
        _
    $region36: #{_lambda_.2} parent=5 // pred_fallthru
      _
    %p603 = scmp.le.s32.totalorder 1, %s23
    %p604 = scmp.lt.s32.totalorder %s23, 3
    %p605 = pnand %p603, %p604
    %p606 = pneg %p605
    // Predicated region
    $region85: #{_lambda_.2} parent=5 // pred_check
      _
    $region86: #{_lambda_.2} parent=5 // pred_check_branch
      %608 = sbr.rel (%p605) target = $region88
    $region87: #{_lambda_.2} parent=5 // pred_region
      %s609 = ssub.s32 %s23, 1
      %s610 = smul.u32 2, %s32
      %p611 = scmp.lt.s32.totalorder %s610, 1
      %s612 = scalar_select %p611, %s610, 1
      %s613 = smul.addr %s612, 8
      %s614 = scalar_lea.vmem %s0, %s613
      %p615 = pneg %p61
      %p616 = pneg %p58
      %p617 = pneg %p82
      %p618 = pneg %p79
      %p619 = pneg %p103
      %p620 = pneg %p100
      %p621 = pneg %p124
      %p622 = pneg %p121
      %p623 = pneg %p145
      %p624 = pneg %p142
      %p625 = scmp.lt.s32.totalorder %s33, 1
      %s626 = scalar_select %p625, %s33, 1
      %s627 = smul.addr %s626, 4
      %s628 = smul.addr %s627, 4
      %s629 = scalar_lea.vmem %s5, %s628
      %p630 = pneg %p171
      %p631 = pneg %p168
      %p632 = scmp.lt.s32.totalorder %s33, 1
      %s633 = scalar_select %p632, %s33, 1
      %s634 = scalar_lea.vmem %s6, %s633
      %p635 = pneg %p197
      %p636 = pneg %p194
      %p637 = scmp.lt.s32.totalorder %s33, 1
      %s638 = scalar_select %p637, %s33, 1
      %s639 = smul.addr %s638, 4
      %s640 = smul.addr %s639, 4
      %s641 = scalar_lea.vmem %s7, %s640
      %p642 = pneg %p223
      %p643 = pneg %p220
      %p644 = scmp.lt.s32.totalorder %s33, 1
      %s645 = scalar_select %p644, %s33, 1
      %s646 = scalar_lea.vmem %s8, %s645
      %p647 = pneg %p249
      %p648 = pneg %p246
      %p649 = scmp.lt.s32.totalorder %s33, 1
      %s650 = scalar_select %p649, %s33, 1
      %s651 = scalar_lea.vmem %s9, %s650
      %p652 = pneg %p275
      %p653 = pneg %p272
      %p654 = scmp.lt.s32.totalorder %s33, 1
      %s655 = scalar_select %p654, %s33, 1
      %s656 = scalar_lea.vmem %s10, %s655
      %p657 = pneg %p301
      %p658 = pneg %p298
      %p659 = scmp.lt.s32.totalorder %s33, 1
      %s660 = scalar_select %p659, %s33, 1
      %s661 = smul.addr %s660, 4
      %s662 = smul.addr %s661, 4
      %s663 = scalar_lea.vmem %s11, %s662
      %p664 = pneg %p327
      %p665 = pneg %p324
      %p666 = scmp.lt.s32.totalorder %s33, 1
      %s667 = scalar_select %p666, %s33, 1
      %s668 = scalar_lea.vmem %s12, %s667
      %p669 = pneg %p353
      %p670 = pneg %p350
      %p671 = scmp.lt.s32.totalorder %s33, 1
      %s672 = scalar_select %p671, %s33, 1
      %s673 = smul.addr %s672, 16
      %s674 = smul.addr %s673, 4
      %s675 = scalar_lea.vmem %s13, %s674
      %p676 = pneg %p379
      %p677 = pneg %p376
      %p678 = scmp.lt.s32.totalorder %s33, 1
      %s679 = scalar_select %p678, %s33, 1
      %s680 = scalar_lea.vmem %s14, %s679
      %p681 = pneg %p405
      %p682 = pneg %p402
      %p683 = scmp.lt.s32.totalorder %s33, 1
      %s684 = scalar_select %p683, %s33, 1
      %s685 = scalar_lea.vmem %s15, %s684
      %p686 = pneg %p431
      %p687 = pneg %p428
      %p688 = scmp.lt.s32.totalorder %s33, 1
      %s689 = scalar_select %p688, %s33, 1
      %s690 = scalar_lea.vmem %s16, %s689
      %p691 = pneg %p457
      %p692 = pneg %p454
      %p693 = pneg %p483
      %p694 = pneg %p480
      %p695 = scmp.lt.s32.totalorder %s32, 0
      %s696 = scalar_select %p695, %s32, 0
      %s697 = smul.addr %s696, 2
      %s698 = scalar_lea.vmem %s17, %s697
      %s699 = smul.u32 2, %s32
      %p700 = scmp.lt.s32.totalorder %s699, 1
      %s701 = scalar_select %p700, %s699, 1
      %s702 = smul.addr %s701, 8
      %s703 = scalar_lea.vmem %s0, %s702
      %s704 = smul.u32 2, %s32
      %p705 = scmp.lt.s32.totalorder %s33, 1
      %s706 = scalar_select %p705, %s33, 1
      %s707 = smul.addr %s706, 4
      %s708 = smul.addr %s707, 4
      %s709 = scalar_lea.vmem %s5, %s708
      %p710 = scmp.lt.s32.totalorder %s33, 1
      %s711 = scalar_select %p710, %s33, 1
      %s712 = scalar_lea.vmem %s6, %s711
      %p713 = scmp.lt.s32.totalorder %s33, 1
      %s714 = scalar_select %p713, %s33, 1
      %s715 = smul.addr %s714, 4
      %s716 = smul.addr %s715, 4
      %s717 = scalar_lea.vmem %s7, %s716
      %p718 = scmp.lt.s32.totalorder %s33, 1
      %s719 = scalar_select %p718, %s33, 1
      %s720 = scalar_lea.vmem %s8, %s719
      %p721 = scmp.lt.s32.totalorder %s33, 1
      %s722 = scalar_select %p721, %s33, 1
      %s723 = scalar_lea.vmem %s9, %s722
      %p724 = scmp.lt.s32.totalorder %s33, 1
      %s725 = scalar_select %p724, %s33, 1
      %s726 = scalar_lea.vmem %s10, %s725
      %p727 = scmp.lt.s32.totalorder %s33, 1
      %s728 = scalar_select %p727, %s33, 1
      %s729 = smul.addr %s728, 4
      %s730 = smul.addr %s729, 4
      %s731 = scalar_lea.vmem %s11, %s730
      %p732 = scmp.lt.s32.totalorder %s33, 1
      %s733 = scalar_select %p732, %s33, 1
      %s734 = scalar_lea.vmem %s12, %s733
      %p735 = scmp.lt.s32.totalorder %s33, 1
      %s736 = scalar_select %p735, %s33, 1
      %s737 = smul.addr %s736, 16
      %s738 = smul.addr %s737, 4
      %s739 = scalar_lea.vmem %s13, %s738
      %p740 = scmp.lt.s32.totalorder %s33, 1
      %s741 = scalar_select %p740, %s33, 1
      %s742 = scalar_lea.vmem %s14, %s741
      %p743 = scmp.lt.s32.totalorder %s33, 1
      %s744 = scalar_select %p743, %s33, 1
      %s745 = scalar_lea.vmem %s15, %s744
      %p746 = scmp.lt.s32.totalorder %s33, 1
      %s747 = scalar_select %p746, %s33, 1
      %s748 = scalar_lea.vmem %s16, %s747
      %p749 = scmp.lt.s32.totalorder %s32, 0
      %s750 = scalar_select %p749, %s32, 0
      %s751 = smul.addr %s750, 2
      %s752 = scalar_lea.vmem %s17, %s751
      %p754 = scmp.eq.s32.totalorder %s33, 0
      // Predicated region
      $region89: #{_lambda_.2} parent=87 // pred_check
        %p755 = pneg %p754
      $region90: #{_lambda_.2} parent=87 // pred_check_branch
        %757 = sbr.rel (%p755) target = $region92
      $region91: #{_lambda_.2} parent=87 // pred_region
        %v758 = vld [vmem:[%s703] sm:$0xff]
        %v759 = vld [vmem:[%s703 + $0x8] sm:$0xff]
        %v760 = vpack.c.bf16 %v759, %v758
        %v761 = vld [vmem:[%s1] sm:$0x3]
        %v762 = vld [vmem:[%s2] sm:$0x1]
        %v764 = vperm.slane %v762, 0
        %vm766 = vcmask 31744
        %v768 = vsel %vm766, %v760, 0
        %vm770 = vcmask 1041408
        %v772 = vsel %vm770, %v761, 0
        %774 = vmatpush.bf16.msra.mxu0 0
        %775 = vmatpush.bf16.msra.mxu0 0
        %776 = vmatpush.bf16.msra.mxu0 0
        %777 = vmatpush.bf16.msra.mxu0 0
        %778 = vmatpush.bf16.msra.mxu0 0
        %779 = vmatpush.bf16.msra.mxu0 0
        %780 = vmatpush.bf16.msra.mxu0 0
        %781 = vmatpush.bf16.msra.mxu0 %v772
        %782 = vmatmul.bf16.gmra.mxu0 %v768
        %v783 = vpop.f32.mrf.mxu0
        %v784 = vadd.f32 %v764, %v783
        %v785 = vpop.f32.mrf.mxu0
        %v786 = vadd.f32 %v764, %v785
        %787 = vdwg.mxu0
        %vm788 = vcmask 261120
        %789 = vst.msk [vmem:[#allocation2] sm:$0xff] %vm788, %v784
        %790 = vst.msk [vmem:[#allocation2 + $0x8] sm:$0xff] %vm788, %v786
      $region92: #{_lambda_.2} parent=87 // pred_fallthru
        _
      %v791 = vld [vmem:[#allocation2] sm:$0xff]
      %v792 = vld [vmem:[#allocation2 + $0x8] sm:$0xff]
      %v793 = vpack.c.bf16 %v792, %v791
      %v794 = vld [vmem:[%s709] sm:$0xf]
      %v795 = vld [vmem:[%s709 + $0x4] sm:$0xf]
      %v796 = vld [vmem:[%s709 + $0x8] sm:$0xf]
      %v797 = vld [vmem:[%s709 + $0xc] sm:$0xf]
      %v798 = vld [vmem:[%s712] sm:$0x1]
      %v800 = vperm.slane %v798, 0
      %v806 = vunpack.c.l.b16 %v794
      %v807 = vunpack.c.l.b16 %v795
      %v808 = vunpack.c.l.b16 %v796
      %v809 = vunpack.c.l.b16 %v797
      %v810 = vpack.c.b16 %v807, %v806
      %v811 = vpack.c.b16 %v809, %v808
      %vm814 = vcmask 261120
      %v816 = vsel %vm814, %v793, 0
      %818 = vmatpush.bf16.msra.mxu0 0
      %819 = vmatpush.bf16.msra.mxu0 0
      %820 = vmatpush.bf16.msra.mxu0 0
      %821 = vmatpush.bf16.msra.mxu0 0
      %822 = vmatpush.bf16.msra.mxu0 0
      %823 = vmatpush.bf16.msra.mxu0 0
      %824 = vmatpush.bf16.msra.mxu0 %v811
      %825 = vmatpush.bf16.msra.mxu0 %v810
      %826 = vmatmul.bf16.gmra.mxu0 %v816
      %v827 = vpop.f32.mrf.mxu0
      %v828 = vadd.f32 %v800, %v827
      %v829 = vpop.f32.mrf.mxu0
      %v830 = vadd.f32 %v800, %v829
      %831 = vdwg.mxu0
      %v832 = vld [vmem:[%s717] sm:$0xf]
      %v833 = vld [vmem:[%s717 + $0x4] sm:$0xf]
      %v834 = vld [vmem:[%s717 + $0x8] sm:$0xf]
      %v835 = vld [vmem:[%s717 + $0xc] sm:$0xf]
      %v836 = vpack.c.bf16 %v828, %v828
      %v837 = vpack.c.bf16 %v830, %v830
      %v839 = vunpack.c.l.b16 %v836
      %v840 = vpack.c.b16 %v839, %v839
      %841 = vrot.lane.b32.xlu0 %v840, 96
      %v842 = vpop.permute.xlu0 %841
      %vm843 = vcmask 64512
      %v845 = vsel %vm843, %v836, 0
      %v848 = vsel %vm843, %v842, 0
      %850 = vmatpush.bf16.xpose.msra.mxu0 0
      %851 = vmatpush.bf16.xpose.msra.mxu0 0
      %852 = vmatpush.bf16.xpose.msra.mxu0 0
      %853 = vmatpush.bf16.xpose.msra.mxu0 0
      %854 = vmatpush.bf16.xpose.msra.mxu0 0
      %855 = vmatpush.bf16.xpose.msra.mxu0 0
      %856 = vmatpush.bf16.xpose.msra.mxu0 0
      %857 = vmatpush.bf16.xpose.msra.mxu0 %v848
      %858 = vmatmul.bf16.gmra.mxu0 %v845
      %v859 = vpop.f32.mrf.mxu0
      %v860 = vadd.f32 0.0, %v859
      %v861 = vpop.f32.mrf.mxu0
      %862 = vdwg.mxu0
      %v864 = vunpack.c.l.b16 %v837
      %v865 = vpack.c.b16 %v864, %v864
      %866 = vrot.lane.b32.xlu0 %v865, 96
      %v867 = vpop.permute.xlu0 %866
      %v869 = vsel %vm843, %v837, 0
      %v872 = vsel %vm843, %v867, 0
      %874 = vmatpush.bf16.xpose.msra.mxu0 0
      %875 = vmatpush.bf16.xpose.msra.mxu0 0
      %876 = vmatpush.bf16.xpose.msra.mxu0 0
      %877 = vmatpush.bf16.xpose.msra.mxu0 0
      %878 = vmatpush.bf16.xpose.msra.mxu0 0
      %879 = vmatpush.bf16.xpose.msra.mxu0 0
      %880 = vmatpush.bf16.xpose.msra.mxu0 0
      %881 = vmatpush.bf16.xpose.msra.mxu0 %v872
      %882 = vmatmul.bf16.gmra.mxu0 %v869
      %v883 = vpop.f32.mrf.mxu0
      %v884 = vadd.f32 0.0, %v883
      %v885 = vpop.f32.mrf.mxu0
      %886 = vdwg.mxu0
      %v887 = vsel %vm843, %v860, -inf
      %888 = vmax.xlane.f32.xlu0 %v887
      %v889 = vpop.xlane.xlu0 %888
      %v890 = vsel %vm843, %v884, -inf
      %891 = vmax.xlane.f32.xlu0 %v890
      %v892 = vpop.xlane.xlu0 %891
      %v893 = vsub.f32 %v860, %v889
      %v894 = vsub.f32 %v884, %v892
      %v895 = vmul.f32 %v893, 1.442695
      %v896 = vpow.pop %v895
      %v897 = vmul.f32 %v894, 1.442695
      %v898 = vpow.pop %v897
      %v899 = vsel %vm843, %v896, 0.0
      %900 = vadd.xlane.f32.xlu0 %v899
      %v901 = vpop.xlane.xlu0 %900
      %v902 = vsel %vm843, %v898, 0.0
      %903 = vadd.xlane.f32.xlu0 %v902
      %v904 = vpop.xlane.xlu0 %903
      %v905 = vrcp.pop %v901
      %v906 = vrcp.pop %v904
      %v907 = vmul.f32 %v896, %v905
      %v908 = vmul.f32 %v898, %v906
      %v909 = vpack.c.bf16 %v907, %v907
      %v910 = vpack.c.bf16 %v908, %v908
      %911 = vrot.lane.b32.xlu0 %v840, 64
      %v912 = vpop.permute.xlu0 %911
      %v914 = vsel %vm843, %v909, 0
      %vm916 = vcmask 1043456
      %v918 = vsel %vm916, %v912, 0
      %920 = vmatpush.bf16.msra.mxu0 0
      %921 = vmatpush.bf16.msra.mxu0 0
      %922 = vmatpush.bf16.msra.mxu0 0
      %923 = vmatpush.bf16.msra.mxu0 0
      %924 = vmatpush.bf16.msra.mxu0 0
      %925 = vmatpush.bf16.msra.mxu0 0
      %926 = vmatpush.bf16.msra.mxu0 0
      %927 = vmatpush.bf16.msra.mxu0 %v918
      %928 = vmatmul.bf16.gmra.mxu0 %v914
      %v929 = vpop.f32.mrf.mxu0
      %v930 = vadd.f32 0.0, %v929
      %v931 = vpop.f32.mrf.mxu0
      %932 = vdwg.mxu0
      %933 = vrot.lane.b32.xlu0 %v865, 64
      %v934 = vpop.permute.xlu0 %933
      %v936 = vsel %vm843, %v910, 0
      %v939 = vsel %vm916, %v934, 0
      %941 = vmatpush.bf16.msra.mxu0 0
      %942 = vmatpush.bf16.msra.mxu0 0
      %943 = vmatpush.bf16.msra.mxu0 0
      %944 = vmatpush.bf16.msra.mxu0 0
      %945 = vmatpush.bf16.msra.mxu0 0
      %946 = vmatpush.bf16.msra.mxu0 0
      %947 = vmatpush.bf16.msra.mxu0 0
      %948 = vmatpush.bf16.msra.mxu0 %v939
      %949 = vmatmul.bf16.gmra.mxu0 %v936
      %v950 = vpop.f32.mrf.mxu0
      %v951 = vadd.f32 0.0, %v950
      %v952 = vpop.f32.mrf.mxu0
      %953 = vdwg.mxu0
      %v954 = vpack.c.bf16 %v951, %v930
      %955 = vrot.lane.b32.xlu0 %v840, 120
      %v956 = vpop.permute.xlu0 %955
      %957 = vrot.lane.b32.xlu0 %v840, 88
      %v958 = vpop.permute.xlu0 %957
      %v960 = vsel %vm843, %v956, 0
      %v963 = vsel %vm843, %v958, 0
      %965 = vmatpush.bf16.xpose.msra.mxu0 0
      %966 = vmatpush.bf16.xpose.msra.mxu0 0
      %967 = vmatpush.bf16.xpose.msra.mxu0 0
      %968 = vmatpush.bf16.xpose.msra.mxu0 0
      %969 = vmatpush.bf16.xpose.msra.mxu0 0
      %970 = vmatpush.bf16.xpose.msra.mxu0 0
      %971 = vmatpush.bf16.xpose.msra.mxu0 0
      %972 = vmatpush.bf16.xpose.msra.mxu0 %v963
      %973 = vmatmul.bf16.gmra.mxu0 %v960
      %v974 = vpop.f32.mrf.mxu0
      %v975 = vadd.f32 0.0, %v974
      %v976 = vpop.f32.mrf.mxu0
      %977 = vdwg.mxu0
      %978 = vrot.lane.b32.xlu0 %v865, 120
      %v979 = vpop.permute.xlu0 %978
      %980 = vrot.lane.b32.xlu0 %v865, 88
      %v981 = vpop.permute.xlu0 %980
      %v983 = vsel %vm843, %v979, 0
      %v986 = vsel %vm843, %v981, 0
      %988 = vmatpush.bf16.xpose.msra.mxu0 0
      %989 = vmatpush.bf16.xpose.msra.mxu0 0
      %990 = vmatpush.bf16.xpose.msra.mxu0 0
      %991 = vmatpush.bf16.xpose.msra.mxu0 0
      %992 = vmatpush.bf16.xpose.msra.mxu0 0
      %993 = vmatpush.bf16.xpose.msra.mxu0 0
      %994 = vmatpush.bf16.xpose.msra.mxu0 0
      %995 = vmatpush.bf16.xpose.msra.mxu0 %v986
      %996 = vmatmul.bf16.gmra.mxu0 %v983
      %v997 = vpop.f32.mrf.mxu0
      %v998 = vadd.f32 0.0, %v997
      %v999 = vpop.f32.mrf.mxu0
      %1000 = vdwg.mxu0
      %v1001 = vsel %vm843, %v975, -inf
      %1002 = vmax.xlane.f32.xlu0 %v1001
      %v1003 = vpop.xlane.xlu0 %1002
      %v1004 = vsel %vm843, %v998, -inf
      %1005 = vmax.xlane.f32.xlu0 %v1004
      %v1006 = vpop.xlane.xlu0 %1005
      %v1007 = vsub.f32 %v975, %v1003
      %v1008 = vsub.f32 %v998, %v1006
      %v1009 = vmul.f32 %v1007, 1.442695
      %v1010 = vpow.pop %v1009
      %v1011 = vmul.f32 %v1008, 1.442695
      %v1012 = vpow.pop %v1011
      %v1013 = vsel %vm843, %v1010, 0.0
      %1014 = vadd.xlane.f32.xlu0 %v1013
      %v1015 = vpop.xlane.xlu0 %1014
      %v1016 = vsel %vm843, %v1012, 0.0
      %1017 = vadd.xlane.f32.xlu0 %v1016
      %v1018 = vpop.xlane.xlu0 %1017
      %v1019 = vrcp.pop %v1015
      %v1020 = vrcp.pop %v1018
      %v1021 = vmul.f32 %v1010, %v1019
      %v1022 = vmul.f32 %v1012, %v1020
      %v1023 = vpack.c.bf16 %v1021, %v1021
      %v1024 = vpack.c.bf16 %v1022, %v1022
      %1025 = vrot.lane.b32.xlu0 %v840, 56
      %v1026 = vpop.permute.xlu0 %1025
      %v1028 = vsel %vm843, %v1023, 0
      %v1031 = vsel %vm916, %v1026, 0
      %1033 = vmatpush.bf16.msra.mxu0 0
      %1034 = vmatpush.bf16.msra.mxu0 0
      %1035 = vmatpush.bf16.msra.mxu0 0
      %1036 = vmatpush.bf16.msra.mxu0 0
      %1037 = vmatpush.bf16.msra.mxu0 0
      %1038 = vmatpush.bf16.msra.mxu0 0
      %1039 = vmatpush.bf16.msra.mxu0 0
      %1040 = vmatpush.bf16.msra.mxu0 %v1031
      %1041 = vmatmul.bf16.gmra.mxu0 %v1028
      %v1042 = vpop.f32.mrf.mxu0
      %v1043 = vadd.f32 0.0, %v1042
      %v1044 = vpop.f32.mrf.mxu0
      %1045 = vdwg.mxu0
      %1046 = vrot.lane.b32.xlu0 %v865, 56
      %v1047 = vpop.permute.xlu0 %1046
      %v1049 = vsel %vm843, %v1024, 0
      %v1052 = vsel %vm916, %v1047, 0
      %1054 = vmatpush.bf16.msra.mxu0 0
      %1055 = vmatpush.bf16.msra.mxu0 0
      %1056 = vmatpush.bf16.msra.mxu0 0
      %1057 = vmatpush.bf16.msra.mxu0 0
      %1058 = vmatpush.bf16.msra.mxu0 0
      %1059 = vmatpush.bf16.msra.mxu0 0
      %1060 = vmatpush.bf16.msra.mxu0 0
      %1061 = vmatpush.bf16.msra.mxu0 %v1052
      %1062 = vmatmul.bf16.gmra.mxu0 %v1049
      %v1063 = vpop.f32.mrf.mxu0
      %v1064 = vadd.f32 0.0, %v1063
      %v1065 = vpop.f32.mrf.mxu0
      %1066 = vdwg.mxu0
      %v1067 = vpack.c.bf16 %v1064, %v1043
      %v1069 = vsel %vm843, %v1067, 0
      %v1072 = vsel %vm916, %v833, 0
      %1074 = vmatpush.bf16.msra.mxu0 0
      %1075 = vmatpush.bf16.msra.mxu0 0
      %1076 = vmatpush.bf16.msra.mxu0 0
      %1077 = vmatpush.bf16.msra.mxu0 0
      %1078 = vmatpush.bf16.msra.mxu0 0
      %1079 = vmatpush.bf16.msra.mxu0 0
      %1080 = vmatpush.bf16.msra.mxu0 0
      %1081 = vmatpush.bf16.msra.mxu0 %v1072
      %1082 = vmatmul.bf16.gmra.mxu0 %v1069
      %v1083 = vpop.f32.mrf.mxu0
      %v1084 = vadd.f32 0.0, %v1083
      %v1085 = vpop.f32.mrf.mxu0
      %v1086 = vadd.f32 0.0, %v1085
      %1087 = vdwg.mxu0
      %v1089 = vsel %vm843, %v954, 0
      %v1092 = vsel %vm916, %v832, 0
      %1094 = vmatpush.bf16.msra.mxu0 0
      %1095 = vmatpush.bf16.msra.mxu0 0
      %1096 = vmatpush.bf16.msra.mxu0 0
      %1097 = vmatpush.bf16.msra.mxu0 0
      %1098 = vmatpush.bf16.msra.mxu0 0
      %1099 = vmatpush.bf16.msra.mxu0 0
      %1100 = vmatpush.bf16.msra.mxu0 0
      %1101 = vmatpush.bf16.msra.mxu0 %v1092
      %1102 = vmatmul.bf16.gmra.mxu0 %v1089
      %v1103 = vpop.f32.mrf.mxu0
      %v1104 = vadd.f32 %v1084, %v1103
      %v1105 = vpop.f32.mrf.mxu0
      %v1106 = vadd.f32 %v1086, %v1105
      %1107 = vdwg.mxu0
      %1108 = vrot.lane.b32.xlu0 %v840, 112
      %v1109 = vpop.permute.xlu0 %1108
      %1110 = vrot.lane.b32.xlu0 %v840, 80
      %v1111 = vpop.permute.xlu0 %1110
      %v1113 = vsel %vm843, %v1109, 0
      %v1116 = vsel %vm843, %v1111, 0
      %1118 = vmatpush.bf16.xpose.msra.mxu0 0
      %1119 = vmatpush.bf16.xpose.msra.mxu0 0
      %1120 = vmatpush.bf16.xpose.msra.mxu0 0
      %1121 = vmatpush.bf16.xpose.msra.mxu0 0
      %1122 = vmatpush.bf16.xpose.msra.mxu0 0
      %1123 = vmatpush.bf16.xpose.msra.mxu0 0
      %1124 = vmatpush.bf16.xpose.msra.mxu0 0
      %1125 = vmatpush.bf16.xpose.msra.mxu0 %v1116
      %1126 = vmatmul.bf16.gmra.mxu0 %v1113
      %v1127 = vpop.f32.mrf.mxu0
      %v1128 = vadd.f32 0.0, %v1127
      %v1129 = vpop.f32.mrf.mxu0
      %1130 = vdwg.mxu0
      %1131 = vrot.lane.b32.xlu0 %v865, 112
      %v1132 = vpop.permute.xlu0 %1131
      %1133 = vrot.lane.b32.xlu0 %v865, 80
      %v1134 = vpop.permute.xlu0 %1133
      %v1136 = vsel %vm843, %v1132, 0
      %v1139 = vsel %vm843, %v1134, 0
      %1141 = vmatpush.bf16.xpose.msra.mxu0 0
      %1142 = vmatpush.bf16.xpose.msra.mxu0 0
      %1143 = vmatpush.bf16.xpose.msra.mxu0 0
      %1144 = vmatpush.bf16.xpose.msra.mxu0 0
      %1145 = vmatpush.bf16.xpose.msra.mxu0 0
      %1146 = vmatpush.bf16.xpose.msra.mxu0 0
      %1147 = vmatpush.bf16.xpose.msra.mxu0 0
      %1148 = vmatpush.bf16.xpose.msra.mxu0 %v1139
      %1149 = vmatmul.bf16.gmra.mxu0 %v1136
      %v1150 = vpop.f32.mrf.mxu0
      %v1151 = vadd.f32 0.0, %v1150
      %v1152 = vpop.f32.mrf.mxu0
      %1153 = vdwg.mxu0
      %v1154 = vsel %vm843, %v1128, -inf
      %1155 = vmax.xlane.f32.xlu0 %v1154
      %v1156 = vpop.xlane.xlu0 %1155
      %v1157 = vsel %vm843, %v1151, -inf
      %1158 = vmax.xlane.f32.xlu0 %v1157
      %v1159 = vpop.xlane.xlu0 %1158
      %v1160 = vsub.f32 %v1128, %v1156
      %v1161 = vsub.f32 %v1151, %v1159
      %v1162 = vmul.f32 %v1160, 1.442695
      %v1163 = vpow.pop %v1162
      %v1164 = vmul.f32 %v1161, 1.442695
      %v1165 = vpow.pop %v1164
      %v1166 = vsel %vm843, %v1163, 0.0
      %1167 = vadd.xlane.f32.xlu0 %v1166
      %v1168 = vpop.xlane.xlu0 %1167
      %v1169 = vsel %vm843, %v1165, 0.0
      %1170 = vadd.xlane.f32.xlu0 %v1169
      %v1171 = vpop.xlane.xlu0 %1170
      %v1172 = vrcp.pop %v1168
      %v1173 = vrcp.pop %v1171
      %v1174 = vmul.f32 %v1163, %v1172
      %v1175 = vmul.f32 %v1165, %v1173
      %v1176 = vpack.c.bf16 %v1174, %v1174
      %v1177 = vpack.c.bf16 %v1175, %v1175
      %1178 = vrot.lane.b32.xlu0 %v840, 48
      %v1179 = vpop.permute.xlu0 %1178
      %v1181 = vsel %vm843, %v1176, 0
      %v1184 = vsel %vm916, %v1179, 0
      %1186 = vmatpush.bf16.msra.mxu0 0
      %1187 = vmatpush.bf16.msra.mxu0 0
      %1188 = vmatpush.bf16.msra.mxu0 0
      %1189 = vmatpush.bf16.msra.mxu0 0
      %1190 = vmatpush.bf16.msra.mxu0 0
      %1191 = vmatpush.bf16.msra.mxu0 0
      %1192 = vmatpush.bf16.msra.mxu0 0
      %1193 = vmatpush.bf16.msra.mxu0 %v1184
      %1194 = vmatmul.bf16.gmra.mxu0 %v1181
      %v1195 = vpop.f32.mrf.mxu0
      %v1196 = vadd.f32 0.0, %v1195
      %v1197 = vpop.f32.mrf.mxu0
      %1198 = vdwg.mxu0
      %1199 = vrot.lane.b32.xlu0 %v865, 48
      %v1200 = vpop.permute.xlu0 %1199
      %v1202 = vsel %vm843, %v1177, 0
      %v1205 = vsel %vm916, %v1200, 0
      %1207 = vmatpush.bf16.msra.mxu0 0
      %1208 = vmatpush.bf16.msra.mxu0 0
      %1209 = vmatpush.bf16.msra.mxu0 0
      %1210 = vmatpush.bf16.msra.mxu0 0
      %1211 = vmatpush.bf16.msra.mxu0 0
      %1212 = vmatpush.bf16.msra.mxu0 0
      %1213 = vmatpush.bf16.msra.mxu0 0
      %1214 = vmatpush.bf16.msra.mxu0 %v1205
      %1215 = vmatmul.bf16.gmra.mxu0 %v1202
      %v1216 = vpop.f32.mrf.mxu0
      %v1217 = vadd.f32 0.0, %v1216
      %v1218 = vpop.f32.mrf.mxu0
      %1219 = vdwg.mxu0
      %v1220 = vpack.c.bf16 %v1217, %v1196
      %v1222 = vsel %vm843, %v1220, 0
      %v1225 = vsel %vm916, %v834, 0
      %1227 = vmatpush.bf16.msra.mxu0 0
      %1228 = vmatpush.bf16.msra.mxu0 0
      %1229 = vmatpush.bf16.msra.mxu0 0
      %1230 = vmatpush.bf16.msra.mxu0 0
      %1231 = vmatpush.bf16.msra.mxu0 0
      %1232 = vmatpush.bf16.msra.mxu0 0
      %1233 = vmatpush.bf16.msra.mxu0 0
      %1234 = vmatpush.bf16.msra.mxu0 %v1225
      %1235 = vmatmul.bf16.gmra.mxu0 %v1222
      %v1236 = vpop.f32.mrf.mxu0
      %v1237 = vadd.f32 0.0, %v1236
      %v1238 = vpop.f32.mrf.mxu0
      %v1239 = vadd.f32 0.0, %v1238
      %1240 = vdwg.mxu0
      %v1241 = vadd.f32 %v1104, %v1237
      %v1242 = vadd.f32 %v1106, %v1239
      %1243 = vrot.lane.b32.xlu0 %v840, 104
      %v1244 = vpop.permute.xlu0 %1243
      %1245 = vrot.lane.b32.xlu0 %v840, 72
      %v1246 = vpop.permute.xlu0 %1245
      %v1248 = vsel %vm843, %v1244, 0
      %v1251 = vsel %vm843, %v1246, 0
      %1253 = vmatpush.bf16.xpose.msra.mxu0 0
      %1254 = vmatpush.bf16.xpose.msra.mxu0 0
      %1255 = vmatpush.bf16.xpose.msra.mxu0 0
      %1256 = vmatpush.bf16.xpose.msra.mxu0 0
      %1257 = vmatpush.bf16.xpose.msra.mxu0 0
      %1258 = vmatpush.bf16.xpose.msra.mxu0 0
      %1259 = vmatpush.bf16.xpose.msra.mxu0 0
      %1260 = vmatpush.bf16.xpose.msra.mxu0 %v1251
      %1261 = vmatmul.bf16.gmra.mxu0 %v1248
      %v1262 = vpop.f32.mrf.mxu0
      %v1263 = vadd.f32 0.0, %v1262
      %v1264 = vpop.f32.mrf.mxu0
      %1265 = vdwg.mxu0
      %1266 = vrot.lane.b32.xlu0 %v865, 104
      %v1267 = vpop.permute.xlu0 %1266
      %1268 = vrot.lane.b32.xlu0 %v865, 72
      %v1269 = vpop.permute.xlu0 %1268
      %v1271 = vsel %vm843, %v1267, 0
      %v1274 = vsel %vm843, %v1269, 0
      %1276 = vmatpush.bf16.xpose.msra.mxu0 0
      %1277 = vmatpush.bf16.xpose.msra.mxu0 0
      %1278 = vmatpush.bf16.xpose.msra.mxu0 0
      %1279 = vmatpush.bf16.xpose.msra.mxu0 0
      %1280 = vmatpush.bf16.xpose.msra.mxu0 0
      %1281 = vmatpush.bf16.xpose.msra.mxu0 0
      %1282 = vmatpush.bf16.xpose.msra.mxu0 0
      %1283 = vmatpush.bf16.xpose.msra.mxu0 %v1274
      %1284 = vmatmul.bf16.gmra.mxu0 %v1271
      %v1285 = vpop.f32.mrf.mxu0
      %v1286 = vadd.f32 0.0, %v1285
      %v1287 = vpop.f32.mrf.mxu0
      %1288 = vdwg.mxu0
      %v1289 = vsel %vm843, %v1263, -inf
      %1290 = vmax.xlane.f32.xlu0 %v1289
      %v1291 = vpop.xlane.xlu0 %1290
      %v1292 = vsel %vm843, %v1286, -inf
      %1293 = vmax.xlane.f32.xlu0 %v1292
      %v1294 = vpop.xlane.xlu0 %1293
      %v1295 = vsub.f32 %v1263, %v1291
      %v1296 = vsub.f32 %v1286, %v1294
      %v1297 = vmul.f32 %v1295, 1.442695
      %v1298 = vpow.pop %v1297
      %v1299 = vmul.f32 %v1296, 1.442695
      %v1300 = vpow.pop %v1299
      %v1301 = vsel %vm843, %v1298, 0.0
      %1302 = vadd.xlane.f32.xlu0 %v1301
      %v1303 = vpop.xlane.xlu0 %1302
      %v1304 = vsel %vm843, %v1300, 0.0
      %1305 = vadd.xlane.f32.xlu0 %v1304
      %v1306 = vpop.xlane.xlu0 %1305
      %v1307 = vrcp.pop %v1303
      %v1308 = vrcp.pop %v1306
      %v1309 = vmul.f32 %v1298, %v1307
      %v1310 = vmul.f32 %v1300, %v1308
      %v1311 = vpack.c.bf16 %v1309, %v1309
      %v1312 = vpack.c.bf16 %v1310, %v1310
      %1313 = vrot.lane.b32.xlu0 %v840, 40
      %v1314 = vpop.permute.xlu0 %1313
      %v1316 = vsel %vm843, %v1311, 0
      %v1319 = vsel %vm916, %v1314, 0
      %1321 = vmatpush.bf16.msra.mxu0 0
      %1322 = vmatpush.bf16.msra.mxu0 0
      %1323 = vmatpush.bf16.msra.mxu0 0
      %1324 = vmatpush.bf16.msra.mxu0 0
      %1325 = vmatpush.bf16.msra.mxu0 0
      %1326 = vmatpush.bf16.msra.mxu0 0
      %1327 = vmatpush.bf16.msra.mxu0 0
      %1328 = vmatpush.bf16.msra.mxu0 %v1319
      %1329 = vmatmul.bf16.gmra.mxu0 %v1316
      %v1330 = vpop.f32.mrf.mxu0
      %v1331 = vadd.f32 0.0, %v1330
      %v1332 = vpop.f32.mrf.mxu0
      %1333 = vdwg.mxu0
      %1334 = vrot.lane.b32.xlu0 %v865, 40
      %v1335 = vpop.permute.xlu0 %1334
      %v1337 = vsel %vm843, %v1312, 0
      %v1340 = vsel %vm916, %v1335, 0
      %1342 = vmatpush.bf16.msra.mxu0 0
      %1343 = vmatpush.bf16.msra.mxu0 0
      %1344 = vmatpush.bf16.msra.mxu0 0
      %1345 = vmatpush.bf16.msra.mxu0 0
      %1346 = vmatpush.bf16.msra.mxu0 0
      %1347 = vmatpush.bf16.msra.mxu0 0
      %1348 = vmatpush.bf16.msra.mxu0 0
      %1349 = vmatpush.bf16.msra.mxu0 %v1340
      %1350 = vmatmul.bf16.gmra.mxu0 %v1337
      %v1351 = vpop.f32.mrf.mxu0
      %v1352 = vadd.f32 0.0, %v1351
      %v1353 = vpop.f32.mrf.mxu0
      %1354 = vdwg.mxu0
      %v1355 = vpack.c.bf16 %v1352, %v1331
      %v1357 = vsel %vm843, %v1355, 0
      %v1360 = vsel %vm916, %v835, 0
      %1362 = vmatpush.bf16.msra.mxu0 0
      %1363 = vmatpush.bf16.msra.mxu0 0
      %1364 = vmatpush.bf16.msra.mxu0 0
      %1365 = vmatpush.bf16.msra.mxu0 0
      %1366 = vmatpush.bf16.msra.mxu0 0
      %1367 = vmatpush.bf16.msra.mxu0 0
      %1368 = vmatpush.bf16.msra.mxu0 0
      %1369 = vmatpush.bf16.msra.mxu0 %v1360
      %1370 = vmatmul.bf16.gmra.mxu0 %v1357
      %v1371 = vpop.f32.mrf.mxu0
      %v1372 = vadd.f32 0.0, %v1371
      %v1373 = vpop.f32.mrf.mxu0
      %v1374 = vadd.f32 0.0, %v1373
      %1375 = vdwg.mxu0
      %v1376 = vadd.f32 %v1241, %v1372
      %v1377 = vadd.f32 %v1242, %v1374
      %v1378 = vld [vmem:[%s720] sm:$0x1]
      %v1380 = vperm.slane %v1378, 0
      %v1382 = vadd.f32 %v1376, %v1380
      %v1383 = vadd.f32 %v1377, %v1380
      %v1384 = vadd.f32 %v791, %v1382
      %v1385 = vadd.f32 %v792, %v1383
      %v1386 = vld [vmem:[%s723] sm:$0x1]
      %v1387 = vld [vmem:[%s726] sm:$0x1]
      %v1388 = vsel %vm814, %v1384, 0.0
      %1389 = vadd.xlane.f32.xlu0 %v1388
      %v1390 = vpop.xlane.xlu0 %1389
      %v1391 = vsel %vm814, %v1385, 0.0
      %1392 = vadd.xlane.f32.xlu0 %v1391
      %v1393 = vpop.xlane.xlu0 %1392
      %v1394 = vrcp.pop 32.0
      %v1395 = vmul.f32 32.0, %v1394
      %v1396 = vsub.f32 1.0, %v1395
      %v1397 = vmul.f32 %v1394, %v1396
      %v1398 = vadd.f32 %v1394, %v1397
      %vm1399 = vweird.f32 %v1394
      %v1400 = vsel %vm1399, %v1394, %v1398
      %v1401 = vmul.f32 %v1390, %v1400
      %v1402 = vmul.f32 %v1393, %v1400
      %v1403 = vsub.f32 %v1384, %v1401
      %v1404 = vsub.f32 %v1385, %v1402
      %v1405 = vmul.f32 %v1403, %v1403
      %v1406 = vmul.f32 %v1404, %v1404
      %v1407 = vsel %vm814, %v1405, 0.0
      %1408 = vadd.xlane.f32.xlu0 %v1407
      %v1409 = vpop.xlane.xlu0 %1408
      %v1410 = vsel %vm814, %v1406, 0.0
      %1411 = vadd.xlane.f32.xlu0 %v1410
      %v1412 = vpop.xlane.xlu0 %1411
      %v1413 = vmul.f32 %v1409, %v1400
      %v1414 = vmul.f32 %v1412, %v1400
      %v1415 = vadd.f32 %v1413, 1e-05
      %v1416 = vadd.f32 %v1414, 1e-05
      %v1417 = vrsqrt.pop %v1415
      %v1418 = vmul.f32 %v1417, %v1415
      %v1419 = vmul.f32 %v1418, %v1417
      %v1420 = vmul.f32 0.5, %v1419
      %v1421 = vsub.f32 1.5, %v1420
      %v1422 = vmul.f32 %v1417, %v1421
      %vm1423 = vweird.f32 %v1415
      %vm1424 = vweird.f32 %v1417
      %vm1425 = vmor %vm1423, %vm1424
      %v1426 = vsel %vm1425, %v1417, %v1422
      %v1427 = vrsqrt.pop %v1416
      %v1428 = vmul.f32 %v1427, %v1416
      %v1429 = vmul.f32 %v1428, %v1427
      %v1430 = vmul.f32 0.5, %v1429
      %v1431 = vsub.f32 1.5, %v1430
      %v1432 = vmul.f32 %v1427, %v1431
      %vm1433 = vweird.f32 %v1416
      %vm1434 = vweird.f32 %v1427
      %vm1435 = vmor %vm1433, %vm1434
      %v1436 = vsel %vm1435, %v1427, %v1432
      %v1437 = vmul.f32 %v1403, %v1426
      %v1438 = vmul.f32 %v1404, %v1436
      %v1440 = vperm.slane %v1386, 0
      %v1442 = vmul.f32 %v1437, %v1440
      %v1443 = vmul.f32 %v1438, %v1440
      %v1445 = vperm.slane %v1387, 0
      %v1447 = vadd.f32 %v1442, %v1445
      %v1448 = vadd.f32 %v1443, %v1445
      %v1449 = vpack.c.bf16 %v1448, %v1447
      %v1450 = vld [vmem:[%s731] sm:$0xf]
      %v1451 = vld [vmem:[%s731 + $0x4] sm:$0xf]
      %v1452 = vld [vmem:[%s731 + $0x8] sm:$0xf]
      %v1453 = vld [vmem:[%s731 + $0xc] sm:$0xf]
      %v1454 = vld [vmem:[%s734] sm:$0x1]
      %v1456 = vperm.slane %v1454, 0
      %v1462 = vunpack.c.l.b16 %v1450
      %v1463 = vunpack.c.l.b16 %v1451
      %v1464 = vunpack.c.l.b16 %v1452
      %v1465 = vunpack.c.l.b16 %v1453
      %v1466 = vpack.c.b16 %v1463, %v1462
      %v1467 = vpack.c.b16 %v1465, %v1464
      %v1471 = vsel %vm814, %v1449, 0
      %1473 = vmatpush.bf16.msra.mxu0 0
      %1474 = vmatpush.bf16.msra.mxu0 0
      %1475 = vmatpush.bf16.msra.mxu0 0
      %1476 = vmatpush.bf16.msra.mxu0 0
      %1477 = vmatpush.bf16.msra.mxu0 0
      %1478 = vmatpush.bf16.msra.mxu0 0
      %1479 = vmatpush.bf16.msra.mxu0 %v1467
      %1480 = vmatpush.bf16.msra.mxu0 %v1466
      %1481 = vmatmul.bf16.gmra.mxu0 %v1471
      %v1482 = vpop.f32.mrf.mxu0
      %v1483 = vadd.f32 %v1456, %v1482
      %v1484 = vpop.f32.mrf.mxu0
      %v1485 = vadd.f32 %v1456, %v1484
      %1486 = vdwg.mxu0
      %v1487 = vmax.f32 %v1483, 0.0
      %v1488 = vmax.f32 %v1485, 0.0
      %v1489 = vpack.c.bf16 %v1488, %v1487
      %v1490 = vld [vmem:[%s739] sm:$0xf]
      %v1491 = vld [vmem:[%s739 + $0x4] sm:$0xf]
      %v1492 = vld [vmem:[%s739 + $0x8] sm:$0xf]
      %v1493 = vld [vmem:[%s739 + $0xc] sm:$0xf]
      %v1494 = vld [vmem:[%s739 + $0x10] sm:$0xf]
      %v1495 = vld [vmem:[%s739 + $0x14] sm:$0xf]
      %v1496 = vld [vmem:[%s739 + $0x18] sm:$0xf]
      %v1497 = vld [vmem:[%s739 + $0x1c] sm:$0xf]
      %v1498 = vld [vmem:[%s739 + $0x20] sm:$0xf]
      %v1499 = vld [vmem:[%s739 + $0x24] sm:$0xf]
      %v1500 = vld [vmem:[%s739 + $0x28] sm:$0xf]
      %v1501 = vld [vmem:[%s739 + $0x2c] sm:$0xf]
      %v1502 = vld [vmem:[%s739 + $0x30] sm:$0xf]
      %v1503 = vld [vmem:[%s739 + $0x34] sm:$0xf]
      %v1504 = vld [vmem:[%s739 + $0x38] sm:$0xf]
      %v1505 = vld [vmem:[%s739 + $0x3c] sm:$0xf]
      %v1506 = vld [vmem:[%s742] sm:$0x1]
      %v1508 = vperm.slane %v1506, 0
      %v1526 = vunpack.c.l.b16 %v1490
      %v1527 = vunpack.c.l.b16 %v1491
      %v1528 = vunpack.c.l.b16 %v1492
      %v1529 = vunpack.c.l.b16 %v1493
      %v1530 = vunpack.c.l.b16 %v1494
      %v1531 = vunpack.c.l.b16 %v1495
      %v1532 = vunpack.c.l.b16 %v1496
      %v1533 = vunpack.c.l.b16 %v1497
      %v1534 = vunpack.c.l.b16 %v1498
      %v1535 = vunpack.c.l.b16 %v1499
      %v1536 = vunpack.c.l.b16 %v1500
      %v1537 = vunpack.c.l.b16 %v1501
      %v1538 = vunpack.c.l.b16 %v1502
      %v1539 = vunpack.c.l.b16 %v1503
      %v1540 = vunpack.c.l.b16 %v1504
      %v1541 = vunpack.c.l.b16 %v1505
      %v1542 = vpack.c.b16 %v1527, %v1526
      %v1543 = vpack.c.b16 %v1529, %v1528
      %v1544 = vpack.c.b16 %v1531, %v1530
      %v1545 = vpack.c.b16 %v1533, %v1532
      %v1546 = vpack.c.b16 %v1535, %v1534
      %v1547 = vpack.c.b16 %v1537, %v1536
      %v1548 = vpack.c.b16 %v1539, %v1538
      %v1549 = vpack.c.b16 %v1541, %v1540
      %1558 = vmatpush.bf16.msra.mxu0 %v1549
      %1559 = vmatpush.bf16.msra.mxu0 %v1548
      %1560 = vmatpush.bf16.msra.mxu0 %v1547
      %1561 = vmatpush.bf16.msra.mxu0 %v1546
      %1562 = vmatpush.bf16.msra.mxu0 %v1545
      %1563 = vmatpush.bf16.msra.mxu0 %v1544
      %1564 = vmatpush.bf16.msra.mxu0 %v1543
      %1565 = vmatpush.bf16.msra.mxu0 %v1542
      %1566 = vmatmul.bf16.gmra.mxu0 %v1489
      %v1567 = vpop.f32.mrf.mxu0
      %v1568 = vadd.f32 %v1508, %v1567
      %v1569 = vpop.f32.mrf.mxu0
      %v1570 = vadd.f32 %v1508, %v1569
      %1571 = vdwg.mxu0
      %v1572 = vadd.f32 %v1447, %v1568
      %v1573 = vadd.f32 %v1448, %v1570
      %v1574 = vld [vmem:[%s745] sm:$0x1]
      %v1575 = vld [vmem:[%s748] sm:$0x1]
      %v1576 = vsel %vm814, %v1572, 0.0
      %1577 = vadd.xlane.f32.xlu0 %v1576
      %v1578 = vpop.xlane.xlu0 %1577
      %v1579 = vsel %vm814, %v1573, 0.0
      %1580 = vadd.xlane.f32.xlu0 %v1579
      %v1581 = vpop.xlane.xlu0 %1580
      %v1582 = vmul.f32 %v1578, %v1400
      %v1583 = vmul.f32 %v1581, %v1400
      %v1584 = vsub.f32 %v1572, %v1582
      %v1585 = vsub.f32 %v1573, %v1583
      %v1586 = vmul.f32 %v1584, %v1584
      %v1587 = vmul.f32 %v1585, %v1585
      %v1588 = vsel %vm814, %v1586, 0.0
      %1589 = vadd.xlane.f32.xlu0 %v1588
      %v1590 = vpop.xlane.xlu0 %1589
      %v1591 = vsel %vm814, %v1587, 0.0
      %1592 = vadd.xlane.f32.xlu0 %v1591
      %v1593 = vpop.xlane.xlu0 %1592
      %v1594 = vmul.f32 %v1590, %v1400
      %v1595 = vmul.f32 %v1593, %v1400
      %v1596 = vadd.f32 %v1594, 1e-05
      %v1597 = vadd.f32 %v1595, 1e-05
      %v1598 = vrsqrt.pop %v1596
      %v1599 = vmul.f32 %v1598, %v1596
      %v1600 = vmul.f32 %v1599, %v1598
      %v1601 = vmul.f32 0.5, %v1600
      %v1602 = vsub.f32 1.5, %v1601
      %v1603 = vmul.f32 %v1598, %v1602
      %vm1604 = vweird.f32 %v1596
      %vm1605 = vweird.f32 %v1598
      %vm1606 = vmor %vm1604, %vm1605
      %v1607 = vsel %vm1606, %v1598, %v1603
      %v1608 = vrsqrt.pop %v1597
      %v1609 = vmul.f32 %v1608, %v1597
      %v1610 = vmul.f32 %v1609, %v1608
      %v1611 = vmul.f32 0.5, %v1610
      %v1612 = vsub.f32 1.5, %v1611
      %v1613 = vmul.f32 %v1608, %v1612
      %vm1614 = vweird.f32 %v1597
      %vm1615 = vweird.f32 %v1608
      %vm1616 = vmor %vm1614, %vm1615
      %v1617 = vsel %vm1616, %v1608, %v1613
      %v1618 = vmul.f32 %v1584, %v1607
      %v1619 = vmul.f32 %v1585, %v1617
      %v1621 = vperm.slane %v1574, 0
      %v1623 = vmul.f32 %v1618, %v1621
      %v1624 = vmul.f32 %v1619, %v1621
      %v1626 = vperm.slane %v1575, 0
      %v1628 = vadd.f32 %v1623, %v1626
      %v1629 = vadd.f32 %v1624, %v1626
      %1630 = vst.msk [vmem:[#allocation2] sm:$0xff] %vm814, %v1628
      %1631 = vst.msk [vmem:[#allocation2 + $0x8] sm:$0xff] %vm814, %v1629
      %p1632 = scmp.eq.s32.totalorder %s33, 1
      // Predicated region
      $region93: #{_lambda_.2} parent=87 // pred_check
        %p1633 = pneg %p1632
      $region94: #{_lambda_.2} parent=87 // pred_check_branch
        %1635 = sbr.rel (%p1633) target = $region96
      $region95: #{_lambda_.2} parent=87 // pred_region
        %v1636 = vld [vmem:[#allocation2] sm:$0xff]
        %v1637 = vld [vmem:[#allocation2 + $0x8] sm:$0xff]
        %v1638 = vsel %vm814, %v1636, 0.0
        %v1639 = vrot.slane %v1638, 4
        %v1640 = vadd.f32 %v1638, %v1639
        %v1641 = vrot.slane %v1640, 2
        %v1642 = vadd.f32 %v1640, %v1641
        %v1643 = vrot.slane %v1642, 1
        %v1644 = vadd.f32 %v1642, %v1643
        %v1645 = vsel %vm814, %v1637, 0.0
        %v1646 = vrot.slane %v1645, 4
        %v1647 = vadd.f32 %v1645, %v1646
        %v1648 = vrot.slane %v1647, 2
        %v1649 = vadd.f32 %v1647, %v1648
        %v1650 = vrot.slane %v1649, 1
        %v1651 = vadd.f32 %v1649, %v1650
        %v1652 = vmul.f32 %v1644, 0.125
        %v1653 = vmul.f32 %v1651, 0.125
        %v1654 = vpack.c.bf16 %v1652, %v1652
        %v1655 = vpack.c.bf16 %v1653, %v1653
        %v1656 = vld [vmem:[%s3] sm:$0xf]
        %v1657 = vld [vmem:[%s3 + $0x4] sm:$0xf]
        %v1658 = vld [vmem:[%s3 + $0x8] sm:$0xf]
        %v1659 = vld [vmem:[%s3 + $0xc] sm:$0xf]
        %v1660 = vld [vmem:[%s4] sm:$0x1]
        %v1662 = vperm.slane %v1660, 0
        %v1666 = vunpack.c.l.b16 %v1654
        %v1667 = vunpack.c.l.b16 %v1655
        %vm1668 = vcmask 1041409
        %v1669 = vsel %vm1668, %v1667, %v1666
        %v1670 = vpack.c.b16 %v1669, %v1669
        %v1675 = vunpack.c.l.b16 %v1656
        %v1676 = vunpack.c.l.b16 %v1657
        %v1677 = vunpack.c.l.b16 %v1658
        %v1678 = vunpack.c.l.b16 %v1659
        %v1679 = vpack.c.b16 %v1676, %v1675
        %v1680 = vpack.c.b16 %v1678, %v1677
        %v1684 = vsel %vm814, %v1670, 0
        %1686 = vmatpush.bf16.msra.mxu0 0
        %1687 = vmatpush.bf16.msra.mxu0 0
        %1688 = vmatpush.bf16.msra.mxu0 0
        %1689 = vmatpush.bf16.msra.mxu0 0
        %1690 = vmatpush.bf16.msra.mxu0 0
        %1691 = vmatpush.bf16.msra.mxu0 0
        %1692 = vmatpush.bf16.msra.mxu0 %v1680
        %1693 = vmatpush.bf16.msra.mxu0 %v1679
        %1694 = vmatmul.bf16.gmra.mxu0 %v1684
        %v1695 = vpop.f32.mrf.mxu0
        %v1696 = vadd.f32 %v1662, %v1695
        %v1697 = vpop.f32.mrf.mxu0
        %1698 = vdwg.mxu0
        %1699 = vst [vmem:[%s752] sm:$0x3] %v1696
      $region96: #{_lambda_.2} parent=87 // pred_fallthru
        _
      %p1700 = scmp.lt.s32.totalorder %s32, 0
      %s1701 = scalar_select %p1700, %s32, 0
      %s1702 = smul.addr %s1701, 2
      %s1703 = scalar_lea.vmem %s17, %s1702
      // Predicated region
      $region97: #{_lambda_.2} parent=87 // pred_check
        %p1704 = pneg %p480
      $region98: #{_lambda_.2} parent=87 // pred_check_branch
        %1706 = sbr.rel (%p1704) target = $region100
      $region99: #{_lambda_.2} parent=87 // pred_region
        _
      $region100: #{_lambda_.2} parent=87 // pred_fallthru
        _
      // Predicated region
      $region101: #{_lambda_.2} parent=87 // pred_check
        %p1707 = pneg %p480
      $region102: #{_lambda_.2} parent=87 // pred_check_branch
        %1709 = sbr.rel (%p1707) target = $region104
      $region103: #{_lambda_.2} parent=87 // pred_region
        %p1710 = scmp.lt.s32.totalorder %s32, 0
        %s1711 = scalar_select %p1710, %s32, 0
        %s1712 = smul.addr %s1711, 2
        %s1713 = scalar_lea.vmem %s17, %s1712
      $region104: #{_lambda_.2} parent=87 // pred_fallthru
        _
    $region88: #{_lambda_.2} parent=5 // pred_fallthru
      _
    %p1714 = scmp.le.s32.totalorder 2, %s23
    // Predicated region
    $region105: #{_lambda_.2} parent=5 // pred_check
      %p1715 = pneg %p1714
    $region106: #{_lambda_.2} parent=5 // pred_check_branch
      %1717 = sbr.rel (%p1715) target = $region108
    $region107: #{_lambda_.2} parent=5 // pred_region
      %s1718 = ssub.s32 %s23, 2
    $region108: #{_lambda_.2} parent=5 // pred_fallthru
      _
  $region6: #{_lambda_.2} parent=0 // loop_footer
    %s27 = sadd.s32 1, %s23
  $region7: #{_lambda_.2} parent=0 // loop_footer_branch
    %22 = sbr.rel target = $region3
  $region8: #{_lambda_.2} parent=0 // loop_exit
    _

// kernel: _lambda_.3
$region0: #{_lambda_.3}
  #allocation0 [shape = 'u32[]', space=smem, size = 0x4, offset = 0x4, fixed_abs, tag = 'smem constant byte address 0x4 - core index']
  #allocation1 [shape = 'u32[72,128]{1,0:T(1,128)}', space=vmem, size = 0x9000, scoped, tag = 'internal scratch']
  #allocation2 [shape = 'f32[2,8,32]{2,1,0:T(8,128)}', space=vmem, size = 0x2000, scoped, tag = 'scratch operand']
  %s0 = inlined_call_operand.vmem [shape: f32[2,4,768], index: 0, kind: input, shape index: {}]
  %s1 = inlined_call_operand.vmem [shape: bf16[768,32], index: 1, kind: input, shape index: {}]
  %s2 = inlined_call_operand.vmem [shape: f32[1,32], index: 2, kind: input, shape index: {}]
  %s3 = inlined_call_operand.vmem [shape: f32[8,32], index: 3, kind: input, shape index: {}]
  %s4 = inlined_call_operand.vmem [shape: bf16[32,128], index: 4, kind: input, shape index: {}]
  %s5 = inlined_call_operand.vmem [shape: f32[1,128], index: 5, kind: input, shape index: {}]
  %s6 = inlined_call_operand.vmem [shape: bf16[2,32,96], index: 6, kind: input, shape index: {}]
  %s7 = inlined_call_operand.vmem [shape: f32[2,1,96], index: 7, kind: input, shape index: {}]
  %s8 = inlined_call_operand.vmem [shape: bf16[2,32,32], index: 8, kind: input, shape index: {}]
  %s9 = inlined_call_operand.vmem [shape: f32[2,1,32], index: 9, kind: input, shape index: {}, may-alias: {9,11,15,17}]
  %s10 = inlined_call_operand.vmem [shape: f32[2,1,32], index: 10, kind: input, shape index: {}, may-alias: {10,16}]
  %s11 = inlined_call_operand.vmem [shape: f32[2,1,32], index: 11, kind: input, shape index: {}, may-alias: {9,11,15,17}]
  %s12 = inlined_call_operand.vmem [shape: bf16[2,32,128], index: 12, kind: input, shape index: {}]
  %s13 = inlined_call_operand.vmem [shape: f32[2,1,128], index: 13, kind: input, shape index: {}]
  %s14 = inlined_call_operand.vmem [shape: bf16[2,128,32], index: 14, kind: input, shape index: {}]
  %s15 = inlined_call_operand.vmem [shape: f32[2,1,32], index: 15, kind: input, shape index: {}, may-alias: {9,11,15,17}]
  %s16 = inlined_call_operand.vmem [shape: f32[2,1,32], index: 16, kind: input, shape index: {}, may-alias: {10,16}]
  %s17 = inlined_call_operand.vmem [shape: f32[2,1,32], index: 17, kind: input, shape index: {}, may-alias: {9,11,15,17}]
  %s18 = inlined_call_operand.vmem [shape: f32[2,128], index: 18, kind: output, shape index: {}]
  %s19 = sld [smem:[#allocation0]]
  $region113: #{_lambda_.3} parent=0
    _
  %s21 = ssub.s32 1, %s19
  %s22 = scalar_select 0, %s21, %s19
  loop: start=0, step=1, limit=4
  $region2: #{_lambda_.3} parent=0 // loop_pre_header
    _
  $region3: #{_lambda_.3} parent=0 // loop_header
    %s24 = sphi 0, %s28
    %p25 = scmp.ge.s32.totalorder %s24, 4
    %s31 = sphi 0, %s43
    %s32 = sphi 0, %s39
    %s33 = sphi 0, %s31
    %s34 = sphi 0, %s32
    %s35 = sphi 0, %s33
    %s36 = sphi 0, %s34
    %s46 = sphi 0, %s48
    %s49 = sphi 0, %s46
    %s50 = sphi 0, %s49
    %s66 = sphi 0, %s50
    %s70 = sphi 0, %s70
    %s72 = sphi 0, %s70
    %s73 = sphi 0, %s72
    %s87 = sphi 0, %s73
    %s91 = sphi 0, %s91
    %s93 = sphi 0, %s91
    %s94 = sphi 0, %s93
    %s108 = sphi 0, %s94
    %s112 = sphi 0, %s112
    %s114 = sphi 0, %s112
    %s115 = sphi 0, %s114
    %s129 = sphi 0, %s115
    %s133 = sphi 0, %s133
    %s135 = sphi 0, %s133
    %s136 = sphi 0, %s135
    %s150 = sphi 0, %s136
    %s154 = sphi 0, %s154
    %s156 = sphi 0, %s154
    %s157 = sphi 0, %s156
    %s171 = sphi 0, %s157
    %s177 = sphi 0, %s179
    %s180 = sphi 0, %s177
    %s181 = sphi 0, %s180
    %s197 = sphi 0, %s181
    %s203 = sphi 0, %s205
    %s206 = sphi 0, %s203
    %s207 = sphi 0, %s206
    %s223 = sphi 0, %s207
    %s229 = sphi 0, %s231
    %s232 = sphi 0, %s229
    %s233 = sphi 0, %s232
    %s249 = sphi 0, %s233
    %s255 = sphi 0, %s257
    %s258 = sphi 0, %s255
    %s259 = sphi 0, %s258
    %s275 = sphi 0, %s259
    %s281 = sphi 0, %s283
    %s284 = sphi 0, %s281
    %s285 = sphi 0, %s284
    %s301 = sphi 0, %s285
    %s307 = sphi 0, %s309
    %s310 = sphi 0, %s307
    %s311 = sphi 0, %s310
    %s327 = sphi 0, %s311
    %s333 = sphi 0, %s335
    %s336 = sphi 0, %s333
    %s337 = sphi 0, %s336
    %s353 = sphi 0, %s337
    %s359 = sphi 0, %s361
    %s362 = sphi 0, %s359
    %s363 = sphi 0, %s362
    %s379 = sphi 0, %s363
    %s385 = sphi 0, %s387
    %s388 = sphi 0, %s385
    %s389 = sphi 0, %s388
    %s405 = sphi 0, %s389
    %s411 = sphi 0, %s413
    %s414 = sphi 0, %s411
    %s415 = sphi 0, %s414
    %s431 = sphi 0, %s415
    %s437 = sphi 0, %s439
    %s440 = sphi 0, %s437
    %s441 = sphi 0, %s440
    %s457 = sphi 0, %s441
    %s463 = sphi 0, %s465
    %s466 = sphi 0, %s463
    %s467 = sphi 0, %s466
    %s483 = sphi 0, %s467
    %s489 = sphi 0, %s491
    %s492 = sphi 0, %s489
    %s493 = sphi 0, %s492
    %s509 = sphi 0, %s493
  $region4: #{_lambda_.3} parent=0 // loop_header_branch
    %27 = sbr.rel (%p25) target = $region8
  $region5: #{_lambda_.3} parent=0 // loop_body
    %s29 = ssub.s32 %s24, 1
    %s30 = ssub.s32 %s24, 2
    %s37 = sadd.s32 1, %s32
    %p38 = scmp.ge.s32.totalorder %s37, 2
    %s39 = scalar_select %p38, 0, %s37
    %s40 = sadd.s32 1, %s31
    %s41 = scalar_select %p38, %s40, %s31
    %p42 = scmp.ge.s32.totalorder %s41, 1
    %s43 = scalar_select %p42, 0, %s41
    %s44 = ssub.s32 %s31, %s43
    %p45 = scmp.eq.s32.totalorder %s44, 0
    %s47 = sadd.s32 %s46, 1
    %s48 = scalar_select %p45, %s46, %s47
    %p51 = pneg %p45
    %p52 = scmp.eq.s32.totalorder %s24, 1
    %p53 = por %p51, %p52
    %p54 = scmp.ne.s32.totalorder %s46, %s49
    %p55 = scmp.eq.s32.totalorder %s24, 0
    %p56 = por %p54, %p55
    %p57 = scmp.ne.s32.totalorder %s46, %s49
    %p58 = scmp.eq.s32.totalorder %s29, 1
    %p59 = por %p57, %p58
    %p60 = scmp.ne.s32.totalorder %s49, %s50
    %p61 = scmp.eq.s32.totalorder %s29, 0
    %p62 = por %p60, %p61
    %p63 = scmp.ne.s32.totalorder %s49, %s50
    %p64 = scmp.eq.s32.totalorder %s30, 1
    %p65 = por %p63, %p64
    %p67 = scmp.ne.s32.totalorder %s50, %s66
    %p68 = scmp.eq.s32.totalorder %s30, 0
    %p69 = por %p67, %p68
    %s71 = sadd.s32 %s70, 1
    %p74 = scmp.eq.s32.totalorder %s24, 1
    %p75 = scmp.ne.s32.totalorder %s70, %s72
    %p76 = scmp.eq.s32.totalorder %s24, 0
    %p77 = por %p75, %p76
    %p78 = scmp.ne.s32.totalorder %s70, %s72
    %p79 = scmp.eq.s32.totalorder %s29, 1
    %p80 = por %p78, %p79
    %p81 = scmp.ne.s32.totalorder %s72, %s73
    %p82 = scmp.eq.s32.totalorder %s29, 0
    %p83 = por %p81, %p82
    %p84 = scmp.ne.s32.totalorder %s72, %s73
    %p85 = scmp.eq.s32.totalorder %s30, 1
    %p86 = por %p84, %p85
    %p88 = scmp.ne.s32.totalorder %s73, %s87
    %p89 = scmp.eq.s32.totalorder %s30, 0
    %p90 = por %p88, %p89
    %s92 = sadd.s32 %s91, 1
    %p95 = scmp.eq.s32.totalorder %s24, 1
    %p96 = scmp.ne.s32.totalorder %s91, %s93
    %p97 = scmp.eq.s32.totalorder %s24, 0
    %p98 = por %p96, %p97
    %p99 = scmp.ne.s32.totalorder %s91, %s93
    %p100 = scmp.eq.s32.totalorder %s29, 1
    %p101 = por %p99, %p100
    %p102 = scmp.ne.s32.totalorder %s93, %s94
    %p103 = scmp.eq.s32.totalorder %s29, 0
    %p104 = por %p102, %p103
    %p105 = scmp.ne.s32.totalorder %s93, %s94
    %p106 = scmp.eq.s32.totalorder %s30, 1
    %p107 = por %p105, %p106
    %p109 = scmp.ne.s32.totalorder %s94, %s108
    %p110 = scmp.eq.s32.totalorder %s30, 0
    %p111 = por %p109, %p110
    %s113 = sadd.s32 %s112, 1
    %p116 = scmp.eq.s32.totalorder %s24, 1
    %p117 = scmp.ne.s32.totalorder %s112, %s114
    %p118 = scmp.eq.s32.totalorder %s24, 0
    %p119 = por %p117, %p118
    %p120 = scmp.ne.s32.totalorder %s112, %s114
    %p121 = scmp.eq.s32.totalorder %s29, 1
    %p122 = por %p120, %p121
    %p123 = scmp.ne.s32.totalorder %s114, %s115
    %p124 = scmp.eq.s32.totalorder %s29, 0
    %p125 = por %p123, %p124
    %p126 = scmp.ne.s32.totalorder %s114, %s115
    %p127 = scmp.eq.s32.totalorder %s30, 1
    %p128 = por %p126, %p127
    %p130 = scmp.ne.s32.totalorder %s115, %s129
    %p131 = scmp.eq.s32.totalorder %s30, 0
    %p132 = por %p130, %p131
    %s134 = sadd.s32 %s133, 1
    %p137 = scmp.eq.s32.totalorder %s24, 1
    %p138 = scmp.ne.s32.totalorder %s133, %s135
    %p139 = scmp.eq.s32.totalorder %s24, 0
    %p140 = por %p138, %p139
    %p141 = scmp.ne.s32.totalorder %s133, %s135
    %p142 = scmp.eq.s32.totalorder %s29, 1
    %p143 = por %p141, %p142
    %p144 = scmp.ne.s32.totalorder %s135, %s136
    %p145 = scmp.eq.s32.totalorder %s29, 0
    %p146 = por %p144, %p145
    %p147 = scmp.ne.s32.totalorder %s135, %s136
    %p148 = scmp.eq.s32.totalorder %s30, 1
    %p149 = por %p147, %p148
    %p151 = scmp.ne.s32.totalorder %s136, %s150
    %p152 = scmp.eq.s32.totalorder %s30, 0
    %p153 = por %p151, %p152
    %s155 = sadd.s32 %s154, 1
    %p158 = scmp.eq.s32.totalorder %s24, 1
    %p159 = scmp.ne.s32.totalorder %s154, %s156
    %p160 = scmp.eq.s32.totalorder %s24, 0
    %p161 = por %p159, %p160
    %p162 = scmp.ne.s32.totalorder %s154, %s156
    %p163 = scmp.eq.s32.totalorder %s29, 1
    %p164 = por %p162, %p163
    %p165 = scmp.ne.s32.totalorder %s156, %s157
    %p166 = scmp.eq.s32.totalorder %s29, 0
    %p167 = por %p165, %p166
    %p168 = scmp.ne.s32.totalorder %s156, %s157
    %p169 = scmp.eq.s32.totalorder %s30, 1
    %p170 = por %p168, %p169
    %p172 = scmp.ne.s32.totalorder %s157, %s171
    %p173 = scmp.eq.s32.totalorder %s30, 0
    %p174 = por %p172, %p173
    %s175 = ssub.s32 %s32, %s39
    %p176 = scmp.eq.s32.totalorder %s175, 0
    %s178 = sadd.s32 %s177, 1
    %s179 = scalar_select %p176, %s177, %s178
    %p182 = pneg %p176
    %p183 = scmp.eq.s32.totalorder %s24, 1
    %p184 = por %p182, %p183
    %p185 = scmp.ne.s32.totalorder %s177, %s180
    %p186 = scmp.eq.s32.totalorder %s24, 0
    %p187 = por %p185, %p186
    %p188 = scmp.ne.s32.totalorder %s177, %s180
    %p189 = scmp.eq.s32.totalorder %s29, 1
    %p190 = por %p188, %p189
    %p191 = scmp.ne.s32.totalorder %s180, %s181
    %p192 = scmp.eq.s32.totalorder %s29, 0
    %p193 = por %p191, %p192
    %p194 = scmp.ne.s32.totalorder %s180, %s181
    %p195 = scmp.eq.s32.totalorder %s30, 1
    %p196 = por %p194, %p195
    %p198 = scmp.ne.s32.totalorder %s181, %s197
    %p199 = scmp.eq.s32.totalorder %s30, 0
    %p200 = por %p198, %p199
    %s201 = ssub.s32 %s32, %s39
    %p202 = scmp.eq.s32.totalorder %s201, 0
    %s204 = sadd.s32 %s203, 1
    %s205 = scalar_select %p202, %s203, %s204
    %p208 = pneg %p202
    %p209 = scmp.eq.s32.totalorder %s24, 1
    %p210 = por %p208, %p209
    %p211 = scmp.ne.s32.totalorder %s203, %s206
    %p212 = scmp.eq.s32.totalorder %s24, 0
    %p213 = por %p211, %p212
    %p214 = scmp.ne.s32.totalorder %s203, %s206
    %p215 = scmp.eq.s32.totalorder %s29, 1
    %p216 = por %p214, %p215
    %p217 = scmp.ne.s32.totalorder %s206, %s207
    %p218 = scmp.eq.s32.totalorder %s29, 0
    %p219 = por %p217, %p218
    %p220 = scmp.ne.s32.totalorder %s206, %s207
    %p221 = scmp.eq.s32.totalorder %s30, 1
    %p222 = por %p220, %p221
    %p224 = scmp.ne.s32.totalorder %s207, %s223
    %p225 = scmp.eq.s32.totalorder %s30, 0
    %p226 = por %p224, %p225
    %s227 = ssub.s32 %s32, %s39
    %p228 = scmp.eq.s32.totalorder %s227, 0
    %s230 = sadd.s32 %s229, 1
    %s231 = scalar_select %p228, %s229, %s230
    %p234 = pneg %p228
    %p235 = scmp.eq.s32.totalorder %s24, 1
    %p236 = por %p234, %p235
    %p237 = scmp.ne.s32.totalorder %s229, %s232
    %p238 = scmp.eq.s32.totalorder %s24, 0
    %p239 = por %p237, %p238
    %p240 = scmp.ne.s32.totalorder %s229, %s232
    %p241 = scmp.eq.s32.totalorder %s29, 1
    %p242 = por %p240, %p241
    %p243 = scmp.ne.s32.totalorder %s232, %s233
    %p244 = scmp.eq.s32.totalorder %s29, 0
    %p245 = por %p243, %p244
    %p246 = scmp.ne.s32.totalorder %s232, %s233
    %p247 = scmp.eq.s32.totalorder %s30, 1
    %p248 = por %p246, %p247
    %p250 = scmp.ne.s32.totalorder %s233, %s249
    %p251 = scmp.eq.s32.totalorder %s30, 0
    %p252 = por %p250, %p251
    %s253 = ssub.s32 %s32, %s39
    %p254 = scmp.eq.s32.totalorder %s253, 0
    %s256 = sadd.s32 %s255, 1
    %s257 = scalar_select %p254, %s255, %s256
    %p260 = pneg %p254
    %p261 = scmp.eq.s32.totalorder %s24, 1
    %p262 = por %p260, %p261
    %p263 = scmp.ne.s32.totalorder %s255, %s258
    %p264 = scmp.eq.s32.totalorder %s24, 0
    %p265 = por %p263, %p264
    %p266 = scmp.ne.s32.totalorder %s255, %s258
    %p267 = scmp.eq.s32.totalorder %s29, 1
    %p268 = por %p266, %p267
    %p269 = scmp.ne.s32.totalorder %s258, %s259
    %p270 = scmp.eq.s32.totalorder %s29, 0
    %p271 = por %p269, %p270
    %p272 = scmp.ne.s32.totalorder %s258, %s259
    %p273 = scmp.eq.s32.totalorder %s30, 1
    %p274 = por %p272, %p273
    %p276 = scmp.ne.s32.totalorder %s259, %s275
    %p277 = scmp.eq.s32.totalorder %s30, 0
    %p278 = por %p276, %p277
    %s279 = ssub.s32 %s32, %s39
    %p280 = scmp.eq.s32.totalorder %s279, 0
    %s282 = sadd.s32 %s281, 1
    %s283 = scalar_select %p280, %s281, %s282
    %p286 = pneg %p280
    %p287 = scmp.eq.s32.totalorder %s24, 1
    %p288 = por %p286, %p287
    %p289 = scmp.ne.s32.totalorder %s281, %s284
    %p290 = scmp.eq.s32.totalorder %s24, 0
    %p291 = por %p289, %p290
    %p292 = scmp.ne.s32.totalorder %s281, %s284
    %p293 = scmp.eq.s32.totalorder %s29, 1
    %p294 = por %p292, %p293
    %p295 = scmp.ne.s32.totalorder %s284, %s285
    %p296 = scmp.eq.s32.totalorder %s29, 0
    %p297 = por %p295, %p296
    %p298 = scmp.ne.s32.totalorder %s284, %s285
    %p299 = scmp.eq.s32.totalorder %s30, 1
    %p300 = por %p298, %p299
    %p302 = scmp.ne.s32.totalorder %s285, %s301
    %p303 = scmp.eq.s32.totalorder %s30, 0
    %p304 = por %p302, %p303
    %s305 = ssub.s32 %s32, %s39
    %p306 = scmp.eq.s32.totalorder %s305, 0
    %s308 = sadd.s32 %s307, 1
    %s309 = scalar_select %p306, %s307, %s308
    %p312 = pneg %p306
    %p313 = scmp.eq.s32.totalorder %s24, 1
    %p314 = por %p312, %p313
    %p315 = scmp.ne.s32.totalorder %s307, %s310
    %p316 = scmp.eq.s32.totalorder %s24, 0
    %p317 = por %p315, %p316
    %p318 = scmp.ne.s32.totalorder %s307, %s310
    %p319 = scmp.eq.s32.totalorder %s29, 1
    %p320 = por %p318, %p319
    %p321 = scmp.ne.s32.totalorder %s310, %s311
    %p322 = scmp.eq.s32.totalorder %s29, 0
    %p323 = por %p321, %p322
    %p324 = scmp.ne.s32.totalorder %s310, %s311
    %p325 = scmp.eq.s32.totalorder %s30, 1
    %p326 = por %p324, %p325
    %p328 = scmp.ne.s32.totalorder %s311, %s327
    %p329 = scmp.eq.s32.totalorder %s30, 0
    %p330 = por %p328, %p329
    %s331 = ssub.s32 %s32, %s39
    %p332 = scmp.eq.s32.totalorder %s331, 0
    %s334 = sadd.s32 %s333, 1
    %s335 = scalar_select %p332, %s333, %s334
    %p338 = pneg %p332
    %p339 = scmp.eq.s32.totalorder %s24, 1
    %p340 = por %p338, %p339
    %p341 = scmp.ne.s32.totalorder %s333, %s336
    %p342 = scmp.eq.s32.totalorder %s24, 0
    %p343 = por %p341, %p342
    %p344 = scmp.ne.s32.totalorder %s333, %s336
    %p345 = scmp.eq.s32.totalorder %s29, 1
    %p346 = por %p344, %p345
    %p347 = scmp.ne.s32.totalorder %s336, %s337
    %p348 = scmp.eq.s32.totalorder %s29, 0
    %p349 = por %p347, %p348
    %p350 = scmp.ne.s32.totalorder %s336, %s337
    %p351 = scmp.eq.s32.totalorder %s30, 1
    %p352 = por %p350, %p351
    %p354 = scmp.ne.s32.totalorder %s337, %s353
    %p355 = scmp.eq.s32.totalorder %s30, 0
    %p356 = por %p354, %p355
    %s357 = ssub.s32 %s32, %s39
    %p358 = scmp.eq.s32.totalorder %s357, 0
    %s360 = sadd.s32 %s359, 1
    %s361 = scalar_select %p358, %s359, %s360
    %p364 = pneg %p358
    %p365 = scmp.eq.s32.totalorder %s24, 1
    %p366 = por %p364, %p365
    %p367 = scmp.ne.s32.totalorder %s359, %s362
    %p368 = scmp.eq.s32.totalorder %s24, 0
    %p369 = por %p367, %p368
    %p370 = scmp.ne.s32.totalorder %s359, %s362
    %p371 = scmp.eq.s32.totalorder %s29, 1
    %p372 = por %p370, %p371
    %p373 = scmp.ne.s32.totalorder %s362, %s363
    %p374 = scmp.eq.s32.totalorder %s29, 0
    %p375 = por %p373, %p374
    %p376 = scmp.ne.s32.totalorder %s362, %s363
    %p377 = scmp.eq.s32.totalorder %s30, 1
    %p378 = por %p376, %p377
    %p380 = scmp.ne.s32.totalorder %s363, %s379
    %p381 = scmp.eq.s32.totalorder %s30, 0
    %p382 = por %p380, %p381
    %s383 = ssub.s32 %s32, %s39
    %p384 = scmp.eq.s32.totalorder %s383, 0
    %s386 = sadd.s32 %s385, 1
    %s387 = scalar_select %p384, %s385, %s386
    %p390 = pneg %p384
    %p391 = scmp.eq.s32.totalorder %s24, 1
    %p392 = por %p390, %p391
    %p393 = scmp.ne.s32.totalorder %s385, %s388
    %p394 = scmp.eq.s32.totalorder %s24, 0
    %p395 = por %p393, %p394
    %p396 = scmp.ne.s32.totalorder %s385, %s388
    %p397 = scmp.eq.s32.totalorder %s29, 1
    %p398 = por %p396, %p397
    %p399 = scmp.ne.s32.totalorder %s388, %s389
    %p400 = scmp.eq.s32.totalorder %s29, 0
    %p401 = por %p399, %p400
    %p402 = scmp.ne.s32.totalorder %s388, %s389
    %p403 = scmp.eq.s32.totalorder %s30, 1
    %p404 = por %p402, %p403
    %p406 = scmp.ne.s32.totalorder %s389, %s405
    %p407 = scmp.eq.s32.totalorder %s30, 0
    %p408 = por %p406, %p407
    %s409 = ssub.s32 %s32, %s39
    %p410 = scmp.eq.s32.totalorder %s409, 0
    %s412 = sadd.s32 %s411, 1
    %s413 = scalar_select %p410, %s411, %s412
    %p416 = pneg %p410
    %p417 = scmp.eq.s32.totalorder %s24, 1
    %p418 = por %p416, %p417
    %p419 = scmp.ne.s32.totalorder %s411, %s414
    %p420 = scmp.eq.s32.totalorder %s24, 0
    %p421 = por %p419, %p420
    %p422 = scmp.ne.s32.totalorder %s411, %s414
    %p423 = scmp.eq.s32.totalorder %s29, 1
    %p424 = por %p422, %p423
    %p425 = scmp.ne.s32.totalorder %s414, %s415
    %p426 = scmp.eq.s32.totalorder %s29, 0
    %p427 = por %p425, %p426
    %p428 = scmp.ne.s32.totalorder %s414, %s415
    %p429 = scmp.eq.s32.totalorder %s30, 1
    %p430 = por %p428, %p429
    %p432 = scmp.ne.s32.totalorder %s415, %s431
    %p433 = scmp.eq.s32.totalorder %s30, 0
    %p434 = por %p432, %p433
    %s435 = ssub.s32 %s32, %s39
    %p436 = scmp.eq.s32.totalorder %s435, 0
    %s438 = sadd.s32 %s437, 1
    %s439 = scalar_select %p436, %s437, %s438
    %p442 = pneg %p436
    %p443 = scmp.eq.s32.totalorder %s24, 1
    %p444 = por %p442, %p443
    %p445 = scmp.ne.s32.totalorder %s437, %s440
    %p446 = scmp.eq.s32.totalorder %s24, 0
    %p447 = por %p445, %p446
    %p448 = scmp.ne.s32.totalorder %s437, %s440
    %p449 = scmp.eq.s32.totalorder %s29, 1
    %p450 = por %p448, %p449
    %p451 = scmp.ne.s32.totalorder %s440, %s441
    %p452 = scmp.eq.s32.totalorder %s29, 0
    %p453 = por %p451, %p452
    %p454 = scmp.ne.s32.totalorder %s440, %s441
    %p455 = scmp.eq.s32.totalorder %s30, 1
    %p456 = por %p454, %p455
    %p458 = scmp.ne.s32.totalorder %s441, %s457
    %p459 = scmp.eq.s32.totalorder %s30, 0
    %p460 = por %p458, %p459
    %s461 = ssub.s32 %s32, %s39
    %p462 = scmp.eq.s32.totalorder %s461, 0
    %s464 = sadd.s32 %s463, 1
    %s465 = scalar_select %p462, %s463, %s464
    %p468 = pneg %p462
    %p469 = scmp.eq.s32.totalorder %s24, 1
    %p470 = por %p468, %p469
    %p471 = scmp.ne.s32.totalorder %s463, %s466
    %p472 = scmp.eq.s32.totalorder %s24, 0
    %p473 = por %p471, %p472
    %p474 = scmp.ne.s32.totalorder %s463, %s466
    %p475 = scmp.eq.s32.totalorder %s29, 1
    %p476 = por %p474, %p475
    %p477 = scmp.ne.s32.totalorder %s466, %s467
    %p478 = scmp.eq.s32.totalorder %s29, 0
    %p479 = por %p477, %p478
    %p480 = scmp.ne.s32.totalorder %s466, %s467
    %p481 = scmp.eq.s32.totalorder %s30, 1
    %p482 = por %p480, %p481
    %p484 = scmp.ne.s32.totalorder %s467, %s483
    %p485 = scmp.eq.s32.totalorder %s30, 0
    %p486 = por %p484, %p485
    %s487 = ssub.s32 %s31, %s43
    %p488 = scmp.eq.s32.totalorder %s487, 0
    %s490 = sadd.s32 %s489, 1
    %s491 = scalar_select %p488, %s489, %s490
    %p494 = pneg %p488
    %p495 = scmp.eq.s32.totalorder %s24, 1
    %p496 = por %p494, %p495
    %p497 = scmp.ne.s32.totalorder %s489, %s492
    %p498 = scmp.eq.s32.totalorder %s24, 0
    %p499 = por %p497, %p498
    %p500 = scmp.ne.s32.totalorder %s489, %s492
    %p501 = scmp.eq.s32.totalorder %s29, 1
    %p502 = por %p500, %p501
    %p503 = scmp.ne.s32.totalorder %s492, %s493
    %p504 = scmp.eq.s32.totalorder %s29, 0
    %p505 = por %p503, %p504
    %p506 = scmp.ne.s32.totalorder %s492, %s493
    %p507 = scmp.eq.s32.totalorder %s30, 1
    %p508 = por %p506, %p507
    %p510 = scmp.ne.s32.totalorder %s493, %s509
    %p511 = scmp.eq.s32.totalorder %s30, 0
    %p512 = por %p510, %p511
    %p513 = scmp.le.s32.totalorder 1, %s24
    %p514 = scmp.lt.s32.totalorder %s24, 3
    %p515 = pnand %p513, %p514
    %p516 = pneg %p515
    // Predicated region
    $region9: #{_lambda_.3} parent=5 // pred_check
      _
    $region10: #{_lambda_.3} parent=5 // pred_check_branch
      %518 = sbr.rel (%p515) target = $region12
    $region11: #{_lambda_.3} parent=5 // pred_region
      %s519 = ssub.s32 %s24, 1
      // Predicated region
      $region13: #{_lambda_.3} parent=11 // pred_check
        %p520 = pneg %p62
      $region14: #{_lambda_.3} parent=11 // pred_check_branch
        %522 = sbr.rel (%p520) target = $region16
      $region15: #{_lambda_.3} parent=11 // pred_region
        %s523 = smul.u32 2, %s33
        %p524 = scmp.lt.s32.totalorder %s523, 1
        %s525 = scalar_select %p524, %s523, 1
        %s526 = smul.addr %s525, 6
        %s527 = smul.addr %s526, 4
        %s528 = scalar_lea.vmem %s0, %s527
        %s529 = smul.u32 2, %s33
      $region16: #{_lambda_.3} parent=11 // pred_fallthru
        _
      // Predicated region
      $region17: #{_lambda_.3} parent=11 // pred_check
        %p530 = pneg %p83
      $region18: #{_lambda_.3} parent=11 // pred_check_branch
        %532 = sbr.rel (%p530) target = $region20
      $region19: #{_lambda_.3} parent=11 // pred_region
        _
      $region20: #{_lambda_.3} parent=11 // pred_fallthru
        _
      // Predicated region
      $region21: #{_lambda_.3} parent=11 // pred_check
        %p533 = pneg %p104
      $region22: #{_lambda_.3} parent=11 // pred_check_branch
        %535 = sbr.rel (%p533) target = $region24
      $region23: #{_lambda_.3} parent=11 // pred_region
        _
      $region24: #{_lambda_.3} parent=11 // pred_fallthru
        _
      // Predicated region
      $region25: #{_lambda_.3} parent=11 // pred_check
        %p536 = pneg %p125
      $region26: #{_lambda_.3} parent=11 // pred_check_branch
        %538 = sbr.rel (%p536) target = $region28
      $region27: #{_lambda_.3} parent=11 // pred_region
        _
      $region28: #{_lambda_.3} parent=11 // pred_fallthru
        _
      // Predicated region
      $region29: #{_lambda_.3} parent=11 // pred_check
        %p539 = pneg %p146
      $region30: #{_lambda_.3} parent=11 // pred_check_branch
        %541 = sbr.rel (%p539) target = $region32
      $region31: #{_lambda_.3} parent=11 // pred_region
        _
      $region32: #{_lambda_.3} parent=11 // pred_fallthru
        _
      // Predicated region
      $region33: #{_lambda_.3} parent=11 // pred_check
        %p542 = pneg %p167
      $region34: #{_lambda_.3} parent=11 // pred_check_branch
        %544 = sbr.rel (%p542) target = $region36
      $region35: #{_lambda_.3} parent=11 // pred_region
        _
      $region36: #{_lambda_.3} parent=11 // pred_fallthru
        _
    $region12: #{_lambda_.3} parent=5 // pred_fallthru
      _
    %p545 = scmp.lt.s32.totalorder %s24, 2
    // Predicated region
    $region37: #{_lambda_.3} parent=5 // pred_check
      %p546 = pneg %p545
    $region38: #{_lambda_.3} parent=5 // pred_check_branch
      %548 = sbr.rel (%p546) target = $region40
    $region39: #{_lambda_.3} parent=5 // pred_region
      // Predicated region
      $region41: #{_lambda_.3} parent=39 // pred_check
        %p549 = pneg %p187
      $region42: #{_lambda_.3} parent=39 // pred_check_branch
        %551 = sbr.rel (%p549) target = $region44
      $region43: #{_lambda_.3} parent=39 // pred_region
        %p552 = scmp.lt.s32.totalorder %s32, 1
        %s553 = scalar_select %p552, %s32, 1
        %s554 = smul.addr %s553, 4
        %s555 = smul.addr %s554, 4
        %s556 = scalar_lea.vmem %s6, %s555
      $region44: #{_lambda_.3} parent=39 // pred_fallthru
        _
      // Predicated region
      $region45: #{_lambda_.3} parent=39 // pred_check
        %p557 = pneg %p213
      $region46: #{_lambda_.3} parent=39 // pred_check_branch
        %559 = sbr.rel (%p557) target = $region48
      $region47: #{_lambda_.3} parent=39 // pred_region
        %p560 = scmp.lt.s32.totalorder %s32, 1
        %s561 = scalar_select %p560, %s32, 1
        %s562 = scalar_lea.vmem %s7, %s561
      $region48: #{_lambda_.3} parent=39 // pred_fallthru
        _
      // Predicated region
      $region49: #{_lambda_.3} parent=39 // pred_check
        %p563 = pneg %p239
      $region50: #{_lambda_.3} parent=39 // pred_check_branch
        %565 = sbr.rel (%p563) target = $region52
      $region51: #{_lambda_.3} parent=39 // pred_region
        %p566 = scmp.lt.s32.totalorder %s32, 1
        %s567 = scalar_select %p566, %s32, 1
        %s568 = smul.addr %s567, 4
        %s569 = smul.addr %s568, 4
        %s570 = scalar_lea.vmem %s8, %s569
      $region52: #{_lambda_.3} parent=39 // pred_fallthru
        _
      // Predicated region
      $region53: #{_lambda_.3} parent=39 // pred_check
        %p571 = pneg %p265
      $region54: #{_lambda_.3} parent=39 // pred_check_branch
        %573 = sbr.rel (%p571) target = $region56
      $region55: #{_lambda_.3} parent=39 // pred_region
        %p574 = scmp.lt.s32.totalorder %s32, 1
        %s575 = scalar_select %p574, %s32, 1
        %s576 = scalar_lea.vmem %s9, %s575
      $region56: #{_lambda_.3} parent=39 // pred_fallthru
        _
      // Predicated region
      $region57: #{_lambda_.3} parent=39 // pred_check
        %p577 = pneg %p291
      $region58: #{_lambda_.3} parent=39 // pred_check_branch
        %579 = sbr.rel (%p577) target = $region60
      $region59: #{_lambda_.3} parent=39 // pred_region
        %p580 = scmp.lt.s32.totalorder %s32, 1
        %s581 = scalar_select %p580, %s32, 1
        %s582 = scalar_lea.vmem %s10, %s581
      $region60: #{_lambda_.3} parent=39 // pred_fallthru
        _
      // Predicated region
      $region61: #{_lambda_.3} parent=39 // pred_check
        %p583 = pneg %p317
      $region62: #{_lambda_.3} parent=39 // pred_check_branch
        %585 = sbr.rel (%p583) target = $region64
      $region63: #{_lambda_.3} parent=39 // pred_region
        %p586 = scmp.lt.s32.totalorder %s32, 1
        %s587 = scalar_select %p586, %s32, 1
        %s588 = scalar_lea.vmem %s11, %s587
      $region64: #{_lambda_.3} parent=39 // pred_fallthru
        _
      // Predicated region
      $region65: #{_lambda_.3} parent=39 // pred_check
        %p589 = pneg %p343
      $region66: #{_lambda_.3} parent=39 // pred_check_branch
        %591 = sbr.rel (%p589) target = $region68
      $region67: #{_lambda_.3} parent=39 // pred_region
        %p592 = scmp.lt.s32.totalorder %s32, 1
        %s593 = scalar_select %p592, %s32, 1
        %s594 = smul.addr %s593, 4
        %s595 = smul.addr %s594, 4
        %s596 = scalar_lea.vmem %s12, %s595
      $region68: #{_lambda_.3} parent=39 // pred_fallthru
        _
      // Predicated region
      $region69: #{_lambda_.3} parent=39 // pred_check
        %p597 = pneg %p369
      $region70: #{_lambda_.3} parent=39 // pred_check_branch
        %599 = sbr.rel (%p597) target = $region72
      $region71: #{_lambda_.3} parent=39 // pred_region
        %p600 = scmp.lt.s32.totalorder %s32, 1
        %s601 = scalar_select %p600, %s32, 1
        %s602 = scalar_lea.vmem %s13, %s601
      $region72: #{_lambda_.3} parent=39 // pred_fallthru
        _
      // Predicated region
      $region73: #{_lambda_.3} parent=39 // pred_check
        %p603 = pneg %p395
      $region74: #{_lambda_.3} parent=39 // pred_check_branch
        %605 = sbr.rel (%p603) target = $region76
      $region75: #{_lambda_.3} parent=39 // pred_region
        %p606 = scmp.lt.s32.totalorder %s32, 1
        %s607 = scalar_select %p606, %s32, 1
        %s608 = smul.addr %s607, 16
        %s609 = smul.addr %s608, 4
        %s610 = scalar_lea.vmem %s14, %s609
      $region76: #{_lambda_.3} parent=39 // pred_fallthru
        _
      // Predicated region
      $region77: #{_lambda_.3} parent=39 // pred_check
        %p611 = pneg %p421
      $region78: #{_lambda_.3} parent=39 // pred_check_branch
        %613 = sbr.rel (%p611) target = $region80
      $region79: #{_lambda_.3} parent=39 // pred_region
        %p614 = scmp.lt.s32.totalorder %s32, 1
        %s615 = scalar_select %p614, %s32, 1
        %s616 = scalar_lea.vmem %s15, %s615
      $region80: #{_lambda_.3} parent=39 // pred_fallthru
        _
      // Predicated region
      $region81: #{_lambda_.3} parent=39 // pred_check
        %p617 = pneg %p447
      $region82: #{_lambda_.3} parent=39 // pred_check_branch
        %619 = sbr.rel (%p617) target = $region84
      $region83: #{_lambda_.3} parent=39 // pred_region
        %p620 = scmp.lt.s32.totalorder %s32, 1
        %s621 = scalar_select %p620, %s32, 1
        %s622 = scalar_lea.vmem %s16, %s621
      $region84: #{_lambda_.3} parent=39 // pred_fallthru
        _
      // Predicated region
      $region85: #{_lambda_.3} parent=39 // pred_check
        %p623 = pneg %p473
      $region86: #{_lambda_.3} parent=39 // pred_check_branch
        %625 = sbr.rel (%p623) target = $region88
      $region87: #{_lambda_.3} parent=39 // pred_region
        %p626 = scmp.lt.s32.totalorder %s32, 1
        %s627 = scalar_select %p626, %s32, 1
        %s628 = scalar_lea.vmem %s17, %s627
      $region88: #{_lambda_.3} parent=39 // pred_fallthru
        _
    $region40: #{_lambda_.3} parent=5 // pred_fallthru
      _
    %p629 = scmp.le.s32.totalorder 1, %s24
    %p630 = scmp.lt.s32.totalorder %s24, 3
    %p631 = pnand %p629, %p630
    %p632 = pneg %p631
    // Predicated region
    $region89: #{_lambda_.3} parent=5 // pred_check
      _
    $region90: #{_lambda_.3} parent=5 // pred_check_branch
      %634 = sbr.rel (%p631) target = $region92
    $region91: #{_lambda_.3} parent=5 // pred_region
      %s635 = ssub.s32 %s24, 1
      %s636 = smul.u32 2, %s33
      %p637 = scmp.lt.s32.totalorder %s636, 1
      %s638 = scalar_select %p637, %s636, 1
      %s639 = smul.addr %s638, 6
      %s640 = smul.addr %s639, 4
      %s641 = scalar_lea.vmem %s0, %s640
      %p642 = pneg %p62
      %p643 = pneg %p59
      %p644 = pneg %p83
      %p645 = pneg %p80
      %p646 = pneg %p104
      %p647 = pneg %p101
      %p648 = pneg %p125
      %p649 = pneg %p122
      %p650 = pneg %p146
      %p651 = pneg %p143
      %p652 = pneg %p167
      %p653 = pneg %p164
      %p654 = scmp.lt.s32.totalorder %s34, 1
      %s655 = scalar_select %p654, %s34, 1
      %s656 = smul.addr %s655, 4
      %s657 = smul.addr %s656, 4
      %s658 = scalar_lea.vmem %s6, %s657
      %p659 = pneg %p193
      %p660 = pneg %p190
      %p661 = scmp.lt.s32.totalorder %s34, 1
      %s662 = scalar_select %p661, %s34, 1
      %s663 = scalar_lea.vmem %s7, %s662
      %p664 = pneg %p219
      %p665 = pneg %p216
      %p666 = scmp.lt.s32.totalorder %s34, 1
      %s667 = scalar_select %p666, %s34, 1
      %s668 = smul.addr %s667, 4
      %s669 = smul.addr %s668, 4
      %s670 = scalar_lea.vmem %s8, %s669
      %p671 = pneg %p245
      %p672 = pneg %p242
      %p673 = scmp.lt.s32.totalorder %s34, 1
      %s674 = scalar_select %p673, %s34, 1
      %s675 = scalar_lea.vmem %s9, %s674
      %p676 = pneg %p271
      %p677 = pneg %p268
      %p678 = scmp.lt.s32.totalorder %s34, 1
      %s679 = scalar_select %p678, %s34, 1
      %s680 = scalar_lea.vmem %s10, %s679
      %p681 = pneg %p297
      %p682 = pneg %p294
      %p683 = scmp.lt.s32.totalorder %s34, 1
      %s684 = scalar_select %p683, %s34, 1
      %s685 = scalar_lea.vmem %s11, %s684
      %p686 = pneg %p323
      %p687 = pneg %p320
      %p688 = scmp.lt.s32.totalorder %s34, 1
      %s689 = scalar_select %p688, %s34, 1
      %s690 = smul.addr %s689, 4
      %s691 = smul.addr %s690, 4
      %s692 = scalar_lea.vmem %s12, %s691
      %p693 = pneg %p349
      %p694 = pneg %p346
      %p695 = scmp.lt.s32.totalorder %s34, 1
      %s696 = scalar_select %p695, %s34, 1
      %s697 = scalar_lea.vmem %s13, %s696
      %p698 = pneg %p375
      %p699 = pneg %p372
      %p700 = scmp.lt.s32.totalorder %s34, 1
      %s701 = scalar_select %p700, %s34, 1
      %s702 = smul.addr %s701, 16
      %s703 = smul.addr %s702, 4
      %s704 = scalar_lea.vmem %s14, %s703
      %p705 = pneg %p401
      %p706 = pneg %p398
      %p707 = scmp.lt.s32.totalorder %s34, 1
      %s708 = scalar_select %p707, %s34, 1
      %s709 = scalar_lea.vmem %s15, %s708
      %p710 = pneg %p427
      %p711 = pneg %p424
      %p712 = scmp.lt.s32.totalorder %s34, 1
      %s713 = scalar_select %p712, %s34, 1
      %s714 = scalar_lea.vmem %s16, %s713
      %p715 = pneg %p453
      %p716 = pneg %p450
      %p717 = scmp.lt.s32.totalorder %s34, 1
      %s718 = scalar_select %p717, %s34, 1
      %s719 = scalar_lea.vmem %s17, %s718
      %p720 = pneg %p479
      %p721 = pneg %p476
      %p722 = pneg %p505
      %p723 = pneg %p502
      %p724 = scmp.lt.s32.totalorder %s33, 0
      %s725 = scalar_select %p724, %s33, 0
      %s726 = smul.addr %s725, 2
      %s727 = scalar_lea.vmem %s18, %s726
      %s728 = smul.u32 2, %s33
      %p729 = scmp.lt.s32.totalorder %s728, 1
      %s730 = scalar_select %p729, %s728, 1
      %s731 = smul.addr %s730, 6
      %s732 = smul.addr %s731, 4
      %s733 = scalar_lea.vmem %s0, %s732
      %s734 = smul.u32 2, %s33
      %p735 = scmp.lt.s32.totalorder %s34, 1
      %s736 = scalar_select %p735, %s34, 1
      %s737 = smul.addr %s736, 4
      %s738 = smul.addr %s737, 4
      %s739 = scalar_lea.vmem %s6, %s738
      %p740 = scmp.lt.s32.totalorder %s34, 1
      %s741 = scalar_select %p740, %s34, 1
      %s742 = scalar_lea.vmem %s7, %s741
      %p743 = scmp.lt.s32.totalorder %s34, 1
      %s744 = scalar_select %p743, %s34, 1
      %s745 = smul.addr %s744, 4
      %s746 = smul.addr %s745, 4
      %s747 = scalar_lea.vmem %s8, %s746
      %p748 = scmp.lt.s32.totalorder %s34, 1
      %s749 = scalar_select %p748, %s34, 1
      %s750 = scalar_lea.vmem %s9, %s749
      %p751 = scmp.lt.s32.totalorder %s34, 1
      %s752 = scalar_select %p751, %s34, 1
      %s753 = scalar_lea.vmem %s10, %s752
      %p754 = scmp.lt.s32.totalorder %s34, 1
      %s755 = scalar_select %p754, %s34, 1
      %s756 = scalar_lea.vmem %s11, %s755
      %p757 = scmp.lt.s32.totalorder %s34, 1
      %s758 = scalar_select %p757, %s34, 1
      %s759 = smul.addr %s758, 4
      %s760 = smul.addr %s759, 4
      %s761 = scalar_lea.vmem %s12, %s760
      %p762 = scmp.lt.s32.totalorder %s34, 1
      %s763 = scalar_select %p762, %s34, 1
      %s764 = scalar_lea.vmem %s13, %s763
      %p765 = scmp.lt.s32.totalorder %s34, 1
      %s766 = scalar_select %p765, %s34, 1
      %s767 = smul.addr %s766, 16
      %s768 = smul.addr %s767, 4
      %s769 = scalar_lea.vmem %s14, %s768
      %p770 = scmp.lt.s32.totalorder %s34, 1
      %s771 = scalar_select %p770, %s34, 1
      %s772 = scalar_lea.vmem %s15, %s771
      %p773 = scmp.lt.s32.totalorder %s34, 1
      %s774 = scalar_select %p773, %s34, 1
      %s775 = scalar_lea.vmem %s16, %s774
      %p776 = scmp.lt.s32.totalorder %s34, 1
      %s777 = scalar_select %p776, %s34, 1
      %s778 = scalar_lea.vmem %s17, %s777
      %p779 = scmp.lt.s32.totalorder %s33, 0
      %s780 = scalar_select %p779, %s33, 0
      %s781 = smul.addr %s780, 2
      %s782 = scalar_lea.vmem %s18, %s781
      %p784 = scmp.eq.s32.totalorder %s34, 0
      // Predicated region
      $region93: #{_lambda_.3} parent=91 // pred_check
        %p785 = pneg %p784
      $region94: #{_lambda_.3} parent=91 // pred_check_branch
        %787 = sbr.rel (%p785) target = $region96
      $region95: #{_lambda_.3} parent=91 // pred_region
        %v788 = vld [vmem:[%s733] sm:$0xff]
        %v789 = vld [vmem:[%s733 + $0x8] sm:$0xff]
        %v790 = vld [vmem:[%s733 + $0x10] sm:$0xff]
        %v791 = vld [vmem:[%s733 + $0x18] sm:$0xff]
        %v792 = vld [vmem:[%s733 + $0x20] sm:$0xff]
        %v793 = vld [vmem:[%s733 + $0x28] sm:$0xff]
        %800 = vst [vmem:[#allocation1] ss:$2 sm:$0xff] %v788
        %s801 = scalar_lea.vmem [#allocation1], 1
        %802 = vst [vmem:[%s801] ss:$2 sm:$0xff] %v791
        %s803 = scalar_lea.vmem [#allocation1], 16
        %804 = vst [vmem:[%s803] ss:$2 sm:$0xff] %v789
        %s805 = scalar_lea.vmem [#allocation1], 17
        %806 = vst [vmem:[%s805] ss:$2 sm:$0xff] %v792
        %s807 = scalar_lea.vmem [#allocation1], 32
        %808 = vst [vmem:[%s807] ss:$2 sm:$0xff] %v790
        %s809 = scalar_lea.vmem [#allocation1], 33
        %810 = vst [vmem:[%s809] ss:$2 sm:$0xff] %v793
        %v811 = vld.sshfl [vmem:[#allocation1] sm:$0xff pattern:$0x75316420]
        %v812 = vld.sshfl [vmem:[#allocation1 + $0x8] sm:$0xff pattern:$0x75316420]
        %v813 = vld.sshfl [vmem:[#allocation1 + $0x10] sm:$0xff pattern:$0x75316420]
        %v814 = vld.sshfl [vmem:[#allocation1 + $0x18] sm:$0xff pattern:$0x75316420]
        %v815 = vld.sshfl [vmem:[#allocation1 + $0x20] sm:$0xff pattern:$0x75316420]
        %v816 = vld.sshfl [vmem:[#allocation1 + $0x28] sm:$0xff pattern:$0x75316420]
        %v823 = vpack.c.bf16 %v811, %v811
        %v824 = vpack.c.bf16 %v812, %v812
        %v825 = vpack.c.bf16 %v813, %v813
        %v826 = vpack.c.bf16 %v814, %v814
        %v827 = vpack.c.bf16 %v815, %v815
        %v828 = vpack.c.bf16 %v816, %v816
        %v829 = vld [vmem:[%s1] sm:$0xf]
        %v830 = vld [vmem:[%s1 + $0x4] sm:$0xf]
        %v831 = vld [vmem:[%s1 + $0x8] sm:$0xf]
        %v832 = vld [vmem:[%s1 + $0xc] sm:$0xf]
        %v833 = vld [vmem:[%s1 + $0x10] sm:$0xf]
        %v834 = vld [vmem:[%s1 + $0x14] sm:$0xf]
        %v835 = vld [vmem:[%s1 + $0x18] sm:$0xf]
        %v836 = vld [vmem:[%s1 + $0x1c] sm:$0xf]
        %v837 = vld [vmem:[%s1 + $0x20] sm:$0xf]
        %v838 = vld [vmem:[%s1 + $0x24] sm:$0xf]
        %v839 = vld [vmem:[%s1 + $0x28] sm:$0xf]
        %v840 = vld [vmem:[%s1 + $0x2c] sm:$0xf]
        %v841 = vld [vmem:[%s1 + $0x30] sm:$0xf]
        %v842 = vld [vmem:[%s1 + $0x34] sm:$0xf]
        %v843 = vld [vmem:[%s1 + $0x38] sm:$0xf]
        %v844 = vld [vmem:[%s1 + $0x3c] sm:$0xf]
        %v845 = vld [vmem:[%s1 + $0x40] sm:$0xf]
        %v846 = vld [vmem:[%s1 + $0x44] sm:$0xf]
        %v847 = vld [vmem:[%s1 + $0x48] sm:$0xf]
        %v848 = vld [vmem:[%s1 + $0x4c] sm:$0xf]
        %v849 = vld [vmem:[%s1 + $0x50] sm:$0xf]
        %v850 = vld [vmem:[%s1 + $0x54] sm:$0xf]
        %v851 = vld [vmem:[%s1 + $0x58] sm:$0xf]
        %v852 = vld [vmem:[%s1 + $0x5c] sm:$0xf]
        %v853 = vld [vmem:[%s1 + $0x60] sm:$0xf]
        %v854 = vld [vmem:[%s1 + $0x64] sm:$0xf]
        %v855 = vld [vmem:[%s1 + $0x68] sm:$0xf]
        %v856 = vld [vmem:[%s1 + $0x6c] sm:$0xf]
        %v857 = vld [vmem:[%s1 + $0x70] sm:$0xf]
        %v858 = vld [vmem:[%s1 + $0x74] sm:$0xf]
        %v859 = vld [vmem:[%s1 + $0x78] sm:$0xf]
        %v860 = vld [vmem:[%s1 + $0x7c] sm:$0xf]
        %v861 = vld [vmem:[%s1 + $0x80] sm:$0xf]
        %v862 = vld [vmem:[%s1 + $0x84] sm:$0xf]
        %v863 = vld [vmem:[%s1 + $0x88] sm:$0xf]
        %v864 = vld [vmem:[%s1 + $0x8c] sm:$0xf]
        %v865 = vld [vmem:[%s1 + $0x90] sm:$0xf]
        %v866 = vld [vmem:[%s1 + $0x94] sm:$0xf]
        %v867 = vld [vmem:[%s1 + $0x98] sm:$0xf]
        %v868 = vld [vmem:[%s1 + $0x9c] sm:$0xf]
        %v869 = vld [vmem:[%s1 + $0xa0] sm:$0xf]
        %v870 = vld [vmem:[%s1 + $0xa4] sm:$0xf]
        %v871 = vld [vmem:[%s1 + $0xa8] sm:$0xf]
        %v872 = vld [vmem:[%s1 + $0xac] sm:$0xf]
        %v873 = vld [vmem:[%s1 + $0xb0] sm:$0xf]
        %v874 = vld [vmem:[%s1 + $0xb4] sm:$0xf]
        %v875 = vld [vmem:[%s1 + $0xb8] sm:$0xf]
        %v876 = vld [vmem:[%s1 + $0xbc] sm:$0xf]
        %v877 = vld [vmem:[%s1 + $0xc0] sm:$0xf]
        %v878 = vld [vmem:[%s1 + $0xc4] sm:$0xf]
        %v879 = vld [vmem:[%s1 + $0xc8] sm:$0xf]
        %v880 = vld [vmem:[%s1 + $0xcc] sm:$0xf]
        %v881 = vld [vmem:[%s1 + $0xd0] sm:$0xf]
        %v882 = vld [vmem:[%s1 + $0xd4] sm:$0xf]
        %v883 = vld [vmem:[%s1 + $0xd8] sm:$0xf]
        %v884 = vld [vmem:[%s1 + $0xdc] sm:$0xf]
        %v885 = vld [vmem:[%s1 + $0xe0] sm:$0xf]
        %v886 = vld [vmem:[%s1 + $0xe4] sm:$0xf]
        %v887 = vld [vmem:[%s1 + $0xe8] sm:$0xf]
        %v888 = vld [vmem:[%s1 + $0xec] sm:$0xf]
        %v889 = vld [vmem:[%s1 + $0xf0] sm:$0xf]
        %v890 = vld [vmem:[%s1 + $0xf4] sm:$0xf]
        %v891 = vld [vmem:[%s1 + $0xf8] sm:$0xf]
        %v892 = vld [vmem:[%s1 + $0xfc] sm:$0xf]
        %v893 = vld [vmem:[%s1 + $0x100] sm:$0xf]
        %v894 = vld [vmem:[%s1 + $0x104] sm:$0xf]
        %v895 = vld [vmem:[%s1 + $0x108] sm:$0xf]
        %v896 = vld [vmem:[%s1 + $0x10c] sm:$0xf]
        %v897 = vld [vmem:[%s1 + $0x110] sm:$0xf]
        %v898 = vld [vmem:[%s1 + $0x114] sm:$0xf]
        %v899 = vld [vmem:[%s1 + $0x118] sm:$0xf]
        %v900 = vld [vmem:[%s1 + $0x11c] sm:$0xf]
        %v901 = vld [vmem:[%s1 + $0x120] sm:$0xf]
        %v902 = vld [vmem:[%s1 + $0x124] sm:$0xf]
        %v903 = vld [vmem:[%s1 + $0x128] sm:$0xf]
        %v904 = vld [vmem:[%s1 + $0x12c] sm:$0xf]
        %v905 = vld [vmem:[%s1 + $0x130] sm:$0xf]
        %v906 = vld [vmem:[%s1 + $0x134] sm:$0xf]
        %v907 = vld [vmem:[%s1 + $0x138] sm:$0xf]
        %v908 = vld [vmem:[%s1 + $0x13c] sm:$0xf]
        %v909 = vld [vmem:[%s1 + $0x140] sm:$0xf]
        %v910 = vld [vmem:[%s1 + $0x144] sm:$0xf]
        %v911 = vld [vmem:[%s1 + $0x148] sm:$0xf]
        %v912 = vld [vmem:[%s1 + $0x14c] sm:$0xf]
        %v913 = vld [vmem:[%s1 + $0x150] sm:$0xf]
        %v914 = vld [vmem:[%s1 + $0x154] sm:$0xf]
        %v915 = vld [vmem:[%s1 + $0x158] sm:$0xf]
        %v916 = vld [vmem:[%s1 + $0x15c] sm:$0xf]
        %v917 = vld [vmem:[%s1 + $0x160] sm:$0xf]
        %v918 = vld [vmem:[%s1 + $0x164] sm:$0xf]
        %v919 = vld [vmem:[%s1 + $0x168] sm:$0xf]
        %v920 = vld [vmem:[%s1 + $0x16c] sm:$0xf]
        %v921 = vld [vmem:[%s1 + $0x170] sm:$0xf]
        %v922 = vld [vmem:[%s1 + $0x174] sm:$0xf]
        %v923 = vld [vmem:[%s1 + $0x178] sm:$0xf]
        %v924 = vld [vmem:[%s1 + $0x17c] sm:$0xf]
        %v925 = vld [vmem:[%s2] sm:$0x1]
        %v927 = vperm.slane %v925, 0
        %v1025 = vunpack.c.l.b16 %v829
        %v1026 = vunpack.c.l.b16 %v830
        %v1027 = vunpack.c.l.b16 %v831
        %v1028 = vunpack.c.l.b16 %v832
        %v1029 = vunpack.c.l.b16 %v833
        %v1030 = vunpack.c.l.b16 %v834
        %v1031 = vunpack.c.l.b16 %v835
        %v1032 = vunpack.c.l.b16 %v836
        %v1033 = vunpack.c.l.b16 %v837
        %v1034 = vunpack.c.l.b16 %v838
        %v1035 = vunpack.c.l.b16 %v839
        %v1036 = vunpack.c.l.b16 %v840
        %v1037 = vunpack.c.l.b16 %v841
        %v1038 = vunpack.c.l.b16 %v842
        %v1039 = vunpack.c.l.b16 %v843
        %v1040 = vunpack.c.l.b16 %v844
        %v1041 = vunpack.c.l.b16 %v845
        %v1042 = vunpack.c.l.b16 %v846
        %v1043 = vunpack.c.l.b16 %v847
        %v1044 = vunpack.c.l.b16 %v848
        %v1045 = vunpack.c.l.b16 %v849
        %v1046 = vunpack.c.l.b16 %v850
        %v1047 = vunpack.c.l.b16 %v851
        %v1048 = vunpack.c.l.b16 %v852
        %v1049 = vunpack.c.l.b16 %v853
        %v1050 = vunpack.c.l.b16 %v854
        %v1051 = vunpack.c.l.b16 %v855
        %v1052 = vunpack.c.l.b16 %v856
        %v1053 = vunpack.c.l.b16 %v857
        %v1054 = vunpack.c.l.b16 %v858
        %v1055 = vunpack.c.l.b16 %v859
        %v1056 = vunpack.c.l.b16 %v860
        %v1057 = vunpack.c.l.b16 %v861
        %v1058 = vunpack.c.l.b16 %v862
        %v1059 = vunpack.c.l.b16 %v863
        %v1060 = vunpack.c.l.b16 %v864
        %v1061 = vunpack.c.l.b16 %v865
        %v1062 = vunpack.c.l.b16 %v866
        %v1063 = vunpack.c.l.b16 %v867
        %v1064 = vunpack.c.l.b16 %v868
        %v1065 = vunpack.c.l.b16 %v869
        %v1066 = vunpack.c.l.b16 %v870
        %v1067 = vunpack.c.l.b16 %v871
        %v1068 = vunpack.c.l.b16 %v872
        %v1069 = vunpack.c.l.b16 %v873
        %v1070 = vunpack.c.l.b16 %v874
        %v1071 = vunpack.c.l.b16 %v875
        %v1072 = vunpack.c.l.b16 %v876
        %v1073 = vunpack.c.l.b16 %v877
        %v1074 = vunpack.c.l.b16 %v878
        %v1075 = vunpack.c.l.b16 %v879
        %v1076 = vunpack.c.l.b16 %v880
        %v1077 = vunpack.c.l.b16 %v881
        %v1078 = vunpack.c.l.b16 %v882
        %v1079 = vunpack.c.l.b16 %v883
        %v1080 = vunpack.c.l.b16 %v884
        %v1081 = vunpack.c.l.b16 %v885
        %v1082 = vunpack.c.l.b16 %v886
        %v1083 = vunpack.c.l.b16 %v887
        %v1084 = vunpack.c.l.b16 %v888
        %v1085 = vunpack.c.l.b16 %v889
        %v1086 = vunpack.c.l.b16 %v890
        %v1087 = vunpack.c.l.b16 %v891
        %v1088 = vunpack.c.l.b16 %v892
        %v1089 = vunpack.c.l.b16 %v893
        %v1090 = vunpack.c.l.b16 %v894
        %v1091 = vunpack.c.l.b16 %v895
        %v1092 = vunpack.c.l.b16 %v896
        %v1093 = vunpack.c.l.b16 %v897
        %v1094 = vunpack.c.l.b16 %v898
        %v1095 = vunpack.c.l.b16 %v899
        %v1096 = vunpack.c.l.b16 %v900
        %v1097 = vunpack.c.l.b16 %v901
        %v1098 = vunpack.c.l.b16 %v902
        %v1099 = vunpack.c.l.b16 %v903
        %v1100 = vunpack.c.l.b16 %v904
        %v1101 = vunpack.c.l.b16 %v905
        %v1102 = vunpack.c.l.b16 %v906
        %v1103 = vunpack.c.l.b16 %v907
        %v1104 = vunpack.c.l.b16 %v908
        %v1105 = vunpack.c.l.b16 %v909
        %v1106 = vunpack.c.l.b16 %v910
        %v1107 = vunpack.c.l.b16 %v911
        %v1108 = vunpack.c.l.b16 %v912
        %v1109 = vunpack.c.l.b16 %v913
        %v1110 = vunpack.c.l.b16 %v914
        %v1111 = vunpack.c.l.b16 %v915
        %v1112 = vunpack.c.l.b16 %v916
        %v1113 = vunpack.c.l.b16 %v917
        %v1114 = vunpack.c.l.b16 %v918
        %v1115 = vunpack.c.l.b16 %v919
        %v1116 = vunpack.c.l.b16 %v920
        %v1117 = vunpack.c.l.b16 %v921
        %v1118 = vunpack.c.l.b16 %v922
        %v1119 = vunpack.c.l.b16 %v923
        %v1120 = vunpack.c.l.b16 %v924
        %v1121 = vpack.c.b16 %v1026, %v1025
        %v1122 = vpack.c.b16 %v1028, %v1027
        %v1123 = vpack.c.b16 %v1030, %v1029
        %v1124 = vpack.c.b16 %v1032, %v1031
        %v1125 = vpack.c.b16 %v1034, %v1033
        %v1126 = vpack.c.b16 %v1036, %v1035
        %v1127 = vpack.c.b16 %v1038, %v1037
        %v1128 = vpack.c.b16 %v1040, %v1039
        %v1129 = vpack.c.b16 %v1042, %v1041
        %v1130 = vpack.c.b16 %v1044, %v1043
        %v1131 = vpack.c.b16 %v1046, %v1045
        %v1132 = vpack.c.b16 %v1048, %v1047
        %v1133 = vpack.c.b16 %v1050, %v1049
        %v1134 = vpack.c.b16 %v1052, %v1051
        %v1135 = vpack.c.b16 %v1054, %v1053
        %v1136 = vpack.c.b16 %v1056, %v1055
        %v1137 = vpack.c.b16 %v1058, %v1057
        %v1138 = vpack.c.b16 %v1060, %v1059
        %v1139 = vpack.c.b16 %v1062, %v1061
        %v1140 = vpack.c.b16 %v1064, %v1063
        %v1141 = vpack.c.b16 %v1066, %v1065
        %v1142 = vpack.c.b16 %v1068, %v1067
        %v1143 = vpack.c.b16 %v1070, %v1069
        %v1144 = vpack.c.b16 %v1072, %v1071
        %v1145 = vpack.c.b16 %v1074, %v1073
        %v1146 = vpack.c.b16 %v1076, %v1075
        %v1147 = vpack.c.b16 %v1078, %v1077
        %v1148 = vpack.c.b16 %v1080, %v1079
        %v1149 = vpack.c.b16 %v1082, %v1081
        %v1150 = vpack.c.b16 %v1084, %v1083
        %v1151 = vpack.c.b16 %v1086, %v1085
        %v1152 = vpack.c.b16 %v1088, %v1087
        %v1153 = vpack.c.b16 %v1090, %v1089
        %v1154 = vpack.c.b16 %v1092, %v1091
        %v1155 = vpack.c.b16 %v1094, %v1093
        %v1156 = vpack.c.b16 %v1096, %v1095
        %v1157 = vpack.c.b16 %v1098, %v1097
        %v1158 = vpack.c.b16 %v1100, %v1099
        %v1159 = vpack.c.b16 %v1102, %v1101
        %v1160 = vpack.c.b16 %v1104, %v1103
        %v1161 = vpack.c.b16 %v1106, %v1105
        %v1162 = vpack.c.b16 %v1108, %v1107
        %v1163 = vpack.c.b16 %v1110, %v1109
        %v1164 = vpack.c.b16 %v1112, %v1111
        %v1165 = vpack.c.b16 %v1114, %v1113
        %v1166 = vpack.c.b16 %v1116, %v1115
        %v1167 = vpack.c.b16 %v1118, %v1117
        %v1168 = vpack.c.b16 %v1120, %v1119
        %1217 = vmatpush.bf16.msra.mxu0 %v1128
        %1218 = vmatpush.bf16.msra.mxu0 %v1127
        %1219 = vmatpush.bf16.msra.mxu0 %v1126
        %1220 = vmatpush.bf16.msra.mxu0 %v1125
        %1221 = vmatpush.bf16.msra.mxu0 %v1124
        %1222 = vmatpush.bf16.msra.mxu0 %v1123
        %1223 = vmatpush.bf16.msra.mxu0 %v1122
        %1224 = vmatpush.bf16.msra.mxu0 %v1121
        %1225 = vmatmul.bf16.gmra.mxu0 %v823
        %v1226 = vpop.f32.mrf.mxu0
        %v1227 = vadd.f32 %v927, %v1226
        %v1228 = vpop.f32.mrf.mxu0
        %1229 = vdwg.mxu0
        %1230 = vmatpush.bf16.msra.mxu0 %v1136
        %1231 = vmatpush.bf16.msra.mxu0 %v1135
        %1232 = vmatpush.bf16.msra.mxu0 %v1134
        %1233 = vmatpush.bf16.msra.mxu0 %v1133
        %1234 = vmatpush.bf16.msra.mxu0 %v1132
        %1235 = vmatpush.bf16.msra.mxu0 %v1131
        %1236 = vmatpush.bf16.msra.mxu0 %v1130
        %1237 = vmatpush.bf16.msra.mxu0 %v1129
        %1238 = vmatmul.bf16.gmra.mxu0 %v824
        %v1239 = vpop.f32.mrf.mxu0
        %v1240 = vadd.f32 %v1227, %v1239
        %v1241 = vpop.f32.mrf.mxu0
        %1242 = vdwg.mxu0
        %1243 = vmatpush.bf16.msra.mxu0 %v1144
        %1244 = vmatpush.bf16.msra.mxu0 %v1143
        %1245 = vmatpush.bf16.msra.mxu0 %v1142
        %1246 = vmatpush.bf16.msra.mxu0 %v1141
        %1247 = vmatpush.bf16.msra.mxu0 %v1140
        %1248 = vmatpush.bf16.msra.mxu0 %v1139
        %1249 = vmatpush.bf16.msra.mxu0 %v1138
        %1250 = vmatpush.bf16.msra.mxu0 %v1137
        %1251 = vmatmul.bf16.gmra.mxu0 %v825
        %v1252 = vpop.f32.mrf.mxu0
        %v1253 = vadd.f32 %v1240, %v1252
        %v1254 = vpop.f32.mrf.mxu0
        %1255 = vdwg.mxu0
        %1256 = vmatpush.bf16.msra.mxu0 %v1152
        %1257 = vmatpush.bf16.msra.mxu0 %v1151
        %1258 = vmatpush.bf16.msra.mxu0 %v1150
        %1259 = vmatpush.bf16.msra.mxu0 %v1149
        %1260 = vmatpush.bf16.msra.mxu0 %v1148
        %1261 = vmatpush.bf16.msra.mxu0 %v1147
        %1262 = vmatpush.bf16.msra.mxu0 %v1146
        %1263 = vmatpush.bf16.msra.mxu0 %v1145
        %1264 = vmatmul.bf16.gmra.mxu0 %v826
        %v1265 = vpop.f32.mrf.mxu0
        %v1266 = vadd.f32 %v1253, %v1265
        %v1267 = vpop.f32.mrf.mxu0
        %1268 = vdwg.mxu0
        %1269 = vmatpush.bf16.msra.mxu0 %v1160
        %1270 = vmatpush.bf16.msra.mxu0 %v1159
        %1271 = vmatpush.bf16.msra.mxu0 %v1158
        %1272 = vmatpush.bf16.msra.mxu0 %v1157
        %1273 = vmatpush.bf16.msra.mxu0 %v1156
        %1274 = vmatpush.bf16.msra.mxu0 %v1155
        %1275 = vmatpush.bf16.msra.mxu0 %v1154
        %1276 = vmatpush.bf16.msra.mxu0 %v1153
        %1277 = vmatmul.bf16.gmra.mxu0 %v827
        %v1278 = vpop.f32.mrf.mxu0
        %v1279 = vadd.f32 %v1266, %v1278
        %v1280 = vpop.f32.mrf.mxu0
        %1281 = vdwg.mxu0
        %1282 = vmatpush.bf16.msra.mxu0 %v1168
        %1283 = vmatpush.bf16.msra.mxu0 %v1167
        %1284 = vmatpush.bf16.msra.mxu0 %v1166
        %1285 = vmatpush.bf16.msra.mxu0 %v1165
        %1286 = vmatpush.bf16.msra.mxu0 %v1164
        %1287 = vmatpush.bf16.msra.mxu0 %v1163
        %1288 = vmatpush.bf16.msra.mxu0 %v1162
        %1289 = vmatpush.bf16.msra.mxu0 %v1161
        %1290 = vmatmul.bf16.gmra.mxu0 %v828
        %v1291 = vpop.f32.mrf.mxu0
        %v1292 = vadd.f32 %v1279, %v1291
        %v1293 = vpop.f32.mrf.mxu0
        %1294 = vdwg.mxu0
        %v1296 = vrot.slane %v1292, 4
        %1297 = vst [vmem:[#allocation1] ss:$2 sm:$0xff] %v1292
        %v1298 = vld.sshfl [vmem:[#allocation1] sm:$0xff pattern:$0x75316420]
        %s1299 = scalar_lea.vmem [#allocation1], 16
        %1300 = vst [vmem:[%s1299] ss:$2 sm:$0xff] %v1296
        %v1301 = vld.sshfl [vmem:[#allocation1 + $0x10] sm:$0xff pattern:$0x75316420]
        %v1302 = vrot.slane %v1298, 7
        %v1303 = vrot.slane %v1301, 7
        %vm1306 = vcmask 1040384
        %v1307 = vsel %vm1306, 0.0, %v1302
        %v1308 = vsel %vm1306, 0.0, %v1303
        %vm1309 = vcmask 1044480
        %v1310 = vsel %vm1309, %v1307, 0.0
        %v1311 = vsel %vm1309, %v1308, 0.0
        %v1312 = vld [vmem:[%s3] sm:$0xff]
        %v1313 = vadd.f32 %v1310, %v1312
        %v1314 = vadd.f32 %v1311, %v1312
        %vm1315 = vcmask 261120
        %1316 = vst.msk [vmem:[#allocation2] sm:$0xff] %vm1315, %v1313
        %1317 = vst.msk [vmem:[#allocation2 + $0x8] sm:$0xff] %vm1315, %v1314
      $region96: #{_lambda_.3} parent=91 // pred_fallthru
        _
      %v1318 = vld [vmem:[#allocation2] sm:$0xff]
      %v1319 = vld [vmem:[#allocation2 + $0x8] sm:$0xff]
      %v1320 = vpack.c.bf16 %v1319, %v1318
      %v1321 = vld [vmem:[%s739] sm:$0xf]
      %v1322 = vld [vmem:[%s739 + $0x4] sm:$0xf]
      %v1323 = vld [vmem:[%s739 + $0x8] sm:$0xf]
      %v1324 = vld [vmem:[%s739 + $0xc] sm:$0xf]
      %v1325 = vld [vmem:[%s742] sm:$0x1]
      %v1327 = vperm.slane %v1325, 0
      %v1333 = vunpack.c.l.b16 %v1321
      %v1334 = vunpack.c.l.b16 %v1322
      %v1335 = vunpack.c.l.b16 %v1323
      %v1336 = vunpack.c.l.b16 %v1324
      %v1337 = vpack.c.b16 %v1334, %v1333
      %v1338 = vpack.c.b16 %v1336, %v1335
      %vm1341 = vcmask 261120
      %v1343 = vsel %vm1341, %v1320, 0
      %1345 = vmatpush.bf16.msra.mxu0 0
      %1346 = vmatpush.bf16.msra.mxu0 0
      %1347 = vmatpush.bf16.msra.mxu0 0
      %1348 = vmatpush.bf16.msra.mxu0 0
      %1349 = vmatpush.bf16.msra.mxu0 0
      %1350 = vmatpush.bf16.msra.mxu0 0
      %1351 = vmatpush.bf16.msra.mxu0 %v1338
      %1352 = vmatpush.bf16.msra.mxu0 %v1337
      %1353 = vmatmul.bf16.gmra.mxu0 %v1343
      %v1354 = vpop.f32.mrf.mxu0
      %v1355 = vadd.f32 %v1327, %v1354
      %v1356 = vpop.f32.mrf.mxu0
      %v1357 = vadd.f32 %v1327, %v1356
      %1358 = vdwg.mxu0
      %v1359 = vlaneseq
      %v1360 = vand.u32 %v1359, 127
      %vm1361 = vcmp.lt.s32.totalorder %v1360, 5
      %v1362 = vld [vmem:[%s747] sm:$0xf]
      %v1363 = vld [vmem:[%s747 + $0x4] sm:$0xf]
      %v1364 = vld [vmem:[%s747 + $0x8] sm:$0xf]
      %v1365 = vld [vmem:[%s747 + $0xc] sm:$0xf]
      %v1366 = vpack.c.bf16 %v1355, %v1355
      %v1367 = vpack.c.bf16 %v1357, %v1357
      %v1369 = vunpack.c.l.b16 %v1366
      %v1370 = vpack.c.b16 %v1369, %v1369
      %1371 = vrot.lane.b32.xlu0 %v1370, 96
      %v1372 = vpop.permute.xlu0 %1371
      %vm1373 = vcmask 64512
      %v1375 = vsel %vm1373, %v1366, 0
      %v1378 = vsel %vm1373, %v1372, 0
      %1380 = vmatpush.bf16.xpose.msra.mxu0 0
      %1381 = vmatpush.bf16.xpose.msra.mxu0 0
      %1382 = vmatpush.bf16.xpose.msra.mxu0 0
      %1383 = vmatpush.bf16.xpose.msra.mxu0 0
      %1384 = vmatpush.bf16.xpose.msra.mxu0 0
      %1385 = vmatpush.bf16.xpose.msra.mxu0 0
      %1386 = vmatpush.bf16.xpose.msra.mxu0 0
      %1387 = vmatpush.bf16.xpose.msra.mxu0 %v1378
      %1388 = vmatmul.bf16.gmra.mxu0 %v1375
      %v1389 = vpop.f32.mrf.mxu0
      %v1390 = vadd.f32 0.0, %v1389
      %v1391 = vpop.f32.mrf.mxu0
      %1392 = vdwg.mxu0
      %v1394 = vunpack.c.l.b16 %v1367
      %v1395 = vpack.c.b16 %v1394, %v1394
      %1396 = vrot.lane.b32.xlu0 %v1395, 96
      %v1397 = vpop.permute.xlu0 %1396
      %v1399 = vsel %vm1373, %v1367, 0
      %v1402 = vsel %vm1373, %v1397, 0
      %1404 = vmatpush.bf16.xpose.msra.mxu0 0
      %1405 = vmatpush.bf16.xpose.msra.mxu0 0
      %1406 = vmatpush.bf16.xpose.msra.mxu0 0
      %1407 = vmatpush.bf16.xpose.msra.mxu0 0
      %1408 = vmatpush.bf16.xpose.msra.mxu0 0
      %1409 = vmatpush.bf16.xpose.msra.mxu0 0
      %1410 = vmatpush.bf16.xpose.msra.mxu0 0
      %1411 = vmatpush.bf16.xpose.msra.mxu0 %v1402
      %1412 = vmatmul.bf16.gmra.mxu0 %v1399
      %v1413 = vpop.f32.mrf.mxu0
      %v1414 = vadd.f32 0.0, %v1413
      %v1415 = vpop.f32.mrf.mxu0
      %1416 = vdwg.mxu0
      %v1417 = vsel %vm1361, 1, 0
      %vm1418 = vcmp.eq.s32.totalorder %v1417, 1
      %v1419 = vsel %vm1418, %v1390, -1e+30
      %v1420 = vsel %vm1418, %v1414, -1e+30
      %v1421 = vsel %vm1373, %v1419, -inf
      %1422 = vmax.xlane.f32.xlu0 %v1421
      %v1423 = vpop.xlane.xlu0 %1422
      %v1424 = vsel %vm1373, %v1420, -inf
      %1425 = vmax.xlane.f32.xlu0 %v1424
      %v1426 = vpop.xlane.xlu0 %1425
      %v1427 = vsub.f32 %v1419, %v1423
      %v1428 = vsub.f32 %v1420, %v1426
      %v1429 = vmul.f32 %v1427, 1.442695
      %v1430 = vpow.pop %v1429
      %v1431 = vmul.f32 %v1428, 1.442695
      %v1432 = vpow.pop %v1431
      %v1433 = vsel %vm1373, %v1430, 0.0
      %1434 = vadd.xlane.f32.xlu0 %v1433
      %v1435 = vpop.xlane.xlu0 %1434
      %v1436 = vsel %vm1373, %v1432, 0.0
      %1437 = vadd.xlane.f32.xlu0 %v1436
      %v1438 = vpop.xlane.xlu0 %1437
      %v1439 = vrcp.pop %v1435
      %v1440 = vrcp.pop %v1438
      %v1441 = vmul.f32 %v1430, %v1439
      %v1442 = vmul.f32 %v1432, %v1440
      %v1443 = vpack.c.bf16 %v1441, %v1441
      %v1444 = vpack.c.bf16 %v1442, %v1442
      %1445 = vrot.lane.b32.xlu0 %v1370, 64
      %v1446 = vpop.permute.xlu0 %1445
      %v1448 = vsel %vm1373, %v1443, 0
      %vm1450 = vcmask 1043456
      %v1452 = vsel %vm1450, %v1446, 0
      %1454 = vmatpush.bf16.msra.mxu0 0
      %1455 = vmatpush.bf16.msra.mxu0 0
      %1456 = vmatpush.bf16.msra.mxu0 0
      %1457 = vmatpush.bf16.msra.mxu0 0
      %1458 = vmatpush.bf16.msra.mxu0 0
      %1459 = vmatpush.bf16.msra.mxu0 0
      %1460 = vmatpush.bf16.msra.mxu0 0
      %1461 = vmatpush.bf16.msra.mxu0 %v1452
      %1462 = vmatmul.bf16.gmra.mxu0 %v1448
      %v1463 = vpop.f32.mrf.mxu0
      %v1464 = vadd.f32 0.0, %v1463
      %v1465 = vpop.f32.mrf.mxu0
      %1466 = vdwg.mxu0
      %1467 = vrot.lane.b32.xlu0 %v1395, 64
      %v1468 = vpop.permute.xlu0 %1467
      %v1470 = vsel %vm1373, %v1444, 0
      %v1473 = vsel %vm1450, %v1468, 0
      %1475 = vmatpush.bf16.msra.mxu0 0
      %1476 = vmatpush.bf16.msra.mxu0 0
      %1477 = vmatpush.bf16.msra.mxu0 0
      %1478 = vmatpush.bf16.msra.mxu0 0
      %1479 = vmatpush.bf16.msra.mxu0 0
      %1480 = vmatpush.bf16.msra.mxu0 0
      %1481 = vmatpush.bf16.msra.mxu0 0
      %1482 = vmatpush.bf16.msra.mxu0 %v1473
      %1483 = vmatmul.bf16.gmra.mxu0 %v1470
      %v1484 = vpop.f32.mrf.mxu0
      %v1485 = vadd.f32 0.0, %v1484
      %v1486 = vpop.f32.mrf.mxu0
      %1487 = vdwg.mxu0
      %v1488 = vpack.c.bf16 %v1485, %v1464
      %1489 = vrot.lane.b32.xlu0 %v1370, 120
      %v1490 = vpop.permute.xlu0 %1489
      %1491 = vrot.lane.b32.xlu0 %v1370, 88
      %v1492 = vpop.permute.xlu0 %1491
      %v1494 = vsel %vm1373, %v1490, 0
      %v1497 = vsel %vm1373, %v1492, 0
      %1499 = vmatpush.bf16.xpose.msra.mxu0 0
      %1500 = vmatpush.bf16.xpose.msra.mxu0 0
      %1501 = vmatpush.bf16.xpose.msra.mxu0 0
      %1502 = vmatpush.bf16.xpose.msra.mxu0 0
      %1503 = vmatpush.bf16.xpose.msra.mxu0 0
      %1504 = vmatpush.bf16.xpose.msra.mxu0 0
      %1505 = vmatpush.bf16.xpose.msra.mxu0 0
      %1506 = vmatpush.bf16.xpose.msra.mxu0 %v1497
      %1507 = vmatmul.bf16.gmra.mxu0 %v1494
      %v1508 = vpop.f32.mrf.mxu0
      %v1509 = vadd.f32 0.0, %v1508
      %v1510 = vpop.f32.mrf.mxu0
      %1511 = vdwg.mxu0
      %1512 = vrot.lane.b32.xlu0 %v1395, 120
      %v1513 = vpop.permute.xlu0 %1512
      %1514 = vrot.lane.b32.xlu0 %v1395, 88
      %v1515 = vpop.permute.xlu0 %1514
      %v1517 = vsel %vm1373, %v1513, 0
      %v1520 = vsel %vm1373, %v1515, 0
      %1522 = vmatpush.bf16.xpose.msra.mxu0 0
      %1523 = vmatpush.bf16.xpose.msra.mxu0 0
      %1524 = vmatpush.bf16.xpose.msra.mxu0 0
      %1525 = vmatpush.bf16.xpose.msra.mxu0 0
      %1526 = vmatpush.bf16.xpose.msra.mxu0 0
      %1527 = vmatpush.bf16.xpose.msra.mxu0 0
      %1528 = vmatpush.bf16.xpose.msra.mxu0 0
      %1529 = vmatpush.bf16.xpose.msra.mxu0 %v1520
      %1530 = vmatmul.bf16.gmra.mxu0 %v1517
      %v1531 = vpop.f32.mrf.mxu0
      %v1532 = vadd.f32 0.0, %v1531
      %v1533 = vpop.f32.mrf.mxu0
      %1534 = vdwg.mxu0
      %v1535 = vsel %vm1418, %v1509, -1e+30
      %v1536 = vsel %vm1418, %v1532, -1e+30
      %v1537 = vsel %vm1373, %v1535, -inf
      %1538 = vmax.xlane.f32.xlu0 %v1537
      %v1539 = vpop.xlane.xlu0 %1538
      %v1540 = vsel %vm1373, %v1536, -inf
      %1541 = vmax.xlane.f32.xlu0 %v1540
      %v1542 = vpop.xlane.xlu0 %1541
      %v1543 = vsub.f32 %v1535, %v1539
      %v1544 = vsub.f32 %v1536, %v1542
      %v1545 = vmul.f32 %v1543, 1.442695
      %v1546 = vpow.pop %v1545
      %v1547 = vmul.f32 %v1544, 1.442695
      %v1548 = vpow.pop %v1547
      %v1549 = vsel %vm1373, %v1546, 0.0
      %1550 = vadd.xlane.f32.xlu0 %v1549
      %v1551 = vpop.xlane.xlu0 %1550
      %v1552 = vsel %vm1373, %v1548, 0.0
      %1553 = vadd.xlane.f32.xlu0 %v1552
      %v1554 = vpop.xlane.xlu0 %1553
      %v1555 = vrcp.pop %v1551
      %v1556 = vrcp.pop %v1554
      %v1557 = vmul.f32 %v1546, %v1555
      %v1558 = vmul.f32 %v1548, %v1556
      %v1559 = vpack.c.bf16 %v1557, %v1557
      %v1560 = vpack.c.bf16 %v1558, %v1558
      %1561 = vrot.lane.b32.xlu0 %v1370, 56
      %v1562 = vpop.permute.xlu0 %1561
      %v1564 = vsel %vm1373, %v1559, 0
      %v1567 = vsel %vm1450, %v1562, 0
      %1569 = vmatpush.bf16.msra.mxu0 0
      %1570 = vmatpush.bf16.msra.mxu0 0
      %1571 = vmatpush.bf16.msra.mxu0 0
      %1572 = vmatpush.bf16.msra.mxu0 0
      %1573 = vmatpush.bf16.msra.mxu0 0
      %1574 = vmatpush.bf16.msra.mxu0 0
      %1575 = vmatpush.bf16.msra.mxu0 0
      %1576 = vmatpush.bf16.msra.mxu0 %v1567
      %1577 = vmatmul.bf16.gmra.mxu0 %v1564
      %v1578 = vpop.f32.mrf.mxu0
      %v1579 = vadd.f32 0.0, %v1578
      %v1580 = vpop.f32.mrf.mxu0
      %1581 = vdwg.mxu0
      %1582 = vrot.lane.b32.xlu0 %v1395, 56
      %v1583 = vpop.permute.xlu0 %1582
      %v1585 = vsel %vm1373, %v1560, 0
      %v1588 = vsel %vm1450, %v1583, 0
      %1590 = vmatpush.bf16.msra.mxu0 0
      %1591 = vmatpush.bf16.msra.mxu0 0
      %1592 = vmatpush.bf16.msra.mxu0 0
      %1593 = vmatpush.bf16.msra.mxu0 0
      %1594 = vmatpush.bf16.msra.mxu0 0
      %1595 = vmatpush.bf16.msra.mxu0 0
      %1596 = vmatpush.bf16.msra.mxu0 0
      %1597 = vmatpush.bf16.msra.mxu0 %v1588
      %1598 = vmatmul.bf16.gmra.mxu0 %v1585
      %v1599 = vpop.f32.mrf.mxu0
      %v1600 = vadd.f32 0.0, %v1599
      %v1601 = vpop.f32.mrf.mxu0
      %1602 = vdwg.mxu0
      %v1603 = vpack.c.bf16 %v1600, %v1579
      %v1605 = vsel %vm1373, %v1603, 0
      %v1608 = vsel %vm1450, %v1363, 0
      %1610 = vmatpush.bf16.msra.mxu0 0
      %1611 = vmatpush.bf16.msra.mxu0 0
      %1612 = vmatpush.bf16.msra.mxu0 0
      %1613 = vmatpush.bf16.msra.mxu0 0
      %1614 = vmatpush.bf16.msra.mxu0 0
      %1615 = vmatpush.bf16.msra.mxu0 0
      %1616 = vmatpush.bf16.msra.mxu0 0
      %1617 = vmatpush.bf16.msra.mxu0 %v1608
      %1618 = vmatmul.bf16.gmra.mxu0 %v1605
      %v1619 = vpop.f32.mrf.mxu0
      %v1620 = vadd.f32 0.0, %v1619
      %v1621 = vpop.f32.mrf.mxu0
      %v1622 = vadd.f32 0.0, %v1621
      %1623 = vdwg.mxu0
      %v1625 = vsel %vm1373, %v1488, 0
      %v1628 = vsel %vm1450, %v1362, 0
      %1630 = vmatpush.bf16.msra.mxu0 0
      %1631 = vmatpush.bf16.msra.mxu0 0
      %1632 = vmatpush.bf16.msra.mxu0 0
      %1633 = vmatpush.bf16.msra.mxu0 0
      %1634 = vmatpush.bf16.msra.mxu0 0
      %1635 = vmatpush.bf16.msra.mxu0 0
      %1636 = vmatpush.bf16.msra.mxu0 0
      %1637 = vmatpush.bf16.msra.mxu0 %v1628
      %1638 = vmatmul.bf16.gmra.mxu0 %v1625
      %v1639 = vpop.f32.mrf.mxu0
      %v1640 = vadd.f32 %v1620, %v1639
      %v1641 = vpop.f32.mrf.mxu0
      %v1642 = vadd.f32 %v1622, %v1641
      %1643 = vdwg.mxu0
      %1644 = vrot.lane.b32.xlu0 %v1370, 112
      %v1645 = vpop.permute.xlu0 %1644
      %1646 = vrot.lane.b32.xlu0 %v1370, 80
      %v1647 = vpop.permute.xlu0 %1646
      %v1649 = vsel %vm1373, %v1645, 0
      %v1652 = vsel %vm1373, %v1647, 0
      %1654 = vmatpush.bf16.xpose.msra.mxu0 0
      %1655 = vmatpush.bf16.xpose.msra.mxu0 0
      %1656 = vmatpush.bf16.xpose.msra.mxu0 0
      %1657 = vmatpush.bf16.xpose.msra.mxu0 0
      %1658 = vmatpush.bf16.xpose.msra.mxu0 0
      %1659 = vmatpush.bf16.xpose.msra.mxu0 0
      %1660 = vmatpush.bf16.xpose.msra.mxu0 0
      %1661 = vmatpush.bf16.xpose.msra.mxu0 %v1652
      %1662 = vmatmul.bf16.gmra.mxu0 %v1649
      %v1663 = vpop.f32.mrf.mxu0
      %v1664 = vadd.f32 0.0, %v1663
      %v1665 = vpop.f32.mrf.mxu0
      %1666 = vdwg.mxu0
      %1667 = vrot.lane.b32.xlu0 %v1395, 112
      %v1668 = vpop.permute.xlu0 %1667
      %1669 = vrot.lane.b32.xlu0 %v1395, 80
      %v1670 = vpop.permute.xlu0 %1669
      %v1672 = vsel %vm1373, %v1668, 0
      %v1675 = vsel %vm1373, %v1670, 0
      %1677 = vmatpush.bf16.xpose.msra.mxu0 0
      %1678 = vmatpush.bf16.xpose.msra.mxu0 0
      %1679 = vmatpush.bf16.xpose.msra.mxu0 0
      %1680 = vmatpush.bf16.xpose.msra.mxu0 0
      %1681 = vmatpush.bf16.xpose.msra.mxu0 0
      %1682 = vmatpush.bf16.xpose.msra.mxu0 0
      %1683 = vmatpush.bf16.xpose.msra.mxu0 0
      %1684 = vmatpush.bf16.xpose.msra.mxu0 %v1675
      %1685 = vmatmul.bf16.gmra.mxu0 %v1672
      %v1686 = vpop.f32.mrf.mxu0
      %v1687 = vadd.f32 0.0, %v1686
      %v1688 = vpop.f32.mrf.mxu0
      %1689 = vdwg.mxu0
      %v1690 = vsel %vm1418, %v1664, -1e+30
      %v1691 = vsel %vm1418, %v1687, -1e+30
      %v1692 = vsel %vm1373, %v1690, -inf
      %1693 = vmax.xlane.f32.xlu0 %v1692
      %v1694 = vpop.xlane.xlu0 %1693
      %v1695 = vsel %vm1373, %v1691, -inf
      %1696 = vmax.xlane.f32.xlu0 %v1695
      %v1697 = vpop.xlane.xlu0 %1696
      %v1698 = vsub.f32 %v1690, %v1694
      %v1699 = vsub.f32 %v1691, %v1697
      %v1700 = vmul.f32 %v1698, 1.442695
      %v1701 = vpow.pop %v1700
      %v1702 = vmul.f32 %v1699, 1.442695
      %v1703 = vpow.pop %v1702
      %v1704 = vsel %vm1373, %v1701, 0.0
      %1705 = vadd.xlane.f32.xlu0 %v1704
      %v1706 = vpop.xlane.xlu0 %1705
      %v1707 = vsel %vm1373, %v1703, 0.0
      %1708 = vadd.xlane.f32.xlu0 %v1707
      %v1709 = vpop.xlane.xlu0 %1708
      %v1710 = vrcp.pop %v1706
      %v1711 = vrcp.pop %v1709
      %v1712 = vmul.f32 %v1701, %v1710
      %v1713 = vmul.f32 %v1703, %v1711
      %v1714 = vpack.c.bf16 %v1712, %v1712
      %v1715 = vpack.c.bf16 %v1713, %v1713
      %1716 = vrot.lane.b32.xlu0 %v1370, 48
      %v1717 = vpop.permute.xlu0 %1716
      %v1719 = vsel %vm1373, %v1714, 0
      %v1722 = vsel %vm1450, %v1717, 0
      %1724 = vmatpush.bf16.msra.mxu0 0
      %1725 = vmatpush.bf16.msra.mxu0 0
      %1726 = vmatpush.bf16.msra.mxu0 0
      %1727 = vmatpush.bf16.msra.mxu0 0
      %1728 = vmatpush.bf16.msra.mxu0 0
      %1729 = vmatpush.bf16.msra.mxu0 0
      %1730 = vmatpush.bf16.msra.mxu0 0
      %1731 = vmatpush.bf16.msra.mxu0 %v1722
      %1732 = vmatmul.bf16.gmra.mxu0 %v1719
      %v1733 = vpop.f32.mrf.mxu0
      %v1734 = vadd.f32 0.0, %v1733
      %v1735 = vpop.f32.mrf.mxu0
      %1736 = vdwg.mxu0
      %1737 = vrot.lane.b32.xlu0 %v1395, 48
      %v1738 = vpop.permute.xlu0 %1737
      %v1740 = vsel %vm1373, %v1715, 0
      %v1743 = vsel %vm1450, %v1738, 0
      %1745 = vmatpush.bf16.msra.mxu0 0
      %1746 = vmatpush.bf16.msra.mxu0 0
      %1747 = vmatpush.bf16.msra.mxu0 0
      %1748 = vmatpush.bf16.msra.mxu0 0
      %1749 = vmatpush.bf16.msra.mxu0 0
      %1750 = vmatpush.bf16.msra.mxu0 0
      %1751 = vmatpush.bf16.msra.mxu0 0
      %1752 = vmatpush.bf16.msra.mxu0 %v1743
      %1753 = vmatmul.bf16.gmra.mxu0 %v1740
      %v1754 = vpop.f32.mrf.mxu0
      %v1755 = vadd.f32 0.0, %v1754
      %v1756 = vpop.f32.mrf.mxu0
      %1757 = vdwg.mxu0
      %v1758 = vpack.c.bf16 %v1755, %v1734
      %v1760 = vsel %vm1373, %v1758, 0
      %v1763 = vsel %vm1450, %v1364, 0
      %1765 = vmatpush.bf16.msra.mxu0 0
      %1766 = vmatpush.bf16.msra.mxu0 0
      %1767 = vmatpush.bf16.msra.mxu0 0
      %1768 = vmatpush.bf16.msra.mxu0 0
      %1769 = vmatpush.bf16.msra.mxu0 0
      %1770 = vmatpush.bf16.msra.mxu0 0
      %1771 = vmatpush.bf16.msra.mxu0 0
      %1772 = vmatpush.bf16.msra.mxu0 %v1763
      %1773 = vmatmul.bf16.gmra.mxu0 %v1760
      %v1774 = vpop.f32.mrf.mxu0
      %v1775 = vadd.f32 0.0, %v1774
      %v1776 = vpop.f32.mrf.mxu0
      %v1777 = vadd.f32 0.0, %v1776
      %1778 = vdwg.mxu0
      %v1779 = vadd.f32 %v1640, %v1775
      %v1780 = vadd.f32 %v1642, %v1777
      %1781 = vrot.lane.b32.xlu0 %v1370, 104
      %v1782 = vpop.permute.xlu0 %1781
      %1783 = vrot.lane.b32.xlu0 %v1370, 72
      %v1784 = vpop.permute.xlu0 %1783
      %v1786 = vsel %vm1373, %v1782, 0
      %v1789 = vsel %vm1373, %v1784, 0
      %1791 = vmatpush.bf16.xpose.msra.mxu0 0
      %1792 = vmatpush.bf16.xpose.msra.mxu0 0
      %1793 = vmatpush.bf16.xpose.msra.mxu0 0
      %1794 = vmatpush.bf16.xpose.msra.mxu0 0
      %1795 = vmatpush.bf16.xpose.msra.mxu0 0
      %1796 = vmatpush.bf16.xpose.msra.mxu0 0
      %1797 = vmatpush.bf16.xpose.msra.mxu0 0
      %1798 = vmatpush.bf16.xpose.msra.mxu0 %v1789
      %1799 = vmatmul.bf16.gmra.mxu0 %v1786
      %v1800 = vpop.f32.mrf.mxu0
      %v1801 = vadd.f32 0.0, %v1800
      %v1802 = vpop.f32.mrf.mxu0
      %1803 = vdwg.mxu0
      %1804 = vrot.lane.b32.xlu0 %v1395, 104
      %v1805 = vpop.permute.xlu0 %1804
      %1806 = vrot.lane.b32.xlu0 %v1395, 72
      %v1807 = vpop.permute.xlu0 %1806
      %v1809 = vsel %vm1373, %v1805, 0
      %v1812 = vsel %vm1373, %v1807, 0
      %1814 = vmatpush.bf16.xpose.msra.mxu0 0
      %1815 = vmatpush.bf16.xpose.msra.mxu0 0
      %1816 = vmatpush.bf16.xpose.msra.mxu0 0
      %1817 = vmatpush.bf16.xpose.msra.mxu0 0
      %1818 = vmatpush.bf16.xpose.msra.mxu0 0
      %1819 = vmatpush.bf16.xpose.msra.mxu0 0
      %1820 = vmatpush.bf16.xpose.msra.mxu0 0
      %1821 = vmatpush.bf16.xpose.msra.mxu0 %v1812
      %1822 = vmatmul.bf16.gmra.mxu0 %v1809
      %v1823 = vpop.f32.mrf.mxu0
      %v1824 = vadd.f32 0.0, %v1823
      %v1825 = vpop.f32.mrf.mxu0
      %1826 = vdwg.mxu0
      %v1827 = vsel %vm1418, %v1801, -1e+30
      %v1828 = vsel %vm1418, %v1824, -1e+30
      %v1829 = vsel %vm1373, %v1827, -inf
      %1830 = vmax.xlane.f32.xlu0 %v1829
      %v1831 = vpop.xlane.xlu0 %1830
      %v1832 = vsel %vm1373, %v1828, -inf
      %1833 = vmax.xlane.f32.xlu0 %v1832
      %v1834 = vpop.xlane.xlu0 %1833
      %v1835 = vsub.f32 %v1827, %v1831
      %v1836 = vsub.f32 %v1828, %v1834
      %v1837 = vmul.f32 %v1835, 1.442695
      %v1838 = vpow.pop %v1837
      %v1839 = vmul.f32 %v1836, 1.442695
      %v1840 = vpow.pop %v1839
      %v1841 = vsel %vm1373, %v1838, 0.0
      %1842 = vadd.xlane.f32.xlu0 %v1841
      %v1843 = vpop.xlane.xlu0 %1842
      %v1844 = vsel %vm1373, %v1840, 0.0
      %1845 = vadd.xlane.f32.xlu0 %v1844
      %v1846 = vpop.xlane.xlu0 %1845
      %v1847 = vrcp.pop %v1843
      %v1848 = vrcp.pop %v1846
      %v1849 = vmul.f32 %v1838, %v1847
      %v1850 = vmul.f32 %v1840, %v1848
      %v1851 = vpack.c.bf16 %v1849, %v1849
      %v1852 = vpack.c.bf16 %v1850, %v1850
      %1853 = vrot.lane.b32.xlu0 %v1370, 40
      %v1854 = vpop.permute.xlu0 %1853
      %v1856 = vsel %vm1373, %v1851, 0
      %v1859 = vsel %vm1450, %v1854, 0
      %1861 = vmatpush.bf16.msra.mxu0 0
      %1862 = vmatpush.bf16.msra.mxu0 0
      %1863 = vmatpush.bf16.msra.mxu0 0
      %1864 = vmatpush.bf16.msra.mxu0 0
      %1865 = vmatpush.bf16.msra.mxu0 0
      %1866 = vmatpush.bf16.msra.mxu0 0
      %1867 = vmatpush.bf16.msra.mxu0 0
      %1868 = vmatpush.bf16.msra.mxu0 %v1859
      %1869 = vmatmul.bf16.gmra.mxu0 %v1856
      %v1870 = vpop.f32.mrf.mxu0
      %v1871 = vadd.f32 0.0, %v1870
      %v1872 = vpop.f32.mrf.mxu0
      %1873 = vdwg.mxu0
      %1874 = vrot.lane.b32.xlu0 %v1395, 40
      %v1875 = vpop.permute.xlu0 %1874
      %v1877 = vsel %vm1373, %v1852, 0
      %v1880 = vsel %vm1450, %v1875, 0
      %1882 = vmatpush.bf16.msra.mxu0 0
      %1883 = vmatpush.bf16.msra.mxu0 0
      %1884 = vmatpush.bf16.msra.mxu0 0
      %1885 = vmatpush.bf16.msra.mxu0 0
      %1886 = vmatpush.bf16.msra.mxu0 0
      %1887 = vmatpush.bf16.msra.mxu0 0
      %1888 = vmatpush.bf16.msra.mxu0 0
      %1889 = vmatpush.bf16.msra.mxu0 %v1880
      %1890 = vmatmul.bf16.gmra.mxu0 %v1877
      %v1891 = vpop.f32.mrf.mxu0
      %v1892 = vadd.f32 0.0, %v1891
      %v1893 = vpop.f32.mrf.mxu0
      %1894 = vdwg.mxu0
      %v1895 = vpack.c.bf16 %v1892, %v1871
      %v1897 = vsel %vm1373, %v1895, 0
      %v1900 = vsel %vm1450, %v1365, 0
      %1902 = vmatpush.bf16.msra.mxu0 0
      %1903 = vmatpush.bf16.msra.mxu0 0
      %1904 = vmatpush.bf16.msra.mxu0 0
      %1905 = vmatpush.bf16.msra.mxu0 0
      %1906 = vmatpush.bf16.msra.mxu0 0
      %1907 = vmatpush.bf16.msra.mxu0 0
      %1908 = vmatpush.bf16.msra.mxu0 0
      %1909 = vmatpush.bf16.msra.mxu0 %v1900
      %1910 = vmatmul.bf16.gmra.mxu0 %v1897
      %v1911 = vpop.f32.mrf.mxu0
      %v1912 = vadd.f32 0.0, %v1911
      %v1913 = vpop.f32.mrf.mxu0
      %v1914 = vadd.f32 0.0, %v1913
      %1915 = vdwg.mxu0
      %v1916 = vadd.f32 %v1779, %v1912
      %v1917 = vadd.f32 %v1780, %v1914
      %v1918 = vld [vmem:[%s750] sm:$0x1]
      %v1920 = vperm.slane %v1918, 0
      %v1922 = vadd.f32 %v1916, %v1920
      %v1923 = vadd.f32 %v1917, %v1920
      %v1924 = vadd.f32 %v1318, %v1922
      %v1925 = vadd.f32 %v1319, %v1923
      %v1926 = vld [vmem:[%s753] sm:$0x1]
      %v1927 = vld [vmem:[%s756] sm:$0x1]
      %v1928 = vsel %vm1341, %v1924, 0.0
      %1929 = vadd.xlane.f32.xlu0 %v1928
      %v1930 = vpop.xlane.xlu0 %1929
      %v1931 = vsel %vm1341, %v1925, 0.0
      %1932 = vadd.xlane.f32.xlu0 %v1931
      %v1933 = vpop.xlane.xlu0 %1932
      %v1934 = vrcp.pop 32.0
      %v1935 = vmul.f32 32.0, %v1934
      %v1936 = vsub.f32 1.0, %v1935
      %v1937 = vmul.f32 %v1934, %v1936
      %v1938 = vadd.f32 %v1934, %v1937
      %vm1939 = vweird.f32 %v1934
      %v1940 = vsel %vm1939, %v1934, %v1938
      %v1941 = vmul.f32 %v1930, %v1940
      %v1942 = vmul.f32 %v1933, %v1940
      %v1943 = vsub.f32 %v1924, %v1941
      %v1944 = vsub.f32 %v1925, %v1942
      %v1945 = vmul.f32 %v1943, %v1943
      %v1946 = vmul.f32 %v1944, %v1944
      %v1947 = vsel %vm1341, %v1945, 0.0
      %1948 = vadd.xlane.f32.xlu0 %v1947
      %v1949 = vpop.xlane.xlu0 %1948
      %v1950 = vsel %vm1341, %v1946, 0.0
      %1951 = vadd.xlane.f32.xlu0 %v1950
      %v1952 = vpop.xlane.xlu0 %1951
      %v1953 = vmul.f32 %v1949, %v1940
      %v1954 = vmul.f32 %v1952, %v1940
      %v1955 = vadd.f32 %v1953, 1e-05
      %v1956 = vadd.f32 %v1954, 1e-05
      %v1957 = vrsqrt.pop %v1955
      %v1958 = vmul.f32 %v1957, %v1955
      %v1959 = vmul.f32 %v1958, %v1957
      %v1960 = vmul.f32 0.5, %v1959
      %v1961 = vsub.f32 1.5, %v1960
      %v1962 = vmul.f32 %v1957, %v1961
      %vm1963 = vweird.f32 %v1955
      %vm1964 = vweird.f32 %v1957
      %vm1965 = vmor %vm1963, %vm1964
      %v1966 = vsel %vm1965, %v1957, %v1962
      %v1967 = vrsqrt.pop %v1956
      %v1968 = vmul.f32 %v1967, %v1956
      %v1969 = vmul.f32 %v1968, %v1967
      %v1970 = vmul.f32 0.5, %v1969
      %v1971 = vsub.f32 1.5, %v1970
      %v1972 = vmul.f32 %v1967, %v1971
      %vm1973 = vweird.f32 %v1956
      %vm1974 = vweird.f32 %v1967
      %vm1975 = vmor %vm1973, %vm1974
      %v1976 = vsel %vm1975, %v1967, %v1972
      %v1977 = vmul.f32 %v1943, %v1966
      %v1978 = vmul.f32 %v1944, %v1976
      %v1980 = vperm.slane %v1926, 0
      %v1982 = vmul.f32 %v1977, %v1980
      %v1983 = vmul.f32 %v1978, %v1980
      %v1985 = vperm.slane %v1927, 0
      %v1987 = vadd.f32 %v1982, %v1985
      %v1988 = vadd.f32 %v1983, %v1985
      %v1989 = vpack.c.bf16 %v1988, %v1987
      %v1990 = vld [vmem:[%s761] sm:$0xf]
      %v1991 = vld [vmem:[%s761 + $0x4] sm:$0xf]
      %v1992 = vld [vmem:[%s761 + $0x8] sm:$0xf]
      %v1993 = vld [vmem:[%s761 + $0xc] sm:$0xf]
      %v1994 = vld [vmem:[%s764] sm:$0x1]
      %v1996 = vperm.slane %v1994, 0
      %v2002 = vunpack.c.l.b16 %v1990
      %v2003 = vunpack.c.l.b16 %v1991
      %v2004 = vunpack.c.l.b16 %v1992
      %v2005 = vunpack.c.l.b16 %v1993
      %v2006 = vpack.c.b16 %v2003, %v2002
      %v2007 = vpack.c.b16 %v2005, %v2004
      %v2011 = vsel %vm1341, %v1989, 0
      %2013 = vmatpush.bf16.msra.mxu0 0
      %2014 = vmatpush.bf16.msra.mxu0 0
      %2015 = vmatpush.bf16.msra.mxu0 0
      %2016 = vmatpush.bf16.msra.mxu0 0
      %2017 = vmatpush.bf16.msra.mxu0 0
      %2018 = vmatpush.bf16.msra.mxu0 0
      %2019 = vmatpush.bf16.msra.mxu0 %v2007
      %2020 = vmatpush.bf16.msra.mxu0 %v2006
      %2021 = vmatmul.bf16.gmra.mxu0 %v2011
      %v2022 = vpop.f32.mrf.mxu0
      %v2023 = vadd.f32 %v1996, %v2022
      %v2024 = vpop.f32.mrf.mxu0
      %v2025 = vadd.f32 %v1996, %v2024
      %2026 = vdwg.mxu0
      %v2027 = vmax.f32 %v2023, 0.0
      %v2028 = vmax.f32 %v2025, 0.0
      %v2029 = vpack.c.bf16 %v2028, %v2027
      %v2030 = vld [vmem:[%s769] sm:$0xf]
      %v2031 = vld [vmem:[%s769 + $0x4] sm:$0xf]
      %v2032 = vld [vmem:[%s769 + $0x8] sm:$0xf]
      %v2033 = vld [vmem:[%s769 + $0xc] sm:$0xf]
      %v2034 = vld [vmem:[%s769 + $0x10] sm:$0xf]
      %v2035 = vld [vmem:[%s769 + $0x14] sm:$0xf]
      %v2036 = vld [vmem:[%s769 + $0x18] sm:$0xf]
      %v2037 = vld [vmem:[%s769 + $0x1c] sm:$0xf]
      %v2038 = vld [vmem:[%s769 + $0x20] sm:$0xf]
      %v2039 = vld [vmem:[%s769 + $0x24] sm:$0xf]
      %v2040 = vld [vmem:[%s769 + $0x28] sm:$0xf]
      %v2041 = vld [vmem:[%s769 + $0x2c] sm:$0xf]
      %v2042 = vld [vmem:[%s769 + $0x30] sm:$0xf]
      %v2043 = vld [vmem:[%s769 + $0x34] sm:$0xf]
      %v2044 = vld [vmem:[%s769 + $0x38] sm:$0xf]
      %v2045 = vld [vmem:[%s769 + $0x3c] sm:$0xf]
      %v2046 = vld [vmem:[%s772] sm:$0x1]
      %v2048 = vperm.slane %v2046, 0
      %v2066 = vunpack.c.l.b16 %v2030
      %v2067 = vunpack.c.l.b16 %v2031
      %v2068 = vunpack.c.l.b16 %v2032
      %v2069 = vunpack.c.l.b16 %v2033
      %v2070 = vunpack.c.l.b16 %v2034
      %v2071 = vunpack.c.l.b16 %v2035
      %v2072 = vunpack.c.l.b16 %v2036
      %v2073 = vunpack.c.l.b16 %v2037
      %v2074 = vunpack.c.l.b16 %v2038
      %v2075 = vunpack.c.l.b16 %v2039
      %v2076 = vunpack.c.l.b16 %v2040
      %v2077 = vunpack.c.l.b16 %v2041
      %v2078 = vunpack.c.l.b16 %v2042
      %v2079 = vunpack.c.l.b16 %v2043
      %v2080 = vunpack.c.l.b16 %v2044
      %v2081 = vunpack.c.l.b16 %v2045
      %v2082 = vpack.c.b16 %v2067, %v2066
      %v2083 = vpack.c.b16 %v2069, %v2068
      %v2084 = vpack.c.b16 %v2071, %v2070
      %v2085 = vpack.c.b16 %v2073, %v2072
      %v2086 = vpack.c.b16 %v2075, %v2074
      %v2087 = vpack.c.b16 %v2077, %v2076
      %v2088 = vpack.c.b16 %v2079, %v2078
      %v2089 = vpack.c.b16 %v2081, %v2080
      %2098 = vmatpush.bf16.msra.mxu0 %v2089
      %2099 = vmatpush.bf16.msra.mxu0 %v2088
      %2100 = vmatpush.bf16.msra.mxu0 %v2087
      %2101 = vmatpush.bf16.msra.mxu0 %v2086
      %2102 = vmatpush.bf16.msra.mxu0 %v2085
      %2103 = vmatpush.bf16.msra.mxu0 %v2084
      %2104 = vmatpush.bf16.msra.mxu0 %v2083
      %2105 = vmatpush.bf16.msra.mxu0 %v2082
      %2106 = vmatmul.bf16.gmra.mxu0 %v2029
      %v2107 = vpop.f32.mrf.mxu0
      %v2108 = vadd.f32 %v2048, %v2107
      %v2109 = vpop.f32.mrf.mxu0
      %v2110 = vadd.f32 %v2048, %v2109
      %2111 = vdwg.mxu0
      %v2112 = vadd.f32 %v1987, %v2108
      %v2113 = vadd.f32 %v1988, %v2110
      %v2114 = vld [vmem:[%s775] sm:$0x1]
      %v2115 = vld [vmem:[%s778] sm:$0x1]
      %v2116 = vsel %vm1341, %v2112, 0.0
      %2117 = vadd.xlane.f32.xlu0 %v2116
      %v2118 = vpop.xlane.xlu0 %2117
      %v2119 = vsel %vm1341, %v2113, 0.0
      %2120 = vadd.xlane.f32.xlu0 %v2119
      %v2121 = vpop.xlane.xlu0 %2120
      %v2122 = vmul.f32 %v2118, %v1940
      %v2123 = vmul.f32 %v2121, %v1940
      %v2124 = vsub.f32 %v2112, %v2122
      %v2125 = vsub.f32 %v2113, %v2123
      %v2126 = vmul.f32 %v2124, %v2124
      %v2127 = vmul.f32 %v2125, %v2125
      %v2128 = vsel %vm1341, %v2126, 0.0
      %2129 = vadd.xlane.f32.xlu0 %v2128
      %v2130 = vpop.xlane.xlu0 %2129
      %v2131 = vsel %vm1341, %v2127, 0.0
      %2132 = vadd.xlane.f32.xlu0 %v2131
      %v2133 = vpop.xlane.xlu0 %2132
      %v2134 = vmul.f32 %v2130, %v1940
      %v2135 = vmul.f32 %v2133, %v1940
      %v2136 = vadd.f32 %v2134, 1e-05
      %v2137 = vadd.f32 %v2135, 1e-05
      %v2138 = vrsqrt.pop %v2136
      %v2139 = vmul.f32 %v2138, %v2136
      %v2140 = vmul.f32 %v2139, %v2138
      %v2141 = vmul.f32 0.5, %v2140
      %v2142 = vsub.f32 1.5, %v2141
      %v2143 = vmul.f32 %v2138, %v2142
      %vm2144 = vweird.f32 %v2136
      %vm2145 = vweird.f32 %v2138
      %vm2146 = vmor %vm2144, %vm2145
      %v2147 = vsel %vm2146, %v2138, %v2143
      %v2148 = vrsqrt.pop %v2137
      %v2149 = vmul.f32 %v2148, %v2137
      %v2150 = vmul.f32 %v2149, %v2148
      %v2151 = vmul.f32 0.5, %v2150
      %v2152 = vsub.f32 1.5, %v2151
      %v2153 = vmul.f32 %v2148, %v2152
      %vm2154 = vweird.f32 %v2137
      %vm2155 = vweird.f32 %v2148
      %vm2156 = vmor %vm2154, %vm2155
      %v2157 = vsel %vm2156, %v2148, %v2153
      %v2158 = vmul.f32 %v2124, %v2147
      %v2159 = vmul.f32 %v2125, %v2157
      %v2161 = vperm.slane %v2114, 0
      %v2163 = vmul.f32 %v2158, %v2161
      %v2164 = vmul.f32 %v2159, %v2161
      %v2166 = vperm.slane %v2115, 0
      %v2168 = vadd.f32 %v2163, %v2166
      %v2169 = vadd.f32 %v2164, %v2166
      %2170 = vst.msk [vmem:[#allocation2] sm:$0xff] %vm1341, %v2168
      %2171 = vst.msk [vmem:[#allocation2 + $0x8] sm:$0xff] %vm1341, %v2169
      %p2172 = scmp.eq.s32.totalorder %s34, 1
      // Predicated region
      $region97: #{_lambda_.3} parent=91 // pred_check
        %p2173 = pneg %p2172
      $region98: #{_lambda_.3} parent=91 // pred_check_branch
        %2175 = sbr.rel (%p2173) target = $region100
      $region99: #{_lambda_.3} parent=91 // pred_region
        %v2176 = vld [vmem:[#allocation2] sm:$0xff]
        %v2177 = vld [vmem:[#allocation2 + $0x8] sm:$0xff]
        %v2178 = vpack.c.bf16 %v2176, %v2176
        %v2179 = vpack.c.bf16 %v2177, %v2177
        %v2180 = vld [vmem:[%s4] sm:$0xf]
        %v2181 = vld [vmem:[%s4 + $0x4] sm:$0xf]
        %v2182 = vld [vmem:[%s4 + $0x8] sm:$0xf]
        %v2183 = vld [vmem:[%s4 + $0xc] sm:$0xf]
        %v2184 = vld [vmem:[%s5] sm:$0x1]
        %v2186 = vperm.slane %v2184, 0
        %v2190 = vunpack.c.l.b16 %v2178
        %v2191 = vunpack.c.l.b16 %v2179
        %v2192 = vrot.slane %v2191, 7
        %vm2193 = vcmask 1041409
        %v2194 = vsel %vm2193, %v2192, %v2190
        %v2195 = vpack.c.b16 %v2194, %v2194
        %v2200 = vunpack.c.l.b16 %v2180
        %v2201 = vunpack.c.l.b16 %v2181
        %v2202 = vunpack.c.l.b16 %v2182
        %v2203 = vunpack.c.l.b16 %v2183
        %v2204 = vpack.c.b16 %v2201, %v2200
        %v2205 = vpack.c.b16 %v2203, %v2202
        %v2209 = vsel %vm1341, %v2195, 0
        %2211 = vmatpush.bf16.msra.mxu0 0
        %2212 = vmatpush.bf16.msra.mxu0 0
        %2213 = vmatpush.bf16.msra.mxu0 0
        %2214 = vmatpush.bf16.msra.mxu0 0
        %2215 = vmatpush.bf16.msra.mxu0 0
        %2216 = vmatpush.bf16.msra.mxu0 0
        %2217 = vmatpush.bf16.msra.mxu0 %v2205
        %2218 = vmatpush.bf16.msra.mxu0 %v2204
        %2219 = vmatmul.bf16.gmra.mxu0 %v2209
        %v2220 = vpop.f32.mrf.mxu0
        %v2221 = vadd.f32 %v2186, %v2220
        %v2222 = vpop.f32.mrf.mxu0
        %2223 = vdwg.mxu0
        %2224 = vst [vmem:[%s782] sm:$0x3] %v2221
      $region100: #{_lambda_.3} parent=91 // pred_fallthru
        _
      %p2225 = scmp.lt.s32.totalorder %s33, 0
      %s2226 = scalar_select %p2225, %s33, 0
      %s2227 = smul.addr %s2226, 2
      %s2228 = scalar_lea.vmem %s18, %s2227
      // Predicated region
      $region101: #{_lambda_.3} parent=91 // pred_check
        %p2229 = pneg %p502
      $region102: #{_lambda_.3} parent=91 // pred_check_branch
        %2231 = sbr.rel (%p2229) target = $region104
      $region103: #{_lambda_.3} parent=91 // pred_region
        _
      $region104: #{_lambda_.3} parent=91 // pred_fallthru
        _
      // Predicated region
      $region105: #{_lambda_.3} parent=91 // pred_check
        %p2232 = pneg %p502
      $region106: #{_lambda_.3} parent=91 // pred_check_branch
        %2234 = sbr.rel (%p2232) target = $region108
      $region107: #{_lambda_.3} parent=91 // pred_region
        %p2235 = scmp.lt.s32.totalorder %s33, 0
        %s2236 = scalar_select %p2235, %s33, 0
        %s2237 = smul.addr %s2236, 2
        %s2238 = scalar_lea.vmem %s18, %s2237
      $region108: #{_lambda_.3} parent=91 // pred_fallthru
        _
    $region92: #{_lambda_.3} parent=5 // pred_fallthru
      _
    %p2239 = scmp.le.s32.totalorder 2, %s24
    // Predicated region
    $region109: #{_lambda_.3} parent=5 // pred_check
      %p2240 = pneg %p2239
    $region110: #{_lambda_.3} parent=5 // pred_check_branch
      %2242 = sbr.rel (%p2240) target = $region112
    $region111: #{_lambda_.3} parent=5 // pred_region
      %s2243 = ssub.s32 %s24, 2
    $region112: #{_lambda_.3} parent=5 // pred_fallthru
      _
  $region6: #{_lambda_.3} parent=0 // loop_footer
    %s28 = sadd.s32 1, %s24
  $region7: #{_lambda_.3} parent=0 // loop_footer_branch
    %23 = sbr.rel target = $region3
  $region8: #{_lambda_.3} parent=0 // loop_exit
    _

</llo_original>
